<compile_context>
chip_gen: v5e
topology: v5e:2x2
jax: 0.10.0
libtpu: 0.0.40
codegen_flags: <defaults>
</compile_context>

<pallas_src>
import functools

import jax
import jax.numpy as jnp
from jax.experimental import pallas as pl
from jax.experimental.pallas import tpu as pltpu


def _symm_dist_kernel(planar_ref, quat_ref, grid_ref, pts_ref, o_ref, *, n_valid):
    # Per grid step (one sample):
    #   planar_ref: (1, D0, 4)    plane params (nx, ny, nz, d)
    #   quat_ref:   (1, D1, 4)    quaternions (w, x, y, z)
    #   grid_ref:   (1, 384, 256) re-laid grid: [c*128 + l, r] with cell_lin = r*128 + l
    #   pts_ref:    (1, 3, Np)    sample points, lane-dense over points (padded)
    #   o_ref:      (1, 1, 128)   per-sample summed symmetry distance (broadcast on lanes)
    pts = pts_ref[0]                                     # (3, Np)
    np_lanes = pts.shape[1]
    px = pts[0:1, :]
    py = pts[1:2, :]
    pz = pts[2:3, :]

    lane_id = jax.lax.broadcasted_iota(jnp.int32, (1, np_lanes), 1)
    valid = lane_id < n_valid                            # mask padded points

    grid_slab = grid_ref[0]                              # (384, 256)
    iota_r = jax.lax.broadcasted_iota(jnp.int32, (256, np_lanes), 0)
    iota_l = jax.lax.broadcasted_iota(jnp.int32, (128, np_lanes), 0)

    # ---- planar reflective transform for all D0 planes: q' = q - 2(<q,n> + d) n ----
    plane = planar_ref[0]                                # (D0, 4)
    nvec = plane[:, 0:3]
    inv_n = jax.lax.rsqrt(jnp.sum(nvec * nvec, axis=1, keepdims=True))   # (D0, 1)
    nx = nvec[:, 0:1] * inv_n
    ny = nvec[:, 1:2] * inv_n
    nz = nvec[:, 2:3] * inv_n
    dpl = plane[:, 3:4]
    coeff = 2.0 * (px * nx + py * ny + pz * nz + dpl)    # (D0, Np)
    p_tx = px - coeff * nx
    p_ty = py - coeff * ny
    p_tz = pz - coeff * nz

    # ---- quaternion transform (faithful to the reference, incl. its [0:3] slice) ----
    q4 = quat_ref[0]                                     # (D1, 4)
    inv_q = jax.lax.rsqrt(jnp.sum(q4 * q4, axis=1, keepdims=True))       # (D1, 1)
    qw = q4[:, 0:1] * inv_q
    qx = q4[:, 1:2] * inv_q
    qy = q4[:, 2:3] * inv_q
    qz = q4[:, 3:4] * inv_q
    t_r = -(px * qx + py * qy + pz * qz)                 # (D1, Np)
    t_i = px * qw + py * qz - pz * qy
    t_j = py * qw + pz * qx - px * qz
    t_k = pz * qw + px * qy - py * qx
    q_tx = qw * t_r + qx * t_i + qy * t_j + qz * t_k     # ~0: reference keeps comps 0:3
    q_ty = -qx * t_r + qw * t_i - qy * t_k + qz * t_j
    q_tz = -qy * t_r + qw * t_j - qz * t_i + qx * t_k

    def dist_sum(tx, ty, tz, acc):
        # tx/ty/tz: (D, Np) transformed query points. One-hot MXU gather of the
        # corresponding grid cell, then accumulate masked Euclidean distances.
        ix = jnp.clip(jnp.floor(tx * 16.0 + 16.0), 0.0, 31.0).astype(jnp.int32)
        iy = jnp.clip(jnp.floor(ty * 16.0 + 16.0), 0.0, 31.0).astype(jnp.int32)
        iz = jnp.clip(jnp.floor(tz * 16.0 + 16.0), 0.0, 31.0).astype(jnp.int32)
        lin = ix * 1024 + iy * 32 + iz                   # (D, Np), in [0, 32768)
        r_idx = jnp.right_shift(lin, 7)                  # column of the slab, [0, 256)
        l_idx = jnp.bitwise_and(lin, 127)                # sub-row of the slab, [0, 128)
        d_planes = tx.shape[0]
        for k in range(d_planes):                        # static unroll, D is tiny
            oh_r = jnp.where(iota_r == r_idx[k:k + 1, :], 1.0, 0.0)   # (256, Np)
            oh_l = jnp.where(iota_l == l_idx[k:k + 1, :], 1.0, 0.0)   # (128, Np)
            # (384, 256) @ (256, Np) on the MXU; rows c*128+l hold channel c, sub-row l.
            tmp = jnp.dot(grid_slab, oh_r, preferred_element_type=jnp.float32)
            qc = (tx[k:k + 1, :], ty[k:k + 1, :], tz[k:k + 1, :])
            d2 = jnp.zeros((1, np_lanes), jnp.float32)
            for c in range(3):
                gc = jnp.sum(tmp[c * 128:(c + 1) * 128, :] * oh_l,
                             axis=0, keepdims=True)      # (1, Np) gathered channel c
                diff = gc - qc[c]
                d2 = d2 + diff * diff
            dist = jnp.sqrt(d2)                          # (1, Np)
            acc = acc + jnp.where(valid, dist, 0.0)
        return acc

    acc = jnp.zeros((1, np_lanes), jnp.float32)
    acc = dist_sum(p_tx, p_ty, p_tz, acc)                # planar queries
    acc = dist_sum(q_tx, q_ty, q_tz, acc)                # quaternion queries
    total = jnp.sum(acc, axis=1, keepdims=True)          # (1, 1) per-sample loss
    o_ref[...] = jnp.broadcast_to(total, (1, 1, 128))    # lane-dense store


def prsnet_symm_dist_loss(batch_planar_features, batch_quat_features,
                          batch_grid_points, batch_sample_points):
    M, N, _ = batch_sample_points.shape
    D0 = batch_planar_features.shape[1]
    D1 = batch_quat_features.shape[1]
    assert batch_grid_points.shape == (M, 32, 32, 32, 3)
    assert batch_sample_points.shape == (M, N, 3)
    assert batch_planar_features.shape == (M, D0, 4)
    assert batch_quat_features.shape == (M, D1, 4)

    f32 = jnp.float32
    planar = batch_planar_features.astype(f32)
    quat = batch_quat_features.astype(f32)
    pts = batch_sample_points.astype(f32)
    grid = batch_grid_points.astype(f32)

    # Lane-dense point layout: (M, 3, Npad), Npad a multiple of 128 (masked in-kernel).
    n_pad = max(128, ((N + 127) // 128) * 128)
    pts_t = jnp.swapaxes(pts, 1, 2)                      # (M, 3, N)
    if n_pad != N:
        pts_t = jnp.pad(pts_t, ((0, 0), (0, 0), (0, n_pad - N)))

    # Grid re-layout for the one-hot MXU gather:
    #   grid_t[m, c*128 + l, r] == grid[m].reshape(32768, 3)[r*128 + l, c]
    grid_t = grid.reshape(M, 256, 128, 3).transpose(0, 3, 2, 1).reshape(M, 384, 256)

    cost = pl.CostEstimate(
        flops=M * 2 * (D0 + D1) * 384 * 256 * n_pad,
        transcendentals=M * (D0 + D1) * (n_pad + 1),
        bytes_accessed=M * (384 * 256 * 4 + 3 * n_pad * 4 + (D0 + D1) * 16 + 128 * 4),
    )

    kernel = functools.partial(_symm_dist_kernel, n_valid=N)
    per_sample = pl.pallas_call(
        kernel,
        out_shape=jax.ShapeDtypeStruct((M, 1, 128), f32),
        grid_spec=pltpu.PrefetchScalarGridSpec(
            num_scalar_prefetch=0,
            grid=(M,),
            in_specs=[
                pl.BlockSpec((1, D0, 4), lambda m: (m, 0, 0)),
                pl.BlockSpec((1, D1, 4), lambda m: (m, 0, 0)),
                pl.BlockSpec((1, 384, 256), lambda m: (m, 0, 0)),
                pl.BlockSpec((1, 3, n_pad), lambda m: (m, 0, 0)),
            ],
            out_specs=pl.BlockSpec((1, 1, 128), lambda m: (m, 0, 0)),
        ),
        compiler_params=pltpu.CompilerParams(
            dimension_semantics=("parallel",),
        ),
        cost_estimate=cost,
    )(planar, quat, grid_t, pts_t)

    # (planar_loss + quat_loss).mean() of a scalar == the total sum over samples.
    return jnp.sum(per_sample[:, 0, 0])


def _reference_jax(planar, quat, grid, pts):
    # Direct transcription of the PyTorch module (pure JAX) for correctness checking.
    planar = planar.astype(jnp.float32)
    quat = quat.astype(jnp.float32)
    grid = grid.astype(jnp.float32)
    pts = pts.astype(jnp.float32)
    M, N, _ = pts.shape
    D0 = planar.shape[1]
    D1 = quat.shape[1]

    # apply_planar_transform
    nvec = planar[:, :, 0:3]
    n = nvec / jnp.linalg.norm(nvec, axis=2, keepdims=True)              # (M, D0, 3)
    d = planar[:, :, 3][:, None, :]                                      # (M, 1, D0)
    coeff = (jnp.einsum('bij,bkj->bik', pts, n,
                        precision=jax.lax.Precision.HIGHEST) + d) * 2.0  # (M, N, D0)
    p_trans = pts[:, :, None, :] - coeff[..., None] * n[:, None, :, :]   # (M, N, D0, 3)

    # apply_quaternion_rotation (faithful, including the [..., 0:3] slice)
    qn = quat / jnp.linalg.norm(quat, axis=2, keepdims=True)             # (M, D1, 4)
    w = qn[:, None, :, 0]; x = qn[:, None, :, 1]
    y = qn[:, None, :, 2]; z = qn[:, None, :, 3]                         # (M, 1, D1)
    px = pts[:, :, None, 0]; py = pts[:, :, None, 1]; pz = pts[:, :, None, 2]  # (M, N, 1)
    t_r = -(px * x + py * y + pz * z)
    t_i = px * w + py * z - pz * y
    t_j = py * w + pz * x - px * z
    t_k = pz * w + px * y - py * x
    o_r = w * t_r + x * t_i + y * t_j + z * t_k
    o_i = -x * t_r + w * t_i - y * t_k + z * t_j
    o_j = -y * t_r + w * t_j - z * t_i + x * t_k
    q_trans = jnp.stack([o_r, o_i, o_j], axis=-1)                        # (M, N, D1, 3)

    def dist_sum(q):
        Mq, Nq = q.shape[0], q.shape[1]
        idx = jnp.clip(jnp.floor(q * 16.0 + 16.0), 0.0, 31.0).astype(jnp.int32)
        midx = jnp.broadcast_to(jnp.arange(Mq)[:, None], (Mq, Nq))
        g = grid[midx, idx[..., 0], idx[..., 1], idx[..., 2]]            # (M, Nq, 3)
        disp = g - q
        return jnp.sum(jnp.sqrt(jnp.sum(disp * disp, axis=2)), axis=1)   # (M,)

    planar_loss = jnp.sum(dist_sum(p_trans.reshape(M, N * D0, 3)))
    quat_loss = jnp.sum(dist_sum(q_trans.reshape(M, N * D1, 3)))
    return planar_loss + quat_loss


if __name__ == "__main__":
    key = jax.random.PRNGKey(0)
    k1, k2, k3 = jax.random.split(key, 3)
    M, N, D0, D1 = 2, 8, 3, 3

    batch_planar_features = jax.random.normal(k1, (M, D0, 4), dtype=jnp.float32)
    batch_quat_features = jax.random.normal(k2, (M, D1, 4), dtype=jnp.float32)
    batch_sample_points = jax.random.uniform(
        k3, (M, N, 3), dtype=jnp.float32, minval=-1.0, maxval=1.0)

    # "Closest surface point" grid: the cell centers plus a small per-sample offset in
    # the y/z channels (keeps the loss well conditioned w.r.t. floor() rounding on the
    # quaternion path's ~0 real component).
    centers = (jnp.arange(32, dtype=jnp.float32) - 15.5) / 16.0
    cxg, cyg, czg = jnp.meshgrid(centers, centers, centers, indexing="ij")
    cell_centers = jnp.stack([cxg, cyg, czg], axis=-1)                   # (32, 32, 32, 3)
    per_sample_shift = (jnp.arange(M, dtype=jnp.float32) * 3e-3)[:, None, None, None, None] \
        * jnp.array([0.0, 1.0, 1.0], dtype=jnp.float32)
    batch_grid_points = cell_centers[None] + per_sample_shift            # (M, 32, 32, 32, 3)

    loss = jax.jit(prsnet_symm_dist_loss)(
        batch_planar_features, batch_quat_features,
        batch_grid_points, batch_sample_points)
    loss = jax.block_until_ready(loss)

    ref = _reference_jax(batch_planar_features, batch_quat_features,
                         batch_grid_points, batch_sample_points)
    ref = jax.block_until_ready(ref)

    assert jnp.allclose(loss, ref, rtol=2e-3, atol=2e-3), (loss, ref)
    print("KERNEL_OK")
</pallas_src>

<mosaic_0001>
module attributes {stable_mosaic.version = 11 : i64} {
  func.func @_symm_dist_kernel(%arg0: i32, %arg1: memref<1x3x4xf32, #tpu.memory_space<vmem>>, %arg2: memref<1x3x4xf32, #tpu.memory_space<vmem>>, %arg3: memref<1x384x256xf32, #tpu.memory_space<vmem>>, %arg4: memref<1x3x128xf32, #tpu.memory_space<vmem>>, %arg5: memref<1x1x128xf32, #tpu.memory_space<vmem>>) attributes {dimension_semantics = [#tpu.dimension_semantics<parallel>], iteration_bounds = array<i64: 2>, scalar_prefetch = 0 : i64, scratch_operands = 0 : i64, tpu.core_type = #tpu.core_type<tc>, window_params = [{transform_indices = @transform_0, window_bounds = array<i64: 1, 3, 4>}, {transform_indices = @transform_1, window_bounds = array<i64: 1, 3, 4>}, {transform_indices = @transform_2, window_bounds = array<i64: 1, 384, 256>}, {transform_indices = @transform_3, window_bounds = array<i64: 1, 3, 128>}, {transform_indices = @transform_4, window_bounds = array<i64: 1, 1, 128>}]} {
    %c0 = arith.constant 0 : index
    %c0_0 = arith.constant 0 : index
    %c0_1 = arith.constant 0 : index
    %0 = vector.load %arg4[%c0, %c0_0, %c0_1] : memref<1x3x128xf32, #tpu.memory_space<vmem>>, vector<1x3x128xf32>
    %1 = vector.shape_cast %0 : vector<1x3x128xf32> to vector<3x128xf32>
    %2 = vector.extract_strided_slice %1 {offsets = [0, 0], sizes = [1, 128], strides = [1, 1]} : vector<3x128xf32> to vector<1x128xf32>
    %3 = vector.extract_strided_slice %1 {offsets = [1, 0], sizes = [1, 128], strides = [1, 1]} : vector<3x128xf32> to vector<1x128xf32>
    %4 = vector.extract_strided_slice %1 {offsets = [2, 0], sizes = [1, 128], strides = [1, 1]} : vector<3x128xf32> to vector<1x128xf32>
    %5 = tpu.iota {dimensions = array<i32: 1>} : vector<1x128xi32>
    %c8_i32 = arith.constant 8 : i32
    %6 = vector.broadcast %c8_i32 : i32 to vector<1x128xi32>
    %7 = arith.cmpi slt, %5, %6 : vector<1x128xi32>
    %c0_2 = arith.constant 0 : index
    %c0_3 = arith.constant 0 : index
    %c0_4 = arith.constant 0 : index
    %8 = vector.load %arg3[%c0_2, %c0_3, %c0_4] : memref<1x384x256xf32, #tpu.memory_space<vmem>>, vector<1x384x256xf32>
    %9 = vector.shape_cast %8 : vector<1x384x256xf32> to vector<384x256xf32>
    %10 = tpu.iota {dimensions = array<i32: 0>} : vector<256x128xi32>
    %11 = tpu.iota {dimensions = array<i32: 0>} : vector<128x128xi32>
    %c0_5 = arith.constant 0 : index
    %c0_6 = arith.constant 0 : index
    %c0_7 = arith.constant 0 : index
    %12 = vector.load %arg1[%c0_5, %c0_6, %c0_7] : memref<1x3x4xf32, #tpu.memory_space<vmem>>, vector<1x3x4xf32>
    %13 = vector.shape_cast %12 : vector<1x3x4xf32> to vector<3x4xf32>
    %14 = vector.extract_strided_slice %13 {offsets = [0, 0], sizes = [3, 3], strides = [1, 1]} : vector<3x4xf32> to vector<3x3xf32>
    %15 = arith.mulf %14, %14 : vector<3x3xf32>
    %cst = arith.constant dense<0.000000e+00> : vector<3xf32>
    %16 = vector.multi_reduction <add>, %15, %cst [1] : vector<3x3xf32> to vector<3xf32>
    %17 = vector.shape_cast %16 : vector<3xf32> to vector<3x1xf32>
    %18 = math.rsqrt %17 : vector<3x1xf32>
    %19 = vector.extract_strided_slice %14 {offsets = [0, 0], sizes = [3, 1], strides = [1, 1]} : vector<3x3xf32> to vector<3x1xf32>
    %20 = arith.mulf %19, %18 : vector<3x1xf32>
    %21 = vector.extract_strided_slice %14 {offsets = [0, 1], sizes = [3, 1], strides = [1, 1]} : vector<3x3xf32> to vector<3x1xf32>
    %22 = arith.mulf %21, %18 : vector<3x1xf32>
    %23 = vector.extract_strided_slice %14 {offsets = [0, 2], sizes = [3, 1], strides = [1, 1]} : vector<3x3xf32> to vector<3x1xf32>
    %24 = arith.mulf %23, %18 : vector<3x1xf32>
    %25 = vector.extract_strided_slice %13 {offsets = [0, 3], sizes = [3, 1], strides = [1, 1]} : vector<3x4xf32> to vector<3x1xf32>
    %26 = vector.broadcast %2 : vector<1x128xf32> to vector<3x128xf32>
    %27 = vector.broadcast %20 : vector<3x1xf32> to vector<3x128xf32>
    %28 = arith.mulf %26, %27 : vector<3x128xf32>
    %29 = vector.broadcast %3 : vector<1x128xf32> to vector<3x128xf32>
    %30 = vector.broadcast %22 : vector<3x1xf32> to vector<3x128xf32>
    %31 = arith.mulf %29, %30 : vector<3x128xf32>
    %32 = arith.addf %28, %31 : vector<3x128xf32>
    %33 = vector.broadcast %4 : vector<1x128xf32> to vector<3x128xf32>
    %34 = vector.broadcast %24 : vector<3x1xf32> to vector<3x128xf32>
    %35 = arith.mulf %33, %34 : vector<3x128xf32>
    %36 = arith.addf %32, %35 : vector<3x128xf32>
    %37 = vector.broadcast %25 : vector<3x1xf32> to vector<3x128xf32>
    %38 = arith.addf %36, %37 : vector<3x128xf32>
    %cst_8 = arith.constant 2.000000e+00 : f32
    %39 = vector.broadcast %cst_8 : f32 to vector<3x128xf32>
    %40 = arith.mulf %39, %38 : vector<3x128xf32>
    %41 = vector.broadcast %20 : vector<3x1xf32> to vector<3x128xf32>
    %42 = arith.mulf %40, %41 : vector<3x128xf32>
    %43 = vector.broadcast %2 : vector<1x128xf32> to vector<3x128xf32>
    %44 = arith.subf %43, %42 : vector<3x128xf32>
    %45 = vector.broadcast %22 : vector<3x1xf32> to vector<3x128xf32>
    %46 = arith.mulf %40, %45 : vector<3x128xf32>
    %47 = vector.broadcast %3 : vector<1x128xf32> to vector<3x128xf32>
    %48 = arith.subf %47, %46 : vector<3x128xf32>
    %49 = vector.broadcast %24 : vector<3x1xf32> to vector<3x128xf32>
    %50 = arith.mulf %40, %49 : vector<3x128xf32>
    %51 = vector.broadcast %4 : vector<1x128xf32> to vector<3x128xf32>
    %52 = arith.subf %51, %50 : vector<3x128xf32>
    %c0_9 = arith.constant 0 : index
    %c0_10 = arith.constant 0 : index
    %c0_11 = arith.constant 0 : index
    %53 = vector.load %arg2[%c0_9, %c0_10, %c0_11] : memref<1x3x4xf32, #tpu.memory_space<vmem>>, vector<1x3x4xf32>
    %54 = vector.shape_cast %53 : vector<1x3x4xf32> to vector<3x4xf32>
    %55 = arith.mulf %54, %54 : vector<3x4xf32>
    %cst_12 = arith.constant dense<0.000000e+00> : vector<3xf32>
    %56 = vector.multi_reduction <add>, %55, %cst_12 [1] : vector<3x4xf32> to vector<3xf32>
    %57 = vector.shape_cast %56 : vector<3xf32> to vector<3x1xf32>
    %58 = math.rsqrt %57 : vector<3x1xf32>
    %59 = vector.extract_strided_slice %54 {offsets = [0, 0], sizes = [3, 1], strides = [1, 1]} : vector<3x4xf32> to vector<3x1xf32>
    %60 = arith.mulf %59, %58 : vector<3x1xf32>
    %61 = vector.extract_strided_slice %54 {offsets = [0, 1], sizes = [3, 1], strides = [1, 1]} : vector<3x4xf32> to vector<3x1xf32>
    %62 = arith.mulf %61, %58 : vector<3x1xf32>
    %63 = vector.extract_strided_slice %54 {offsets = [0, 2], sizes = [3, 1], strides = [1, 1]} : vector<3x4xf32> to vector<3x1xf32>
    %64 = arith.mulf %63, %58 : vector<3x1xf32>
    %65 = vector.extract_strided_slice %54 {offsets = [0, 3], sizes = [3, 1], strides = [1, 1]} : vector<3x4xf32> to vector<3x1xf32>
    %66 = arith.mulf %65, %58 : vector<3x1xf32>
    %67 = vector.broadcast %2 : vector<1x128xf32> to vector<3x128xf32>
    %68 = vector.broadcast %62 : vector<3x1xf32> to vector<3x128xf32>
    %69 = arith.mulf %67, %68 : vector<3x128xf32>
    %70 = vector.broadcast %3 : vector<1x128xf32> to vector<3x128xf32>
    %71 = vector.broadcast %64 : vector<3x1xf32> to vector<3x128xf32>
    %72 = arith.mulf %70, %71 : vector<3x128xf32>
    %73 = arith.addf %69, %72 : vector<3x128xf32>
    %74 = vector.broadcast %4 : vector<1x128xf32> to vector<3x128xf32>
    %75 = vector.broadcast %66 : vector<3x1xf32> to vector<3x128xf32>
    %76 = arith.mulf %74, %75 : vector<3x128xf32>
    %77 = arith.addf %73, %76 : vector<3x128xf32>
    %cst_13 = arith.constant 0.000000e+00 : f32
    %78 = vector.broadcast %cst_13 : f32 to vector<3x128xf32>
    %79 = arith.subf %78, %77 : vector<3x128xf32>
    %80 = vector.broadcast %2 : vector<1x128xf32> to vector<3x128xf32>
    %81 = vector.broadcast %60 : vector<3x1xf32> to vector<3x128xf32>
    %82 = arith.mulf %80, %81 : vector<3x128xf32>
    %83 = vector.broadcast %3 : vector<1x128xf32> to vector<3x128xf32>
    %84 = vector.broadcast %66 : vector<3x1xf32> to vector<3x128xf32>
    %85 = arith.mulf %83, %84 : vector<3x128xf32>
    %86 = arith.addf %82, %85 : vector<3x128xf32>
    %87 = vector.broadcast %4 : vector<1x128xf32> to vector<3x128xf32>
    %88 = vector.broadcast %64 : vector<3x1xf32> to vector<3x128xf32>
    %89 = arith.mulf %87, %88 : vector<3x128xf32>
    %90 = arith.subf %86, %89 : vector<3x128xf32>
    %91 = vector.broadcast %3 : vector<1x128xf32> to vector<3x128xf32>
    %92 = vector.broadcast %60 : vector<3x1xf32> to vector<3x128xf32>
    %93 = arith.mulf %91, %92 : vector<3x128xf32>
    %94 = vector.broadcast %4 : vector<1x128xf32> to vector<3x128xf32>
    %95 = vector.broadcast %62 : vector<3x1xf32> to vector<3x128xf32>
    %96 = arith.mulf %94, %95 : vector<3x128xf32>
    %97 = arith.addf %93, %96 : vector<3x128xf32>
    %98 = vector.broadcast %2 : vector<1x128xf32> to vector<3x128xf32>
    %99 = vector.broadcast %66 : vector<3x1xf32> to vector<3x128xf32>
    %100 = arith.mulf %98, %99 : vector<3x128xf32>
    %101 = arith.subf %97, %100 : vector<3x128xf32>
    %102 = vector.broadcast %4 : vector<1x128xf32> to vector<3x128xf32>
    %103 = vector.broadcast %60 : vector<3x1xf32> to vector<3x128xf32>
    %104 = arith.mulf %102, %103 : vector<3x128xf32>
    %105 = vector.broadcast %2 : vector<1x128xf32> to vector<3x128xf32>
    %106 = vector.broadcast %64 : vector<3x1xf32> to vector<3x128xf32>
    %107 = arith.mulf %105, %106 : vector<3x128xf32>
    %108 = arith.addf %104, %107 : vector<3x128xf32>
    %109 = vector.broadcast %3 : vector<1x128xf32> to vector<3x128xf32>
    %110 = vector.broadcast %62 : vector<3x1xf32> to vector<3x128xf32>
    %111 = arith.mulf %109, %110 : vector<3x128xf32>
    %112 = arith.subf %108, %111 : vector<3x128xf32>
    %113 = vector.broadcast %60 : vector<3x1xf32> to vector<3x128xf32>
    %114 = arith.mulf %113, %79 : vector<3x128xf32>
    %115 = vector.broadcast %62 : vector<3x1xf32> to vector<3x128xf32>
    %116 = arith.mulf %115, %90 : vector<3x128xf32>
    %117 = arith.addf %114, %116 : vector<3x128xf32>
    %118 = vector.broadcast %64 : vector<3x1xf32> to vector<3x128xf32>
    %119 = arith.mulf %118, %101 : vector<3x128xf32>
    %120 = arith.addf %117, %119 : vector<3x128xf32>
    %121 = vector.broadcast %66 : vector<3x1xf32> to vector<3x128xf32>
    %122 = arith.mulf %121, %112 : vector<3x128xf32>
    %123 = arith.addf %120, %122 : vector<3x128xf32>
    %cst_14 = arith.constant 0.000000e+00 : f32
    %124 = vector.broadcast %cst_14 : f32 to vector<3x1xf32>
    %125 = arith.subf %124, %62 : vector<3x1xf32>
    %126 = vector.broadcast %125 : vector<3x1xf32> to vector<3x128xf32>
    %127 = arith.mulf %126, %79 : vector<3x128xf32>
    %128 = vector.broadcast %60 : vector<3x1xf32> to vector<3x128xf32>
    %129 = arith.mulf %128, %90 : vector<3x128xf32>
    %130 = arith.addf %127, %129 : vector<3x128xf32>
    %131 = vector.broadcast %64 : vector<3x1xf32> to vector<3x128xf32>
    %132 = arith.mulf %131, %112 : vector<3x128xf32>
    %133 = arith.subf %130, %132 : vector<3x128xf32>
    %134 = vector.broadcast %66 : vector<3x1xf32> to vector<3x128xf32>
    %135 = arith.mulf %134, %101 : vector<3x128xf32>
    %136 = arith.addf %133, %135 : vector<3x128xf32>
    %cst_15 = arith.constant 0.000000e+00 : f32
    %137 = vector.broadcast %cst_15 : f32 to vector<3x1xf32>
    %138 = arith.subf %137, %64 : vector<3x1xf32>
    %139 = vector.broadcast %138 : vector<3x1xf32> to vector<3x128xf32>
    %140 = arith.mulf %139, %79 : vector<3x128xf32>
    %141 = vector.broadcast %60 : vector<3x1xf32> to vector<3x128xf32>
    %142 = arith.mulf %141, %101 : vector<3x128xf32>
    %143 = arith.addf %140, %142 : vector<3x128xf32>
    %144 = vector.broadcast %66 : vector<3x1xf32> to vector<3x128xf32>
    %145 = arith.mulf %144, %90 : vector<3x128xf32>
    %146 = arith.subf %143, %145 : vector<3x128xf32>
    %147 = vector.broadcast %62 : vector<3x1xf32> to vector<3x128xf32>
    %148 = arith.mulf %147, %112 : vector<3x128xf32>
    %149 = arith.addf %146, %148 : vector<3x128xf32>
    %cst_16 = arith.constant 0.000000e+00 : f32
    %150 = vector.broadcast %cst_16 : f32 to vector<1x128xf32>
    %cst_17 = arith.constant 1.600000e+01 : f32
    %151 = vector.broadcast %cst_17 : f32 to vector<3x128xf32>
    %152 = arith.mulf %44, %151 : vector<3x128xf32>
    %cst_18 = arith.constant 1.600000e+01 : f32
    %153 = vector.broadcast %cst_18 : f32 to vector<3x128xf32>
    %154 = arith.addf %152, %153 : vector<3x128xf32>
    %155 = math.floor %154 : vector<3x128xf32>
    %cst_19 = arith.constant 0.000000e+00 : f32
    %cst_20 = arith.constant 3.100000e+01 : f32
    %156 = vector.broadcast %cst_19 : f32 to vector<3x128xf32>
    %157 = arith.maximumf %156, %155 : vector<3x128xf32>
    %158 = vector.broadcast %cst_20 : f32 to vector<3x128xf32>
    %159 = arith.minimumf %158, %157 : vector<3x128xf32>
    %160 = arith.fptosi %159 : vector<3x128xf32> to vector<3x128xi32>
    %cst_21 = arith.constant 1.600000e+01 : f32
    %161 = vector.broadcast %cst_21 : f32 to vector<3x128xf32>
    %162 = arith.mulf %48, %161 : vector<3x128xf32>
    %cst_22 = arith.constant 1.600000e+01 : f32
    %163 = vector.broadcast %cst_22 : f32 to vector<3x128xf32>
    %164 = arith.addf %162, %163 : vector<3x128xf32>
    %165 = math.floor %164 : vector<3x128xf32>
    %cst_23 = arith.constant 0.000000e+00 : f32
    %cst_24 = arith.constant 3.100000e+01 : f32
    %166 = vector.broadcast %cst_23 : f32 to vector<3x128xf32>
    %167 = arith.maximumf %166, %165 : vector<3x128xf32>
    %168 = vector.broadcast %cst_24 : f32 to vector<3x128xf32>
    %169 = arith.minimumf %168, %167 : vector<3x128xf32>
    %170 = arith.fptosi %169 : vector<3x128xf32> to vector<3x128xi32>
    %cst_25 = arith.constant 1.600000e+01 : f32
    %171 = vector.broadcast %cst_25 : f32 to vector<3x128xf32>
    %172 = arith.mulf %52, %171 : vector<3x128xf32>
    %cst_26 = arith.constant 1.600000e+01 : f32
    %173 = vector.broadcast %cst_26 : f32 to vector<3x128xf32>
    %174 = arith.addf %172, %173 : vector<3x128xf32>
    %175 = math.floor %174 : vector<3x128xf32>
    %cst_27 = arith.constant 0.000000e+00 : f32
    %cst_28 = arith.constant 3.100000e+01 : f32
    %176 = vector.broadcast %cst_27 : f32 to vector<3x128xf32>
    %177 = arith.maximumf %176, %175 : vector<3x128xf32>
    %178 = vector.broadcast %cst_28 : f32 to vector<3x128xf32>
    %179 = arith.minimumf %178, %177 : vector<3x128xf32>
    %180 = arith.fptosi %179 : vector<3x128xf32> to vector<3x128xi32>
    %c1024_i32 = arith.constant 1024 : i32
    %181 = vector.broadcast %c1024_i32 : i32 to vector<3x128xi32>
    %182 = arith.muli %160, %181 : vector<3x128xi32>
    %c32_i32 = arith.constant 32 : i32
    %183 = vector.broadcast %c32_i32 : i32 to vector<3x128xi32>
    %184 = arith.muli %170, %183 : vector<3x128xi32>
    %185 = arith.addi %182, %184 : vector<3x128xi32>
    %186 = arith.addi %185, %180 : vector<3x128xi32>
    %c7_i32 = arith.constant 7 : i32
    %187 = vector.broadcast %c7_i32 : i32 to vector<3x128xi32>
    %188 = arith.shrsi %186, %187 : vector<3x128xi32>
    %c127_i32 = arith.constant 127 : i32
    %189 = vector.broadcast %c127_i32 : i32 to vector<3x128xi32>
    %190 = arith.andi %186, %189 : vector<3x128xi32>
    %191 = vector.extract_strided_slice %188 {offsets = [0, 0], sizes = [1, 128], strides = [1, 1]} : vector<3x128xi32> to vector<1x128xi32>
    %192 = vector.broadcast %191 : vector<1x128xi32> to vector<256x128xi32>
    %193 = arith.cmpi eq, %10, %192 : vector<256x128xi32>
    %cst_29 = arith.constant 1.000000e+00 : f32
    %cst_30 = arith.constant 0.000000e+00 : f32
    %194 = vector.broadcast %cst_29 : f32 to vector<256x128xf32>
    %195 = vector.broadcast %cst_30 : f32 to vector<256x128xf32>
    %196 = arith.select %193, %194, %195 : vector<256x128xi1>, vector<256x128xf32>
    %197 = vector.extract_strided_slice %190 {offsets = [0, 0], sizes = [1, 128], strides = [1, 1]} : vector<3x128xi32> to vector<1x128xi32>
    %198 = vector.broadcast %197 : vector<1x128xi32> to vector<128x128xi32>
    %199 = arith.cmpi eq, %11, %198 : vector<128x128xi32>
    %cst_31 = arith.constant 1.000000e+00 : f32
    %cst_32 = arith.constant 0.000000e+00 : f32
    %200 = vector.broadcast %cst_31 : f32 to vector<128x128xf32>
    %201 = vector.broadcast %cst_32 : f32 to vector<128x128xf32>
    %202 = arith.select %199, %200, %201 : vector<128x128xi1>, vector<128x128xf32>
    %cst_33 = arith.constant dense<0.000000e+00> : vector<384x128xf32>
    %203 = tpu.matmul %9, %196, %cst_33 {dimension_numbers = #tpu.dot_dimension_numbers<[1], [0], [0], [1], [0, 0, 1, 1], [], []>} : vector<384x256xf32>, vector<256x128xf32>, vector<384x128xf32> -> vector<384x128xf32>
    %204 = vector.extract_strided_slice %44 {offsets = [0, 0], sizes = [1, 128], strides = [1, 1]} : vector<3x128xf32> to vector<1x128xf32>
    %205 = vector.extract_strided_slice %48 {offsets = [0, 0], sizes = [1, 128], strides = [1, 1]} : vector<3x128xf32> to vector<1x128xf32>
    %206 = vector.extract_strided_slice %52 {offsets = [0, 0], sizes = [1, 128], strides = [1, 1]} : vector<3x128xf32> to vector<1x128xf32>
    %cst_34 = arith.constant 0.000000e+00 : f32
    %207 = vector.broadcast %cst_34 : f32 to vector<1x128xf32>
    %208 = vector.extract_strided_slice %203 {offsets = [0, 0], sizes = [128, 128], strides = [1, 1]} : vector<384x128xf32> to vector<128x128xf32>
    %209 = arith.mulf %208, %202 : vector<128x128xf32>
    %cst_35 = arith.constant dense<0.000000e+00> : vector<128xf32>
    %210 = vector.multi_reduction <add>, %209, %cst_35 [0] : vector<128x128xf32> to vector<128xf32>
    %211 = vector.shape_cast %210 : vector<128xf32> to vector<1x128xf32>
    %212 = arith.subf %211, %204 : vector<1x128xf32>
    %213 = arith.mulf %212, %212 : vector<1x128xf32>
    %214 = arith.addf %207, %213 : vector<1x128xf32>
    %215 = vector.extract_strided_slice %203 {offsets = [128, 0], sizes = [128, 128], strides = [1, 1]} : vector<384x128xf32> to vector<128x128xf32>
    %216 = arith.mulf %215, %202 : vector<128x128xf32>
    %cst_36 = arith.constant dense<0.000000e+00> : vector<128xf32>
    %217 = vector.multi_reduction <add>, %216, %cst_36 [0] : vector<128x128xf32> to vector<128xf32>
    %218 = vector.shape_cast %217 : vector<128xf32> to vector<1x128xf32>
    %219 = arith.subf %218, %205 : vector<1x128xf32>
    %220 = arith.mulf %219, %219 : vector<1x128xf32>
    %221 = arith.addf %214, %220 : vector<1x128xf32>
    %222 = vector.extract_strided_slice %203 {offsets = [256, 0], sizes = [128, 128], strides = [1, 1]} : vector<384x128xf32> to vector<128x128xf32>
    %223 = arith.mulf %222, %202 : vector<128x128xf32>
    %cst_37 = arith.constant dense<0.000000e+00> : vector<128xf32>
    %224 = vector.multi_reduction <add>, %223, %cst_37 [0] : vector<128x128xf32> to vector<128xf32>
    %225 = vector.shape_cast %224 : vector<128xf32> to vector<1x128xf32>
    %226 = arith.subf %225, %206 : vector<1x128xf32>
    %227 = arith.mulf %226, %226 : vector<1x128xf32>
    %228 = arith.addf %221, %227 : vector<1x128xf32>
    %229 = math.sqrt %228 : vector<1x128xf32>
    %cst_38 = arith.constant 0.000000e+00 : f32
    %230 = vector.broadcast %cst_38 : f32 to vector<1x128xf32>
    %231 = arith.select %7, %229, %230 : vector<1x128xi1>, vector<1x128xf32>
    %232 = arith.addf %150, %231 : vector<1x128xf32>
    %233 = vector.extract_strided_slice %188 {offsets = [1, 0], sizes = [1, 128], strides = [1, 1]} : vector<3x128xi32> to vector<1x128xi32>
    %234 = vector.broadcast %233 : vector<1x128xi32> to vector<256x128xi32>
    %235 = arith.cmpi eq, %10, %234 : vector<256x128xi32>
    %cst_39 = arith.constant 1.000000e+00 : f32
    %cst_40 = arith.constant 0.000000e+00 : f32
    %236 = vector.broadcast %cst_39 : f32 to vector<256x128xf32>
    %237 = vector.broadcast %cst_40 : f32 to vector<256x128xf32>
    %238 = arith.select %235, %236, %237 : vector<256x128xi1>, vector<256x128xf32>
    %239 = vector.extract_strided_slice %190 {offsets = [1, 0], sizes = [1, 128], strides = [1, 1]} : vector<3x128xi32> to vector<1x128xi32>
    %240 = vector.broadcast %239 : vector<1x128xi32> to vector<128x128xi32>
    %241 = arith.cmpi eq, %11, %240 : vector<128x128xi32>
    %cst_41 = arith.constant 1.000000e+00 : f32
    %cst_42 = arith.constant 0.000000e+00 : f32
    %242 = vector.broadcast %cst_41 : f32 to vector<128x128xf32>
    %243 = vector.broadcast %cst_42 : f32 to vector<128x128xf32>
    %244 = arith.select %241, %242, %243 : vector<128x128xi1>, vector<128x128xf32>
    %cst_43 = arith.constant dense<0.000000e+00> : vector<384x128xf32>
    %245 = tpu.matmul %9, %238, %cst_43 {dimension_numbers = #tpu.dot_dimension_numbers<[1], [0], [0], [1], [0, 0, 1, 1], [], []>} : vector<384x256xf32>, vector<256x128xf32>, vector<384x128xf32> -> vector<384x128xf32>
    %246 = vector.extract_strided_slice %44 {offsets = [1, 0], sizes = [1, 128], strides = [1, 1]} : vector<3x128xf32> to vector<1x128xf32>
    %247 = vector.extract_strided_slice %48 {offsets = [1, 0], sizes = [1, 128], strides = [1, 1]} : vector<3x128xf32> to vector<1x128xf32>
    %248 = vector.extract_strided_slice %52 {offsets = [1, 0], sizes = [1, 128], strides = [1, 1]} : vector<3x128xf32> to vector<1x128xf32>
    %cst_44 = arith.constant 0.000000e+00 : f32
    %249 = vector.broadcast %cst_44 : f32 to vector<1x128xf32>
    %250 = vector.extract_strided_slice %245 {offsets = [0, 0], sizes = [128, 128], strides = [1, 1]} : vector<384x128xf32> to vector<128x128xf32>
    %251 = arith.mulf %250, %244 : vector<128x128xf32>
    %cst_45 = arith.constant dense<0.000000e+00> : vector<128xf32>
    %252 = vector.multi_reduction <add>, %251, %cst_45 [0] : vector<128x128xf32> to vector<128xf32>
    %253 = vector.shape_cast %252 : vector<128xf32> to vector<1x128xf32>
    %254 = arith.subf %253, %246 : vector<1x128xf32>
    %255 = arith.mulf %254, %254 : vector<1x128xf32>
    %256 = arith.addf %249, %255 : vector<1x128xf32>
    %257 = vector.extract_strided_slice %245 {offsets = [128, 0], sizes = [128, 128], strides = [1, 1]} : vector<384x128xf32> to vector<128x128xf32>
    %258 = arith.mulf %257, %244 : vector<128x128xf32>
    %cst_46 = arith.constant dense<0.000000e+00> : vector<128xf32>
    %259 = vector.multi_reduction <add>, %258, %cst_46 [0] : vector<128x128xf32> to vector<128xf32>
    %260 = vector.shape_cast %259 : vector<128xf32> to vector<1x128xf32>
    %261 = arith.subf %260, %247 : vector<1x128xf32>
    %262 = arith.mulf %261, %261 : vector<1x128xf32>
    %263 = arith.addf %256, %262 : vector<1x128xf32>
    %264 = vector.extract_strided_slice %245 {offsets = [256, 0], sizes = [128, 128], strides = [1, 1]} : vector<384x128xf32> to vector<128x128xf32>
    %265 = arith.mulf %264, %244 : vector<128x128xf32>
    %cst_47 = arith.constant dense<0.000000e+00> : vector<128xf32>
    %266 = vector.multi_reduction <add>, %265, %cst_47 [0] : vector<128x128xf32> to vector<128xf32>
    %267 = vector.shape_cast %266 : vector<128xf32> to vector<1x128xf32>
    %268 = arith.subf %267, %248 : vector<1x128xf32>
    %269 = arith.mulf %268, %268 : vector<1x128xf32>
    %270 = arith.addf %263, %269 : vector<1x128xf32>
    %271 = math.sqrt %270 : vector<1x128xf32>
    %cst_48 = arith.constant 0.000000e+00 : f32
    %272 = vector.broadcast %cst_48 : f32 to vector<1x128xf32>
    %273 = arith.select %7, %271, %272 : vector<1x128xi1>, vector<1x128xf32>
    %274 = arith.addf %232, %273 : vector<1x128xf32>
    %275 = vector.extract_strided_slice %188 {offsets = [2, 0], sizes = [1, 128], strides = [1, 1]} : vector<3x128xi32> to vector<1x128xi32>
    %276 = vector.broadcast %275 : vector<1x128xi32> to vector<256x128xi32>
    %277 = arith.cmpi eq, %10, %276 : vector<256x128xi32>
    %cst_49 = arith.constant 1.000000e+00 : f32
    %cst_50 = arith.constant 0.000000e+00 : f32
    %278 = vector.broadcast %cst_49 : f32 to vector<256x128xf32>
    %279 = vector.broadcast %cst_50 : f32 to vector<256x128xf32>
    %280 = arith.select %277, %278, %279 : vector<256x128xi1>, vector<256x128xf32>
    %281 = vector.extract_strided_slice %190 {offsets = [2, 0], sizes = [1, 128], strides = [1, 1]} : vector<3x128xi32> to vector<1x128xi32>
    %282 = vector.broadcast %281 : vector<1x128xi32> to vector<128x128xi32>
    %283 = arith.cmpi eq, %11, %282 : vector<128x128xi32>
    %cst_51 = arith.constant 1.000000e+00 : f32
    %cst_52 = arith.constant 0.000000e+00 : f32
    %284 = vector.broadcast %cst_51 : f32 to vector<128x128xf32>
    %285 = vector.broadcast %cst_52 : f32 to vector<128x128xf32>
    %286 = arith.select %283, %284, %285 : vector<128x128xi1>, vector<128x128xf32>
    %cst_53 = arith.constant dense<0.000000e+00> : vector<384x128xf32>
    %287 = tpu.matmul %9, %280, %cst_53 {dimension_numbers = #tpu.dot_dimension_numbers<[1], [0], [0], [1], [0, 0, 1, 1], [], []>} : vector<384x256xf32>, vector<256x128xf32>, vector<384x128xf32> -> vector<384x128xf32>
    %288 = vector.extract_strided_slice %44 {offsets = [2, 0], sizes = [1, 128], strides = [1, 1]} : vector<3x128xf32> to vector<1x128xf32>
    %289 = vector.extract_strided_slice %48 {offsets = [2, 0], sizes = [1, 128], strides = [1, 1]} : vector<3x128xf32> to vector<1x128xf32>
    %290 = vector.extract_strided_slice %52 {offsets = [2, 0], sizes = [1, 128], strides = [1, 1]} : vector<3x128xf32> to vector<1x128xf32>
    %cst_54 = arith.constant 0.000000e+00 : f32
    %291 = vector.broadcast %cst_54 : f32 to vector<1x128xf32>
    %292 = vector.extract_strided_slice %287 {offsets = [0, 0], sizes = [128, 128], strides = [1, 1]} : vector<384x128xf32> to vector<128x128xf32>
    %293 = arith.mulf %292, %286 : vector<128x128xf32>
    %cst_55 = arith.constant dense<0.000000e+00> : vector<128xf32>
    %294 = vector.multi_reduction <add>, %293, %cst_55 [0] : vector<128x128xf32> to vector<128xf32>
    %295 = vector.shape_cast %294 : vector<128xf32> to vector<1x128xf32>
    %296 = arith.subf %295, %288 : vector<1x128xf32>
    %297 = arith.mulf %296, %296 : vector<1x128xf32>
    %298 = arith.addf %291, %297 : vector<1x128xf32>
    %299 = vector.extract_strided_slice %287 {offsets = [128, 0], sizes = [128, 128], strides = [1, 1]} : vector<384x128xf32> to vector<128x128xf32>
    %300 = arith.mulf %299, %286 : vector<128x128xf32>
    %cst_56 = arith.constant dense<0.000000e+00> : vector<128xf32>
    %301 = vector.multi_reduction <add>, %300, %cst_56 [0] : vector<128x128xf32> to vector<128xf32>
    %302 = vector.shape_cast %301 : vector<128xf32> to vector<1x128xf32>
    %303 = arith.subf %302, %289 : vector<1x128xf32>
    %304 = arith.mulf %303, %303 : vector<1x128xf32>
    %305 = arith.addf %298, %304 : vector<1x128xf32>
    %306 = vector.extract_strided_slice %287 {offsets = [256, 0], sizes = [128, 128], strides = [1, 1]} : vector<384x128xf32> to vector<128x128xf32>
    %307 = arith.mulf %306, %286 : vector<128x128xf32>
    %cst_57 = arith.constant dense<0.000000e+00> : vector<128xf32>
    %308 = vector.multi_reduction <add>, %307, %cst_57 [0] : vector<128x128xf32> to vector<128xf32>
    %309 = vector.shape_cast %308 : vector<128xf32> to vector<1x128xf32>
    %310 = arith.subf %309, %290 : vector<1x128xf32>
    %311 = arith.mulf %310, %310 : vector<1x128xf32>
    %312 = arith.addf %305, %311 : vector<1x128xf32>
    %313 = math.sqrt %312 : vector<1x128xf32>
    %cst_58 = arith.constant 0.000000e+00 : f32
    %314 = vector.broadcast %cst_58 : f32 to vector<1x128xf32>
    %315 = arith.select %7, %313, %314 : vector<1x128xi1>, vector<1x128xf32>
    %316 = arith.addf %274, %315 : vector<1x128xf32>
    %cst_59 = arith.constant 1.600000e+01 : f32
    %317 = vector.broadcast %cst_59 : f32 to vector<3x128xf32>
    %318 = arith.mulf %123, %317 : vector<3x128xf32>
    %cst_60 = arith.constant 1.600000e+01 : f32
    %319 = vector.broadcast %cst_60 : f32 to vector<3x128xf32>
    %320 = arith.addf %318, %319 : vector<3x128xf32>
    %321 = math.floor %320 : vector<3x128xf32>
    %cst_61 = arith.constant 0.000000e+00 : f32
    %cst_62 = arith.constant 3.100000e+01 : f32
    %322 = vector.broadcast %cst_61 : f32 to vector<3x128xf32>
    %323 = arith.maximumf %322, %321 : vector<3x128xf32>
    %324 = vector.broadcast %cst_62 : f32 to vector<3x128xf32>
    %325 = arith.minimumf %324, %323 : vector<3x128xf32>
    %326 = arith.fptosi %325 : vector<3x128xf32> to vector<3x128xi32>
    %cst_63 = arith.constant 1.600000e+01 : f32
    %327 = vector.broadcast %cst_63 : f32 to vector<3x128xf32>
    %328 = arith.mulf %136, %327 : vector<3x128xf32>
    %cst_64 = arith.constant 1.600000e+01 : f32
    %329 = vector.broadcast %cst_64 : f32 to vector<3x128xf32>
    %330 = arith.addf %328, %329 : vector<3x128xf32>
    %331 = math.floor %330 : vector<3x128xf32>
    %cst_65 = arith.constant 0.000000e+00 : f32
    %cst_66 = arith.constant 3.100000e+01 : f32
    %332 = vector.broadcast %cst_65 : f32 to vector<3x128xf32>
    %333 = arith.maximumf %332, %331 : vector<3x128xf32>
    %334 = vector.broadcast %cst_66 : f32 to vector<3x128xf32>
    %335 = arith.minimumf %334, %333 : vector<3x128xf32>
    %336 = arith.fptosi %335 : vector<3x128xf32> to vector<3x128xi32>
    %cst_67 = arith.constant 1.600000e+01 : f32
    %337 = vector.broadcast %cst_67 : f32 to vector<3x128xf32>
    %338 = arith.mulf %149, %337 : vector<3x128xf32>
    %cst_68 = arith.constant 1.600000e+01 : f32
    %339 = vector.broadcast %cst_68 : f32 to vector<3x128xf32>
    %340 = arith.addf %338, %339 : vector<3x128xf32>
    %341 = math.floor %340 : vector<3x128xf32>
    %cst_69 = arith.constant 0.000000e+00 : f32
    %cst_70 = arith.constant 3.100000e+01 : f32
    %342 = vector.broadcast %cst_69 : f32 to vector<3x128xf32>
    %343 = arith.maximumf %342, %341 : vector<3x128xf32>
    %344 = vector.broadcast %cst_70 : f32 to vector<3x128xf32>
    %345 = arith.minimumf %344, %343 : vector<3x128xf32>
    %346 = arith.fptosi %345 : vector<3x128xf32> to vector<3x128xi32>
    %c1024_i32_71 = arith.constant 1024 : i32
    %347 = vector.broadcast %c1024_i32_71 : i32 to vector<3x128xi32>
    %348 = arith.muli %326, %347 : vector<3x128xi32>
    %c32_i32_72 = arith.constant 32 : i32
    %349 = vector.broadcast %c32_i32_72 : i32 to vector<3x128xi32>
    %350 = arith.muli %336, %349 : vector<3x128xi32>
    %351 = arith.addi %348, %350 : vector<3x128xi32>
    %352 = arith.addi %351, %346 : vector<3x128xi32>
    %c7_i32_73 = arith.constant 7 : i32
    %353 = vector.broadcast %c7_i32_73 : i32 to vector<3x128xi32>
    %354 = arith.shrsi %352, %353 : vector<3x128xi32>
    %c127_i32_74 = arith.constant 127 : i32
    %355 = vector.broadcast %c127_i32_74 : i32 to vector<3x128xi32>
    %356 = arith.andi %352, %355 : vector<3x128xi32>
    %357 = vector.extract_strided_slice %354 {offsets = [0, 0], sizes = [1, 128], strides = [1, 1]} : vector<3x128xi32> to vector<1x128xi32>
    %358 = vector.broadcast %357 : vector<1x128xi32> to vector<256x128xi32>
    %359 = arith.cmpi eq, %10, %358 : vector<256x128xi32>
    %cst_75 = arith.constant 1.000000e+00 : f32
    %cst_76 = arith.constant 0.000000e+00 : f32
    %360 = vector.broadcast %cst_75 : f32 to vector<256x128xf32>
    %361 = vector.broadcast %cst_76 : f32 to vector<256x128xf32>
    %362 = arith.select %359, %360, %361 : vector<256x128xi1>, vector<256x128xf32>
    %363 = vector.extract_strided_slice %356 {offsets = [0, 0], sizes = [1, 128], strides = [1, 1]} : vector<3x128xi32> to vector<1x128xi32>
    %364 = vector.broadcast %363 : vector<1x128xi32> to vector<128x128xi32>
    %365 = arith.cmpi eq, %11, %364 : vector<128x128xi32>
    %cst_77 = arith.constant 1.000000e+00 : f32
    %cst_78 = arith.constant 0.000000e+00 : f32
    %366 = vector.broadcast %cst_77 : f32 to vector<128x128xf32>
    %367 = vector.broadcast %cst_78 : f32 to vector<128x128xf32>
    %368 = arith.select %365, %366, %367 : vector<128x128xi1>, vector<128x128xf32>
    %cst_79 = arith.constant dense<0.000000e+00> : vector<384x128xf32>
    %369 = tpu.matmul %9, %362, %cst_79 {dimension_numbers = #tpu.dot_dimension_numbers<[1], [0], [0], [1], [0, 0, 1, 1], [], []>} : vector<384x256xf32>, vector<256x128xf32>, vector<384x128xf32> -> vector<384x128xf32>
    %370 = vector.extract_strided_slice %123 {offsets = [0, 0], sizes = [1, 128], strides = [1, 1]} : vector<3x128xf32> to vector<1x128xf32>
    %371 = vector.extract_strided_slice %136 {offsets = [0, 0], sizes = [1, 128], strides = [1, 1]} : vector<3x128xf32> to vector<1x128xf32>
    %372 = vector.extract_strided_slice %149 {offsets = [0, 0], sizes = [1, 128], strides = [1, 1]} : vector<3x128xf32> to vector<1x128xf32>
    %cst_80 = arith.constant 0.000000e+00 : f32
    %373 = vector.broadcast %cst_80 : f32 to vector<1x128xf32>
    %374 = vector.extract_strided_slice %369 {offsets = [0, 0], sizes = [128, 128], strides = [1, 1]} : vector<384x128xf32> to vector<128x128xf32>
    %375 = arith.mulf %374, %368 : vector<128x128xf32>
    %cst_81 = arith.constant dense<0.000000e+00> : vector<128xf32>
    %376 = vector.multi_reduction <add>, %375, %cst_81 [0] : vector<128x128xf32> to vector<128xf32>
    %377 = vector.shape_cast %376 : vector<128xf32> to vector<1x128xf32>
    %378 = arith.subf %377, %370 : vector<1x128xf32>
    %379 = arith.mulf %378, %378 : vector<1x128xf32>
    %380 = arith.addf %373, %379 : vector<1x128xf32>
    %381 = vector.extract_strided_slice %369 {offsets = [128, 0], sizes = [128, 128], strides = [1, 1]} : vector<384x128xf32> to vector<128x128xf32>
    %382 = arith.mulf %381, %368 : vector<128x128xf32>
    %cst_82 = arith.constant dense<0.000000e+00> : vector<128xf32>
    %383 = vector.multi_reduction <add>, %382, %cst_82 [0] : vector<128x128xf32> to vector<128xf32>
    %384 = vector.shape_cast %383 : vector<128xf32> to vector<1x128xf32>
    %385 = arith.subf %384, %371 : vector<1x128xf32>
    %386 = arith.mulf %385, %385 : vector<1x128xf32>
    %387 = arith.addf %380, %386 : vector<1x128xf32>
    %388 = vector.extract_strided_slice %369 {offsets = [256, 0], sizes = [128, 128], strides = [1, 1]} : vector<384x128xf32> to vector<128x128xf32>
    %389 = arith.mulf %388, %368 : vector<128x128xf32>
    %cst_83 = arith.constant dense<0.000000e+00> : vector<128xf32>
    %390 = vector.multi_reduction <add>, %389, %cst_83 [0] : vector<128x128xf32> to vector<128xf32>
    %391 = vector.shape_cast %390 : vector<128xf32> to vector<1x128xf32>
    %392 = arith.subf %391, %372 : vector<1x128xf32>
    %393 = arith.mulf %392, %392 : vector<1x128xf32>
    %394 = arith.addf %387, %393 : vector<1x128xf32>
    %395 = math.sqrt %394 : vector<1x128xf32>
    %cst_84 = arith.constant 0.000000e+00 : f32
    %396 = vector.broadcast %cst_84 : f32 to vector<1x128xf32>
    %397 = arith.select %7, %395, %396 : vector<1x128xi1>, vector<1x128xf32>
    %398 = arith.addf %316, %397 : vector<1x128xf32>
    %399 = vector.extract_strided_slice %354 {offsets = [1, 0], sizes = [1, 128], strides = [1, 1]} : vector<3x128xi32> to vector<1x128xi32>
    %400 = vector.broadcast %399 : vector<1x128xi32> to vector<256x128xi32>
    %401 = arith.cmpi eq, %10, %400 : vector<256x128xi32>
    %cst_85 = arith.constant 1.000000e+00 : f32
    %cst_86 = arith.constant 0.000000e+00 : f32
    %402 = vector.broadcast %cst_85 : f32 to vector<256x128xf32>
    %403 = vector.broadcast %cst_86 : f32 to vector<256x128xf32>
    %404 = arith.select %401, %402, %403 : vector<256x128xi1>, vector<256x128xf32>
    %405 = vector.extract_strided_slice %356 {offsets = [1, 0], sizes = [1, 128], strides = [1, 1]} : vector<3x128xi32> to vector<1x128xi32>
    %406 = vector.broadcast %405 : vector<1x128xi32> to vector<128x128xi32>
    %407 = arith.cmpi eq, %11, %406 : vector<128x128xi32>
    %cst_87 = arith.constant 1.000000e+00 : f32
    %cst_88 = arith.constant 0.000000e+00 : f32
    %408 = vector.broadcast %cst_87 : f32 to vector<128x128xf32>
    %409 = vector.broadcast %cst_88 : f32 to vector<128x128xf32>
    %410 = arith.select %407, %408, %409 : vector<128x128xi1>, vector<128x128xf32>
    %cst_89 = arith.constant dense<0.000000e+00> : vector<384x128xf32>
    %411 = tpu.matmul %9, %404, %cst_89 {dimension_numbers = #tpu.dot_dimension_numbers<[1], [0], [0], [1], [0, 0, 1, 1], [], []>} : vector<384x256xf32>, vector<256x128xf32>, vector<384x128xf32> -> vector<384x128xf32>
    %412 = vector.extract_strided_slice %123 {offsets = [1, 0], sizes = [1, 128], strides = [1, 1]} : vector<3x128xf32> to vector<1x128xf32>
    %413 = vector.extract_strided_slice %136 {offsets = [1, 0], sizes = [1, 128], strides = [1, 1]} : vector<3x128xf32> to vector<1x128xf32>
    %414 = vector.extract_strided_slice %149 {offsets = [1, 0], sizes = [1, 128], strides = [1, 1]} : vector<3x128xf32> to vector<1x128xf32>
    %cst_90 = arith.constant 0.000000e+00 : f32
    %415 = vector.broadcast %cst_90 : f32 to vector<1x128xf32>
    %416 = vector.extract_strided_slice %411 {offsets = [0, 0], sizes = [128, 128], strides = [1, 1]} : vector<384x128xf32> to vector<128x128xf32>
    %417 = arith.mulf %416, %410 : vector<128x128xf32>
    %cst_91 = arith.constant dense<0.000000e+00> : vector<128xf32>
    %418 = vector.multi_reduction <add>, %417, %cst_91 [0] : vector<128x128xf32> to vector<128xf32>
    %419 = vector.shape_cast %418 : vector<128xf32> to vector<1x128xf32>
    %420 = arith.subf %419, %412 : vector<1x128xf32>
    %421 = arith.mulf %420, %420 : vector<1x128xf32>
    %422 = arith.addf %415, %421 : vector<1x128xf32>
    %423 = vector.extract_strided_slice %411 {offsets = [128, 0], sizes = [128, 128], strides = [1, 1]} : vector<384x128xf32> to vector<128x128xf32>
    %424 = arith.mulf %423, %410 : vector<128x128xf32>
    %cst_92 = arith.constant dense<0.000000e+00> : vector<128xf32>
    %425 = vector.multi_reduction <add>, %424, %cst_92 [0] : vector<128x128xf32> to vector<128xf32>
    %426 = vector.shape_cast %425 : vector<128xf32> to vector<1x128xf32>
    %427 = arith.subf %426, %413 : vector<1x128xf32>
    %428 = arith.mulf %427, %427 : vector<1x128xf32>
    %429 = arith.addf %422, %428 : vector<1x128xf32>
    %430 = vector.extract_strided_slice %411 {offsets = [256, 0], sizes = [128, 128], strides = [1, 1]} : vector<384x128xf32> to vector<128x128xf32>
    %431 = arith.mulf %430, %410 : vector<128x128xf32>
    %cst_93 = arith.constant dense<0.000000e+00> : vector<128xf32>
    %432 = vector.multi_reduction <add>, %431, %cst_93 [0] : vector<128x128xf32> to vector<128xf32>
    %433 = vector.shape_cast %432 : vector<128xf32> to vector<1x128xf32>
    %434 = arith.subf %433, %414 : vector<1x128xf32>
    %435 = arith.mulf %434, %434 : vector<1x128xf32>
    %436 = arith.addf %429, %435 : vector<1x128xf32>
    %437 = math.sqrt %436 : vector<1x128xf32>
    %cst_94 = arith.constant 0.000000e+00 : f32
    %438 = vector.broadcast %cst_94 : f32 to vector<1x128xf32>
    %439 = arith.select %7, %437, %438 : vector<1x128xi1>, vector<1x128xf32>
    %440 = arith.addf %398, %439 : vector<1x128xf32>
    %441 = vector.extract_strided_slice %354 {offsets = [2, 0], sizes = [1, 128], strides = [1, 1]} : vector<3x128xi32> to vector<1x128xi32>
    %442 = vector.broadcast %441 : vector<1x128xi32> to vector<256x128xi32>
    %443 = arith.cmpi eq, %10, %442 : vector<256x128xi32>
    %cst_95 = arith.constant 1.000000e+00 : f32
    %cst_96 = arith.constant 0.000000e+00 : f32
    %444 = vector.broadcast %cst_95 : f32 to vector<256x128xf32>
    %445 = vector.broadcast %cst_96 : f32 to vector<256x128xf32>
    %446 = arith.select %443, %444, %445 : vector<256x128xi1>, vector<256x128xf32>
    %447 = vector.extract_strided_slice %356 {offsets = [2, 0], sizes = [1, 128], strides = [1, 1]} : vector<3x128xi32> to vector<1x128xi32>
    %448 = vector.broadcast %447 : vector<1x128xi32> to vector<128x128xi32>
    %449 = arith.cmpi eq, %11, %448 : vector<128x128xi32>
    %cst_97 = arith.constant 1.000000e+00 : f32
    %cst_98 = arith.constant 0.000000e+00 : f32
    %450 = vector.broadcast %cst_97 : f32 to vector<128x128xf32>
    %451 = vector.broadcast %cst_98 : f32 to vector<128x128xf32>
    %452 = arith.select %449, %450, %451 : vector<128x128xi1>, vector<128x128xf32>
    %cst_99 = arith.constant dense<0.000000e+00> : vector<384x128xf32>
    %453 = tpu.matmul %9, %446, %cst_99 {dimension_numbers = #tpu.dot_dimension_numbers<[1], [0], [0], [1], [0, 0, 1, 1], [], []>} : vector<384x256xf32>, vector<256x128xf32>, vector<384x128xf32> -> vector<384x128xf32>
    %454 = vector.extract_strided_slice %123 {offsets = [2, 0], sizes = [1, 128], strides = [1, 1]} : vector<3x128xf32> to vector<1x128xf32>
    %455 = vector.extract_strided_slice %136 {offsets = [2, 0], sizes = [1, 128], strides = [1, 1]} : vector<3x128xf32> to vector<1x128xf32>
    %456 = vector.extract_strided_slice %149 {offsets = [2, 0], sizes = [1, 128], strides = [1, 1]} : vector<3x128xf32> to vector<1x128xf32>
    %cst_100 = arith.constant 0.000000e+00 : f32
    %457 = vector.broadcast %cst_100 : f32 to vector<1x128xf32>
    %458 = vector.extract_strided_slice %453 {offsets = [0, 0], sizes = [128, 128], strides = [1, 1]} : vector<384x128xf32> to vector<128x128xf32>
    %459 = arith.mulf %458, %452 : vector<128x128xf32>
    %cst_101 = arith.constant dense<0.000000e+00> : vector<128xf32>
    %460 = vector.multi_reduction <add>, %459, %cst_101 [0] : vector<128x128xf32> to vector<128xf32>
    %461 = vector.shape_cast %460 : vector<128xf32> to vector<1x128xf32>
    %462 = arith.subf %461, %454 : vector<1x128xf32>
    %463 = arith.mulf %462, %462 : vector<1x128xf32>
    %464 = arith.addf %457, %463 : vector<1x128xf32>
    %465 = vector.extract_strided_slice %453 {offsets = [128, 0], sizes = [128, 128], strides = [1, 1]} : vector<384x128xf32> to vector<128x128xf32>
    %466 = arith.mulf %465, %452 : vector<128x128xf32>
    %cst_102 = arith.constant dense<0.000000e+00> : vector<128xf32>
    %467 = vector.multi_reduction <add>, %466, %cst_102 [0] : vector<128x128xf32> to vector<128xf32>
    %468 = vector.shape_cast %467 : vector<128xf32> to vector<1x128xf32>
    %469 = arith.subf %468, %455 : vector<1x128xf32>
    %470 = arith.mulf %469, %469 : vector<1x128xf32>
    %471 = arith.addf %464, %470 : vector<1x128xf32>
    %472 = vector.extract_strided_slice %453 {offsets = [256, 0], sizes = [128, 128], strides = [1, 1]} : vector<384x128xf32> to vector<128x128xf32>
    %473 = arith.mulf %472, %452 : vector<128x128xf32>
    %cst_103 = arith.constant dense<0.000000e+00> : vector<128xf32>
    %474 = vector.multi_reduction <add>, %473, %cst_103 [0] : vector<128x128xf32> to vector<128xf32>
    %475 = vector.shape_cast %474 : vector<128xf32> to vector<1x128xf32>
    %476 = arith.subf %475, %456 : vector<1x128xf32>
    %477 = arith.mulf %476, %476 : vector<1x128xf32>
    %478 = arith.addf %471, %477 : vector<1x128xf32>
    %479 = math.sqrt %478 : vector<1x128xf32>
    %cst_104 = arith.constant 0.000000e+00 : f32
    %480 = vector.broadcast %cst_104 : f32 to vector<1x128xf32>
    %481 = arith.select %7, %479, %480 : vector<1x128xi1>, vector<1x128xf32>
    %482 = arith.addf %440, %481 : vector<1x128xf32>
    %cst_105 = arith.constant dense<0.000000e+00> : vector<1xf32>
    %483 = vector.multi_reduction <add>, %482, %cst_105 [1] : vector<1x128xf32> to vector<1xf32>
    %484 = vector.shape_cast %483 : vector<1xf32> to vector<1x1xf32>
    %485 = vector.shape_cast %484 : vector<1x1xf32> to vector<1x1x1xf32>
    %486 = vector.broadcast %485 : vector<1x1x1xf32> to vector<1x1x128xf32>
    %c0_106 = arith.constant 0 : index
    %c0_107 = arith.constant 0 : index
    %c0_108 = arith.constant 0 : index
    %487 = vector.load %arg5[%c0_106, %c0_107, %c0_108] : memref<1x1x128xf32, #tpu.memory_space<vmem>>, vector<1x1x128xf32>
    tpu.vector_store %arg5[%c0_106, %c0_107, %c0_108], %486 {strides = array<i32>} : memref<1x1x128xf32, #tpu.memory_space<vmem>>, vector<1x1x128xf32>,
    return
  }
  func.func @transform_0(%arg0: i32) -> (i32, i32, i32) {
    %c0_i32 = arith.constant 0 : i32
    %c0_i32_0 = arith.constant 0 : i32
    %c0_i32_1 = arith.constant 0 : i32
    return %arg0, %c0_i32, %c0_i32_0 : i32, i32, i32
  }
  func.func @transform_1(%arg0: i32) -> (i32, i32, i32) {
    %c0_i32 = arith.constant 0 : i32
    %c0_i32_0 = arith.constant 0 : i32
    %c0_i32_1 = arith.constant 0 : i32
    return %arg0, %c0_i32, %c0_i32_0 : i32, i32, i32
  }
  func.func @transform_2(%arg0: i32) -> (i32, i32, i32) {
    %c0_i32 = arith.constant 0 : i32
    %c0_i32_0 = arith.constant 0 : i32
    %c0_i32_1 = arith.constant 0 : i32
    return %arg0, %c0_i32, %c0_i32_0 : i32, i32, i32
  }
  func.func @transform_3(%arg0: i32) -> (i32, i32, i32) {
    %c0_i32 = arith.constant 0 : i32
    %c0_i32_0 = arith.constant 0 : i32
    %c0_i32_1 = arith.constant 0 : i32
    return %arg0, %c0_i32, %c0_i32_0 : i32, i32, i32
  }
  func.func @transform_4(%arg0: i32) -> (i32, i32, i32) {
    %c0_i32 = arith.constant 0 : i32
    %c0_i32_0 = arith.constant 0 : i32
    %c0_i32_1 = arith.constant 0 : i32
    return %arg0, %c0_i32, %c0_i32_0 : i32, i32, i32
  }
}

</mosaic_0001>

<llo_original>
// kernel: prsnet_symm_dist_loss.1
$region0: #{prsnet_symm_dist_loss.1}
  #allocation0 [shape = 'u32[]', space=smem, size = 0x4, offset = 0x4, fixed_abs, tag = 'smem constant byte address 0x4 - core index']
  #allocation1 [shape = 'u32[72,128]{1,0:T(1,128)}', space=vmem, size = 0x9000, scoped, tag = 'internal scratch']
  %s0 = inlined_call_operand.vmem [shape: f32[2,3,4], index: 0, kind: input, shape index: {}]
  %s1 = inlined_call_operand.vmem [shape: f32[2,3,4], index: 1, kind: input, shape index: {}]
  %s2 = inlined_call_operand.vmem [shape: f32[2,384,256], index: 2, kind: input, shape index: {}]
  %s3 = inlined_call_operand.vmem [shape: f32[2,3,128], index: 3, kind: input, shape index: {}]
  %s4 = inlined_call_operand.vmem [shape: f32[2,1,128], index: 4, kind: output, shape index: {}]
  %s5 = sld [smem:[#allocation0]]
  $region49: #{prsnet_symm_dist_loss.1} parent=0
    _
  %s7 = ssub.s32 1, %s5
  %s8 = scalar_select 0, %s7, %s5
  loop: start=0, step=1, limit=4
  $region2: #{prsnet_symm_dist_loss.1} parent=0 // loop_pre_header
    _
  $region3: #{prsnet_symm_dist_loss.1} parent=0 // loop_header
    %s10 = sphi 0, %s14
    %p11 = scmp.ge.s32.totalorder %s10, 4
    %s20 = sphi 0, %s22
    %s23 = sphi 0, %s20
    %s24 = sphi 0, %s23
    %s40 = sphi 0, %s24
    %s46 = sphi 0, %s48
    %s49 = sphi 0, %s46
    %s50 = sphi 0, %s49
    %s66 = sphi 0, %s50
    %s72 = sphi 0, %s74
    %s75 = sphi 0, %s72
    %s76 = sphi 0, %s75
    %s92 = sphi 0, %s76
    %s98 = sphi 0, %s100
    %s101 = sphi 0, %s98
    %s102 = sphi 0, %s101
    %s118 = sphi 0, %s102
    %s124 = sphi 0, %s126
    %s127 = sphi 0, %s124
    %s128 = sphi 0, %s127
    %s144 = sphi 0, %s128
  $region4: #{prsnet_symm_dist_loss.1} parent=0 // loop_header_branch
    %13 = sbr.rel (%p11) target = $region8
  $region5: #{prsnet_symm_dist_loss.1} parent=0 // loop_body
    %s15 = ssub.s32 %s10, 1
    %s16 = ssub.s32 %s10, 2
    %s17 = sadd.s32 %s10, 1
    %s18 = ssub.s32 %s10, %s17
    %p19 = scmp.eq.s32.totalorder %s18, 0
    %s21 = sadd.s32 %s20, 1
    %s22 = scalar_select %p19, %s20, %s21
    %p25 = pneg %p19
    %p26 = scmp.eq.s32.totalorder %s10, 1
    %p27 = por %p25, %p26
    %p28 = scmp.ne.s32.totalorder %s20, %s23
    %p29 = scmp.eq.s32.totalorder %s10, 0
    %p30 = por %p28, %p29
    %p31 = scmp.ne.s32.totalorder %s20, %s23
    %p32 = scmp.eq.s32.totalorder %s15, 1
    %p33 = por %p31, %p32
    %p34 = scmp.ne.s32.totalorder %s23, %s24
    %p35 = scmp.eq.s32.totalorder %s15, 0
    %p36 = por %p34, %p35
    %p37 = scmp.ne.s32.totalorder %s23, %s24
    %p38 = scmp.eq.s32.totalorder %s16, 1
    %p39 = por %p37, %p38
    %p41 = scmp.ne.s32.totalorder %s24, %s40
    %p42 = scmp.eq.s32.totalorder %s16, 0
    %p43 = por %p41, %p42
    %s44 = ssub.s32 %s10, %s17
    %p45 = scmp.eq.s32.totalorder %s44, 0
    %s47 = sadd.s32 %s46, 1
    %s48 = scalar_select %p45, %s46, %s47
    %p51 = pneg %p45
    %p52 = scmp.eq.s32.totalorder %s10, 1
    %p53 = por %p51, %p52
    %p54 = scmp.ne.s32.totalorder %s46, %s49
    %p55 = scmp.eq.s32.totalorder %s10, 0
    %p56 = por %p54, %p55
    %p57 = scmp.ne.s32.totalorder %s46, %s49
    %p58 = scmp.eq.s32.totalorder %s15, 1
    %p59 = por %p57, %p58
    %p60 = scmp.ne.s32.totalorder %s49, %s50
    %p61 = scmp.eq.s32.totalorder %s15, 0
    %p62 = por %p60, %p61
    %p63 = scmp.ne.s32.totalorder %s49, %s50
    %p64 = scmp.eq.s32.totalorder %s16, 1
    %p65 = por %p63, %p64
    %p67 = scmp.ne.s32.totalorder %s50, %s66
    %p68 = scmp.eq.s32.totalorder %s16, 0
    %p69 = por %p67, %p68
    %s70 = ssub.s32 %s10, %s17
    %p71 = scmp.eq.s32.totalorder %s70, 0
    %s73 = sadd.s32 %s72, 1
    %s74 = scalar_select %p71, %s72, %s73
    %p77 = pneg %p71
    %p78 = scmp.eq.s32.totalorder %s10, 1
    %p79 = por %p77, %p78
    %p80 = scmp.ne.s32.totalorder %s72, %s75
    %p81 = scmp.eq.s32.totalorder %s10, 0
    %p82 = por %p80, %p81
    %p83 = scmp.ne.s32.totalorder %s72, %s75
    %p84 = scmp.eq.s32.totalorder %s15, 1
    %p85 = por %p83, %p84
    %p86 = scmp.ne.s32.totalorder %s75, %s76
    %p87 = scmp.eq.s32.totalorder %s15, 0
    %p88 = por %p86, %p87
    %p89 = scmp.ne.s32.totalorder %s75, %s76
    %p90 = scmp.eq.s32.totalorder %s16, 1
    %p91 = por %p89, %p90
    %p93 = scmp.ne.s32.totalorder %s76, %s92
    %p94 = scmp.eq.s32.totalorder %s16, 0
    %p95 = por %p93, %p94
    %s96 = ssub.s32 %s10, %s17
    %p97 = scmp.eq.s32.totalorder %s96, 0
    %s99 = sadd.s32 %s98, 1
    %s100 = scalar_select %p97, %s98, %s99
    %p103 = pneg %p97
    %p104 = scmp.eq.s32.totalorder %s10, 1
    %p105 = por %p103, %p104
    %p106 = scmp.ne.s32.totalorder %s98, %s101
    %p107 = scmp.eq.s32.totalorder %s10, 0
    %p108 = por %p106, %p107
    %p109 = scmp.ne.s32.totalorder %s98, %s101
    %p110 = scmp.eq.s32.totalorder %s15, 1
    %p111 = por %p109, %p110
    %p112 = scmp.ne.s32.totalorder %s101, %s102
    %p113 = scmp.eq.s32.totalorder %s15, 0
    %p114 = por %p112, %p113
    %p115 = scmp.ne.s32.totalorder %s101, %s102
    %p116 = scmp.eq.s32.totalorder %s16, 1
    %p117 = por %p115, %p116
    %p119 = scmp.ne.s32.totalorder %s102, %s118
    %p120 = scmp.eq.s32.totalorder %s16, 0
    %p121 = por %p119, %p120
    %s122 = ssub.s32 %s10, %s17
    %p123 = scmp.eq.s32.totalorder %s122, 0
    %s125 = sadd.s32 %s124, 1
    %s126 = scalar_select %p123, %s124, %s125
    %p129 = pneg %p123
    %p130 = scmp.eq.s32.totalorder %s10, 1
    %p131 = por %p129, %p130
    %p132 = scmp.ne.s32.totalorder %s124, %s127
    %p133 = scmp.eq.s32.totalorder %s10, 0
    %p134 = por %p132, %p133
    %p135 = scmp.ne.s32.totalorder %s124, %s127
    %p136 = scmp.eq.s32.totalorder %s15, 1
    %p137 = por %p135, %p136
    %p138 = scmp.ne.s32.totalorder %s127, %s128
    %p139 = scmp.eq.s32.totalorder %s15, 0
    %p140 = por %p138, %p139
    %p141 = scmp.ne.s32.totalorder %s127, %s128
    %p142 = scmp.eq.s32.totalorder %s16, 1
    %p143 = por %p141, %p142
    %p145 = scmp.ne.s32.totalorder %s128, %s144
    %p146 = scmp.eq.s32.totalorder %s16, 0
    %p147 = por %p145, %p146
    %p148 = scmp.le.s32.totalorder 1, %s10
    %p149 = scmp.lt.s32.totalorder %s10, 3
    %p150 = pnand %p148, %p149
    %p151 = pneg %p150
    // Predicated region
    $region9: #{prsnet_symm_dist_loss.1} parent=5 // pred_check
      _
    $region10: #{prsnet_symm_dist_loss.1} parent=5 // pred_check_branch
      %153 = sbr.rel (%p150) target = $region12
    $region11: #{prsnet_symm_dist_loss.1} parent=5 // pred_region
      %s154 = ssub.s32 %s10, 1
    $region12: #{prsnet_symm_dist_loss.1} parent=5 // pred_fallthru
      _
    %p155 = scmp.lt.s32.totalorder %s10, 2
    // Predicated region
    $region13: #{prsnet_symm_dist_loss.1} parent=5 // pred_check
      %p156 = pneg %p155
    $region14: #{prsnet_symm_dist_loss.1} parent=5 // pred_check_branch
      %158 = sbr.rel (%p156) target = $region16
    $region15: #{prsnet_symm_dist_loss.1} parent=5 // pred_region
      // Predicated region
      $region17: #{prsnet_symm_dist_loss.1} parent=15 // pred_check
        %p159 = pneg %p30
      $region18: #{prsnet_symm_dist_loss.1} parent=15 // pred_check_branch
        %161 = sbr.rel (%p159) target = $region20
      $region19: #{prsnet_symm_dist_loss.1} parent=15 // pred_region
        %p162 = scmp.lt.s32.totalorder %s10, 1
        %s163 = scalar_select %p162, %s10, 1
        %s164 = smul.addr %s163, 4
        %s165 = scalar_lea.vmem %s0, %s164
      $region20: #{prsnet_symm_dist_loss.1} parent=15 // pred_fallthru
        _
      // Predicated region
      $region21: #{prsnet_symm_dist_loss.1} parent=15 // pred_check
        %p166 = pneg %p56
      $region22: #{prsnet_symm_dist_loss.1} parent=15 // pred_check_branch
        %168 = sbr.rel (%p166) target = $region24
      $region23: #{prsnet_symm_dist_loss.1} parent=15 // pred_region
        %p169 = scmp.lt.s32.totalorder %s10, 1
        %s170 = scalar_select %p169, %s10, 1
        %s171 = smul.addr %s170, 4
        %s172 = scalar_lea.vmem %s1, %s171
      $region24: #{prsnet_symm_dist_loss.1} parent=15 // pred_fallthru
        _
      // Predicated region
      $region25: #{prsnet_symm_dist_loss.1} parent=15 // pred_check
        %p173 = pneg %p82
      $region26: #{prsnet_symm_dist_loss.1} parent=15 // pred_check_branch
        %175 = sbr.rel (%p173) target = $region28
      $region27: #{prsnet_symm_dist_loss.1} parent=15 // pred_region
        %p176 = scmp.lt.s32.totalorder %s10, 1
        %s177 = scalar_select %p176, %s10, 1
        %s178 = smul.addr %s177, 96
        %s179 = smul.addr %s178, 8
        %s180 = scalar_lea.vmem %s2, %s179
      $region28: #{prsnet_symm_dist_loss.1} parent=15 // pred_fallthru
        _
      // Predicated region
      $region29: #{prsnet_symm_dist_loss.1} parent=15 // pred_check
        %p181 = pneg %p108
      $region30: #{prsnet_symm_dist_loss.1} parent=15 // pred_check_branch
        %183 = sbr.rel (%p181) target = $region32
      $region31: #{prsnet_symm_dist_loss.1} parent=15 // pred_region
        %p184 = scmp.lt.s32.totalorder %s10, 1
        %s185 = scalar_select %p184, %s10, 1
        %s186 = smul.addr %s185, 4
        %s187 = scalar_lea.vmem %s3, %s186
      $region32: #{prsnet_symm_dist_loss.1} parent=15 // pred_fallthru
        _
    $region16: #{prsnet_symm_dist_loss.1} parent=5 // pred_fallthru
      _
    %p188 = scmp.le.s32.totalorder 1, %s10
    %p189 = scmp.lt.s32.totalorder %s10, 3
    %p190 = pnand %p188, %p189
    %p191 = pneg %p190
    // Predicated region
    $region33: #{prsnet_symm_dist_loss.1} parent=5 // pred_check
      _
    $region34: #{prsnet_symm_dist_loss.1} parent=5 // pred_check_branch
      %193 = sbr.rel (%p190) target = $region36
    $region35: #{prsnet_symm_dist_loss.1} parent=5 // pred_region
      %s194 = ssub.s32 %s10, 1
      %p195 = scmp.lt.s32.totalorder %s15, 1
      %s196 = scalar_select %p195, %s15, 1
      %s197 = smul.addr %s196, 4
      %s198 = scalar_lea.vmem %s0, %s197
      %p199 = pneg %p36
      %p200 = pneg %p33
      %p201 = scmp.lt.s32.totalorder %s15, 1
      %s202 = scalar_select %p201, %s15, 1
      %s203 = smul.addr %s202, 4
      %s204 = scalar_lea.vmem %s1, %s203
      %p205 = pneg %p62
      %p206 = pneg %p59
      %p207 = scmp.lt.s32.totalorder %s15, 1
      %s208 = scalar_select %p207, %s15, 1
      %s209 = smul.addr %s208, 96
      %s210 = smul.addr %s209, 8
      %s211 = scalar_lea.vmem %s2, %s210
      %p212 = pneg %p88
      %p213 = pneg %p85
      %p214 = scmp.lt.s32.totalorder %s15, 1
      %s215 = scalar_select %p214, %s15, 1
      %s216 = smul.addr %s215, 4
      %s217 = scalar_lea.vmem %s3, %s216
      %p218 = pneg %p114
      %p219 = pneg %p111
      %p220 = pneg %p140
      %p221 = pneg %p137
      %p222 = scmp.lt.s32.totalorder %s15, 1
      %s223 = scalar_select %p222, %s15, 1
      %s224 = scalar_lea.vmem %s4, %s223
      %p225 = scmp.lt.s32.totalorder %s15, 1
      %s226 = scalar_select %p225, %s15, 1
      %s227 = smul.addr %s226, 4
      %s228 = scalar_lea.vmem %s0, %s227
      %p229 = scmp.lt.s32.totalorder %s15, 1
      %s230 = scalar_select %p229, %s15, 1
      %s231 = smul.addr %s230, 4
      %s232 = scalar_lea.vmem %s1, %s231
      %p233 = scmp.lt.s32.totalorder %s15, 1
      %s234 = scalar_select %p233, %s15, 1
      %s235 = smul.addr %s234, 96
      %s236 = smul.addr %s235, 8
      %s237 = scalar_lea.vmem %s2, %s236
      %p238 = scmp.lt.s32.totalorder %s15, 1
      %s239 = scalar_select %p238, %s15, 1
      %s240 = smul.addr %s239, 4
      %s241 = scalar_lea.vmem %s3, %s240
      %p242 = scmp.lt.s32.totalorder %s15, 1
      %s243 = scalar_select %p242, %s15, 1
      %s244 = scalar_lea.vmem %s4, %s243
      %v245 = vld [vmem:[%s241] sm:$0x7]
      %v246 = vlaneseq
      %v247 = vand.u32 %v246, 127
      %vm248 = vcmp.lt.s32.totalorder %v247, 8
      %v249 = vld [vmem:[%s237] sm:$0xff]
      %v250 = vld [vmem:[%s237 + $0x8] sm:$0xff]
      %v251 = vld [vmem:[%s237 + $0x10] sm:$0xff]
      %v252 = vld [vmem:[%s237 + $0x18] sm:$0xff]
      %v253 = vld [vmem:[%s237 + $0x20] sm:$0xff]
      %v254 = vld [vmem:[%s237 + $0x28] sm:$0xff]
      %v255 = vld [vmem:[%s237 + $0x30] sm:$0xff]
      %v256 = vld [vmem:[%s237 + $0x38] sm:$0xff]
      %v257 = vld [vmem:[%s237 + $0x40] sm:$0xff]
      %v258 = vld [vmem:[%s237 + $0x48] sm:$0xff]
      %v259 = vld [vmem:[%s237 + $0x50] sm:$0xff]
      %v260 = vld [vmem:[%s237 + $0x58] sm:$0xff]
      %v261 = vld [vmem:[%s237 + $0x60] sm:$0xff]
      %v262 = vld [vmem:[%s237 + $0x68] sm:$0xff]
      %v263 = vld [vmem:[%s237 + $0x70] sm:$0xff]
      %v264 = vld [vmem:[%s237 + $0x78] sm:$0xff]
      %v265 = vld [vmem:[%s237 + $0x80] sm:$0xff]
      %v266 = vld [vmem:[%s237 + $0x88] sm:$0xff]
      %v267 = vld [vmem:[%s237 + $0x90] sm:$0xff]
      %v268 = vld [vmem:[%s237 + $0x98] sm:$0xff]
      %v269 = vld [vmem:[%s237 + $0xa0] sm:$0xff]
      %v270 = vld [vmem:[%s237 + $0xa8] sm:$0xff]
      %v271 = vld [vmem:[%s237 + $0xb0] sm:$0xff]
      %v272 = vld [vmem:[%s237 + $0xb8] sm:$0xff]
      %v273 = vld [vmem:[%s237 + $0xc0] sm:$0xff]
      %v274 = vld [vmem:[%s237 + $0xc8] sm:$0xff]
      %v275 = vld [vmem:[%s237 + $0xd0] sm:$0xff]
      %v276 = vld [vmem:[%s237 + $0xd8] sm:$0xff]
      %v277 = vld [vmem:[%s237 + $0xe0] sm:$0xff]
      %v278 = vld [vmem:[%s237 + $0xe8] sm:$0xff]
      %v279 = vld [vmem:[%s237 + $0xf0] sm:$0xff]
      %v280 = vld [vmem:[%s237 + $0xf8] sm:$0xff]
      %v281 = vld [vmem:[%s237 + $0x100] sm:$0xff]
      %v282 = vld [vmem:[%s237 + $0x108] sm:$0xff]
      %v283 = vld [vmem:[%s237 + $0x110] sm:$0xff]
      %v284 = vld [vmem:[%s237 + $0x118] sm:$0xff]
      %v285 = vld [vmem:[%s237 + $0x120] sm:$0xff]
      %v286 = vld [vmem:[%s237 + $0x128] sm:$0xff]
      %v287 = vld [vmem:[%s237 + $0x130] sm:$0xff]
      %v288 = vld [vmem:[%s237 + $0x138] sm:$0xff]
      %v289 = vld [vmem:[%s237 + $0x140] sm:$0xff]
      %v290 = vld [vmem:[%s237 + $0x148] sm:$0xff]
      %v291 = vld [vmem:[%s237 + $0x150] sm:$0xff]
      %v292 = vld [vmem:[%s237 + $0x158] sm:$0xff]
      %v293 = vld [vmem:[%s237 + $0x160] sm:$0xff]
      %v294 = vld [vmem:[%s237 + $0x168] sm:$0xff]
      %v295 = vld [vmem:[%s237 + $0x170] sm:$0xff]
      %v296 = vld [vmem:[%s237 + $0x178] sm:$0xff]
      %v297 = vld [vmem:[%s237 + $0x180] sm:$0xff]
      %v298 = vld [vmem:[%s237 + $0x188] sm:$0xff]
      %v299 = vld [vmem:[%s237 + $0x190] sm:$0xff]
      %v300 = vld [vmem:[%s237 + $0x198] sm:$0xff]
      %v301 = vld [vmem:[%s237 + $0x1a0] sm:$0xff]
      %v302 = vld [vmem:[%s237 + $0x1a8] sm:$0xff]
      %v303 = vld [vmem:[%s237 + $0x1b0] sm:$0xff]
      %v304 = vld [vmem:[%s237 + $0x1b8] sm:$0xff]
      %v305 = vld [vmem:[%s237 + $0x1c0] sm:$0xff]
      %v306 = vld [vmem:[%s237 + $0x1c8] sm:$0xff]
      %v307 = vld [vmem:[%s237 + $0x1d0] sm:$0xff]
      %v308 = vld [vmem:[%s237 + $0x1d8] sm:$0xff]
      %v309 = vld [vmem:[%s237 + $0x1e0] sm:$0xff]
      %v310 = vld [vmem:[%s237 + $0x1e8] sm:$0xff]
      %v311 = vld [vmem:[%s237 + $0x1f0] sm:$0xff]
      %v312 = vld [vmem:[%s237 + $0x1f8] sm:$0xff]
      %v313 = vld [vmem:[%s237 + $0x200] sm:$0xff]
      %v314 = vld [vmem:[%s237 + $0x208] sm:$0xff]
      %v315 = vld [vmem:[%s237 + $0x210] sm:$0xff]
      %v316 = vld [vmem:[%s237 + $0x218] sm:$0xff]
      %v317 = vld [vmem:[%s237 + $0x220] sm:$0xff]
      %v318 = vld [vmem:[%s237 + $0x228] sm:$0xff]
      %v319 = vld [vmem:[%s237 + $0x230] sm:$0xff]
      %v320 = vld [vmem:[%s237 + $0x238] sm:$0xff]
      %v321 = vld [vmem:[%s237 + $0x240] sm:$0xff]
      %v322 = vld [vmem:[%s237 + $0x248] sm:$0xff]
      %v323 = vld [vmem:[%s237 + $0x250] sm:$0xff]
      %v324 = vld [vmem:[%s237 + $0x258] sm:$0xff]
      %v325 = vld [vmem:[%s237 + $0x260] sm:$0xff]
      %v326 = vld [vmem:[%s237 + $0x268] sm:$0xff]
      %v327 = vld [vmem:[%s237 + $0x270] sm:$0xff]
      %v328 = vld [vmem:[%s237 + $0x278] sm:$0xff]
      %v329 = vld [vmem:[%s237 + $0x280] sm:$0xff]
      %v330 = vld [vmem:[%s237 + $0x288] sm:$0xff]
      %v331 = vld [vmem:[%s237 + $0x290] sm:$0xff]
      %v332 = vld [vmem:[%s237 + $0x298] sm:$0xff]
      %v333 = vld [vmem:[%s237 + $0x2a0] sm:$0xff]
      %v334 = vld [vmem:[%s237 + $0x2a8] sm:$0xff]
      %v335 = vld [vmem:[%s237 + $0x2b0] sm:$0xff]
      %v336 = vld [vmem:[%s237 + $0x2b8] sm:$0xff]
      %v337 = vld [vmem:[%s237 + $0x2c0] sm:$0xff]
      %v338 = vld [vmem:[%s237 + $0x2c8] sm:$0xff]
      %v339 = vld [vmem:[%s237 + $0x2d0] sm:$0xff]
      %v340 = vld [vmem:[%s237 + $0x2d8] sm:$0xff]
      %v341 = vld [vmem:[%s237 + $0x2e0] sm:$0xff]
      %v342 = vld [vmem:[%s237 + $0x2e8] sm:$0xff]
      %v343 = vld [vmem:[%s237 + $0x2f0] sm:$0xff]
      %v344 = vld [vmem:[%s237 + $0x2f8] sm:$0xff]
      %v345 = vlaneseq
      %v346 = vshrl.u32 %v345, 7
      %v347 = vadd.s32 %v346, 8
      %v348 = vadd.s32 %v346, 16
      %v349 = vadd.s32 %v346, 24
      %v350 = vadd.s32 %v346, 32
      %v351 = vadd.s32 %v346, 40
      %v352 = vadd.s32 %v346, 48
      %v353 = vadd.s32 %v346, 56
      %v354 = vadd.s32 %v346, 64
      %v355 = vadd.s32 %v346, 72
      %v356 = vadd.s32 %v346, 80
      %v357 = vadd.s32 %v346, 88
      %v358 = vadd.s32 %v346, 96
      %v359 = vadd.s32 %v346, 104
      %v360 = vadd.s32 %v346, 112
      %v361 = vadd.s32 %v346, 120
      %v362 = vadd.s32 %v346, 128
      %v363 = vadd.s32 %v346, 136
      %v364 = vadd.s32 %v346, 144
      %v365 = vadd.s32 %v346, 152
      %v366 = vadd.s32 %v346, 160
      %v367 = vadd.s32 %v346, 168
      %v368 = vadd.s32 %v346, 176
      %v369 = vadd.s32 %v346, 184
      %v370 = vadd.s32 %v346, 192
      %v371 = vadd.s32 %v346, 200
      %v372 = vadd.s32 %v346, 208
      %v373 = vadd.s32 %v346, 216
      %v374 = vadd.s32 %v346, 224
      %v375 = vadd.s32 %v346, 232
      %v376 = vadd.s32 %v346, 240
      %v377 = vadd.s32 %v346, 248
      %v378 = vld [vmem:[%s228] sm:$0x7]
      %v379 = vmul.f32 %v378, %v378
      %vm380 = vcmask 18432
      %v381 = vsel %vm380, %v379, 0.0
      %382 = vadd.xlane.f32.xlu0 %v381
      %v383 = vpop.xlane.xlu0 %382
      %v384 = vrsqrt.pop %v383
      %v385 = vmul.f32 %v384, %v383
      %v386 = vmul.f32 %v385, %v384
      %v387 = vmul.f32 0.5, %v386
      %v388 = vsub.f32 1.5, %v387
      %v389 = vmul.f32 %v384, %v388
      %vm390 = vweird.f32 %v383
      %vm391 = vweird.f32 %v384
      %vm392 = vmor %vm390, %vm391
      %v393 = vsel %vm392, %v384, %v389
      %v394 = vmul.f32 %v378, %v393
      %v395 = vperm.slane %v245, 0
      %397 = vset.pattern.permute.xlu0 0
      %398 = vperm.xlu0 %397, %v394
      %v399 = vpop.permute.xlu0 %398
      %v401 = vmul.f32 %v395, %v399
      %v402 = vperm.slane %v245, 1
      %403 = vset.pattern.permute.xlu0 1
      %404 = vperm.xlu0 %403, %v394
      %v405 = vpop.permute.xlu0 %404
      %v407 = vmul.f32 %v402, %v405
      %v408 = vadd.f32 %v401, %v407
      %v409 = vperm.slane %v245, 2
      %410 = vset.pattern.permute.xlu0 2
      %411 = vperm.xlu0 %410, %v394
      %v412 = vpop.permute.xlu0 %411
      %v414 = vmul.f32 %v409, %v412
      %v415 = vadd.f32 %v408, %v414
      %417 = vset.pattern.permute.xlu0 3
      %418 = vperm.xlu0 %417, %v378
      %v419 = vpop.permute.xlu0 %418
      %v421 = vadd.f32 %v415, %v419
      %v422 = vmul.f32 %v421, 2.0
      %v423 = vmul.f32 %v422, %v399
      %v424 = vsub.f32 %v395, %v423
      %v425 = vmul.f32 %v422, %v405
      %v426 = vsub.f32 %v402, %v425
      %v427 = vmul.f32 %v422, %v412
      %v428 = vsub.f32 %v409, %v427
      %v429 = vld [vmem:[%s232] sm:$0x7]
      %v430 = vmul.f32 %v429, %v429
      %vm431 = vcmask 26624
      %v432 = vsel %vm431, %v430, 0.0
      %433 = vadd.xlane.f32.xlu0 %v432
      %v434 = vpop.xlane.xlu0 %433
      %v435 = vrsqrt.pop %v434
      %v436 = vmul.f32 %v435, %v434
      %v437 = vmul.f32 %v436, %v435
      %v438 = vmul.f32 0.5, %v437
      %v439 = vsub.f32 1.5, %v438
      %v440 = vmul.f32 %v435, %v439
      %vm441 = vweird.f32 %v434
      %vm442 = vweird.f32 %v435
      %vm443 = vmor %vm441, %vm442
      %v444 = vsel %vm443, %v435, %v440
      %v445 = vmul.f32 %v429, %v444
      %447 = vset.pattern.permute.xlu0 1
      %448 = vperm.xlu0 %447, %v445
      %v449 = vpop.permute.xlu0 %448
      %v451 = vmul.f32 %v395, %v449
      %452 = vset.pattern.permute.xlu0 2
      %453 = vperm.xlu0 %452, %v445
      %v454 = vpop.permute.xlu0 %453
      %v456 = vmul.f32 %v402, %v454
      %v457 = vadd.f32 %v451, %v456
      %458 = vset.pattern.permute.xlu0 3
      %459 = vperm.xlu0 %458, %v445
      %v460 = vpop.permute.xlu0 %459
      %v462 = vmul.f32 %v409, %v460
      %v463 = vadd.f32 %v457, %v462
      %v464 = vsub.f32 0.0, %v463
      %465 = vset.pattern.permute.xlu0 0
      %466 = vperm.xlu0 %465, %v445
      %v467 = vpop.permute.xlu0 %466
      %v469 = vmul.f32 %v395, %v467
      %v470 = vmul.f32 %v402, %v460
      %v471 = vadd.f32 %v469, %v470
      %v472 = vmul.f32 %v409, %v454
      %v473 = vsub.f32 %v471, %v472
      %v474 = vmul.f32 %v402, %v467
      %v475 = vmul.f32 %v409, %v449
      %v476 = vadd.f32 %v474, %v475
      %v477 = vmul.f32 %v395, %v460
      %v478 = vsub.f32 %v476, %v477
      %v479 = vmul.f32 %v409, %v467
      %v480 = vmul.f32 %v395, %v454
      %v481 = vadd.f32 %v479, %v480
      %v482 = vmul.f32 %v402, %v449
      %v483 = vsub.f32 %v481, %v482
      %v484 = vmul.f32 %v467, %v464
      %v485 = vmul.f32 %v449, %v473
      %v486 = vadd.f32 %v484, %v485
      %v487 = vmul.f32 %v454, %v478
      %v488 = vadd.f32 %v486, %v487
      %v489 = vmul.f32 %v460, %v483
      %v490 = vadd.f32 %v488, %v489
      %v491 = vsub.f32 0.0, %v445
      %493 = vset.pattern.permute.xlu0 1
      %494 = vperm.xlu0 %493, %v491
      %v495 = vpop.permute.xlu0 %494
      %v497 = vmul.f32 %v495, %v464
      %v498 = vmul.f32 %v467, %v473
      %v499 = vadd.f32 %v497, %v498
      %v500 = vmul.f32 %v454, %v483
      %v501 = vsub.f32 %v499, %v500
      %v502 = vmul.f32 %v460, %v478
      %v503 = vadd.f32 %v501, %v502
      %504 = vset.pattern.permute.xlu0 2
      %505 = vperm.xlu0 %504, %v491
      %v506 = vpop.permute.xlu0 %505
      %v508 = vmul.f32 %v506, %v464
      %v509 = vmul.f32 %v467, %v478
      %v510 = vadd.f32 %v508, %v509
      %v511 = vmul.f32 %v460, %v473
      %v512 = vsub.f32 %v510, %v511
      %v513 = vmul.f32 %v449, %v483
      %v514 = vadd.f32 %v512, %v513
      %v515 = vmul.f32 %v424, 16.0
      %v516 = vadd.f32 %v515, 16.0
      %v517 = vfloor.f32 %v516
      %v518 = vmax.f32 %v517, 0.0
      %v519 = vmin.f32 %v518, 31.0
      %v520 = vcvt.f32.s32.to.zero.pseudo %v519
      %v521 = vmul.f32 %v426, 16.0
      %v522 = vadd.f32 %v521, 16.0
      %v523 = vfloor.f32 %v522
      %v524 = vmax.f32 %v523, 0.0
      %v525 = vmin.f32 %v524, 31.0
      %v526 = vcvt.f32.s32.to.zero.pseudo %v525
      %v527 = vmul.f32 %v428, 16.0
      %v528 = vadd.f32 %v527, 16.0
      %v529 = vfloor.f32 %v528
      %v530 = vmax.f32 %v529, 0.0
      %v531 = vmin.f32 %v530, 31.0
      %v532 = vcvt.f32.s32.to.zero.pseudo %v531
      %v533 = vmul.u32 %v520, 1024
      %v534 = vmul.u32 %v526, 32
      %v535 = vadd.s32 %v533, %v534
      %v536 = vadd.s32 %v535, %v532
      %v537 = vshra.s32 %v536, 7
      %v538 = vand.u32 %v536, 127
      %v539 = vperm.slane %v537, 0
      %vm540 = vcmp.eq.s32.totalorder %v346, %v539
      %vm541 = vcmp.eq.s32.totalorder %v347, %v539
      %vm542 = vcmp.eq.s32.totalorder %v348, %v539
      %vm543 = vcmp.eq.s32.totalorder %v349, %v539
      %vm544 = vcmp.eq.s32.totalorder %v350, %v539
      %vm545 = vcmp.eq.s32.totalorder %v351, %v539
      %vm546 = vcmp.eq.s32.totalorder %v352, %v539
      %vm547 = vcmp.eq.s32.totalorder %v353, %v539
      %vm548 = vcmp.eq.s32.totalorder %v354, %v539
      %vm549 = vcmp.eq.s32.totalorder %v355, %v539
      %vm550 = vcmp.eq.s32.totalorder %v356, %v539
      %vm551 = vcmp.eq.s32.totalorder %v357, %v539
      %vm552 = vcmp.eq.s32.totalorder %v358, %v539
      %vm553 = vcmp.eq.s32.totalorder %v359, %v539
      %vm554 = vcmp.eq.s32.totalorder %v360, %v539
      %vm555 = vcmp.eq.s32.totalorder %v361, %v539
      %vm556 = vcmp.eq.s32.totalorder %v362, %v539
      %vm557 = vcmp.eq.s32.totalorder %v363, %v539
      %vm558 = vcmp.eq.s32.totalorder %v364, %v539
      %vm559 = vcmp.eq.s32.totalorder %v365, %v539
      %vm560 = vcmp.eq.s32.totalorder %v366, %v539
      %vm561 = vcmp.eq.s32.totalorder %v367, %v539
      %vm562 = vcmp.eq.s32.totalorder %v368, %v539
      %vm563 = vcmp.eq.s32.totalorder %v369, %v539
      %vm564 = vcmp.eq.s32.totalorder %v370, %v539
      %vm565 = vcmp.eq.s32.totalorder %v371, %v539
      %vm566 = vcmp.eq.s32.totalorder %v372, %v539
      %vm567 = vcmp.eq.s32.totalorder %v373, %v539
      %vm568 = vcmp.eq.s32.totalorder %v374, %v539
      %vm569 = vcmp.eq.s32.totalorder %v375, %v539
      %vm570 = vcmp.eq.s32.totalorder %v376, %v539
      %vm571 = vcmp.eq.s32.totalorder %v377, %v539
      %v572 = vsel %vm540, 1.0, 0.0
      %v573 = vsel %vm541, 1.0, 0.0
      %v574 = vsel %vm542, 1.0, 0.0
      %v575 = vsel %vm543, 1.0, 0.0
      %v576 = vsel %vm544, 1.0, 0.0
      %v577 = vsel %vm545, 1.0, 0.0
      %v578 = vsel %vm546, 1.0, 0.0
      %v579 = vsel %vm547, 1.0, 0.0
      %v580 = vsel %vm548, 1.0, 0.0
      %v581 = vsel %vm549, 1.0, 0.0
      %v582 = vsel %vm550, 1.0, 0.0
      %v583 = vsel %vm551, 1.0, 0.0
      %v584 = vsel %vm552, 1.0, 0.0
      %v585 = vsel %vm553, 1.0, 0.0
      %v586 = vsel %vm554, 1.0, 0.0
      %v587 = vsel %vm555, 1.0, 0.0
      %v588 = vsel %vm556, 1.0, 0.0
      %v589 = vsel %vm557, 1.0, 0.0
      %v590 = vsel %vm558, 1.0, 0.0
      %v591 = vsel %vm559, 1.0, 0.0
      %v592 = vsel %vm560, 1.0, 0.0
      %v593 = vsel %vm561, 1.0, 0.0
      %v594 = vsel %vm562, 1.0, 0.0
      %v595 = vsel %vm563, 1.0, 0.0
      %v596 = vsel %vm564, 1.0, 0.0
      %v597 = vsel %vm565, 1.0, 0.0
      %v598 = vsel %vm566, 1.0, 0.0
      %v599 = vsel %vm567, 1.0, 0.0
      %v600 = vsel %vm568, 1.0, 0.0
      %v601 = vsel %vm569, 1.0, 0.0
      %v602 = vsel %vm570, 1.0, 0.0
      %v603 = vsel %vm571, 1.0, 0.0
      %v604 = vperm.slane %v538, 0
      %vm605 = vcmp.eq.s32.totalorder %v346, %v604
      %vm606 = vcmp.eq.s32.totalorder %v347, %v604
      %vm607 = vcmp.eq.s32.totalorder %v348, %v604
      %vm608 = vcmp.eq.s32.totalorder %v349, %v604
      %vm609 = vcmp.eq.s32.totalorder %v350, %v604
      %vm610 = vcmp.eq.s32.totalorder %v351, %v604
      %vm611 = vcmp.eq.s32.totalorder %v352, %v604
      %vm612 = vcmp.eq.s32.totalorder %v353, %v604
      %vm613 = vcmp.eq.s32.totalorder %v354, %v604
      %vm614 = vcmp.eq.s32.totalorder %v355, %v604
      %vm615 = vcmp.eq.s32.totalorder %v356, %v604
      %vm616 = vcmp.eq.s32.totalorder %v357, %v604
      %vm617 = vcmp.eq.s32.totalorder %v358, %v604
      %vm618 = vcmp.eq.s32.totalorder %v359, %v604
      %vm619 = vcmp.eq.s32.totalorder %v360, %v604
      %vm620 = vcmp.eq.s32.totalorder %v361, %v604
      %v621 = vsel %vm605, 1.0, 0.0
      %v622 = vsel %vm606, 1.0, 0.0
      %v623 = vsel %vm607, 1.0, 0.0
      %v624 = vsel %vm608, 1.0, 0.0
      %v625 = vsel %vm609, 1.0, 0.0
      %v626 = vsel %vm610, 1.0, 0.0
      %v627 = vsel %vm611, 1.0, 0.0
      %v628 = vsel %vm612, 1.0, 0.0
      %v629 = vsel %vm613, 1.0, 0.0
      %v630 = vsel %vm614, 1.0, 0.0
      %v631 = vsel %vm615, 1.0, 0.0
      %v632 = vsel %vm616, 1.0, 0.0
      %v633 = vsel %vm617, 1.0, 0.0
      %v634 = vsel %vm618, 1.0, 0.0
      %v635 = vsel %vm619, 1.0, 0.0
      %v636 = vsel %vm620, 1.0, 0.0
      %637 = vmatpush.msra.mxu0 %v587
      %638 = vmatpush.msra.mxu0 %v586
      %639 = vmatpush.msra.mxu0 %v585
      %640 = vmatpush.msra.mxu0 %v584
      %641 = vmatpush.msra.mxu0 %v583
      %642 = vmatpush.msra.mxu0 %v582
      %643 = vmatpush.msra.mxu0 %v581
      %644 = vmatpush.msra.mxu0 %v580
      %645 = vmatpush.msra.mxu0 %v579
      %646 = vmatpush.msra.mxu0 %v578
      %647 = vmatpush.msra.mxu0 %v577
      %648 = vmatpush.msra.mxu0 %v576
      %649 = vmatpush.msra.mxu0 %v575
      %650 = vmatpush.msra.mxu0 %v574
      %651 = vmatpush.msra.mxu0 %v573
      %652 = vmatpush.msra.mxu0 %v572
      %653 = vmatmul.f32.gmra.mxu0 %v249
      %v654 = vpop.f32.mrf.mxu0
      %v655 = vadd.f32 0.0, %v654
      %656 = vmatmul.f32.gmra.mxu0 %v251
      %v657 = vpop.f32.mrf.mxu0
      %v658 = vadd.f32 0.0, %v657
      %659 = vmatmul.f32.gmra.mxu0 %v253
      %v660 = vpop.f32.mrf.mxu0
      %v661 = vadd.f32 0.0, %v660
      %662 = vmatmul.f32.gmra.mxu0 %v255
      %v663 = vpop.f32.mrf.mxu0
      %v664 = vadd.f32 0.0, %v663
      %665 = vmatmul.f32.gmra.mxu0 %v257
      %v666 = vpop.f32.mrf.mxu0
      %v667 = vadd.f32 0.0, %v666
      %668 = vmatmul.f32.gmra.mxu0 %v259
      %v669 = vpop.f32.mrf.mxu0
      %v670 = vadd.f32 0.0, %v669
      %671 = vmatmul.f32.gmra.mxu0 %v261
      %v672 = vpop.f32.mrf.mxu0
      %v673 = vadd.f32 0.0, %v672
      %674 = vmatmul.f32.gmra.mxu0 %v263
      %v675 = vpop.f32.mrf.mxu0
      %v676 = vadd.f32 0.0, %v675
      %677 = vmatmul.f32.gmra.mxu0 %v265
      %v678 = vpop.f32.mrf.mxu0
      %v679 = vadd.f32 0.0, %v678
      %680 = vmatmul.f32.gmra.mxu0 %v267
      %v681 = vpop.f32.mrf.mxu0
      %v682 = vadd.f32 0.0, %v681
      %683 = vmatmul.f32.gmra.mxu0 %v269
      %v684 = vpop.f32.mrf.mxu0
      %v685 = vadd.f32 0.0, %v684
      %686 = vmatmul.f32.gmra.mxu0 %v271
      %v687 = vpop.f32.mrf.mxu0
      %v688 = vadd.f32 0.0, %v687
      %689 = vmatmul.f32.gmra.mxu0 %v273
      %v690 = vpop.f32.mrf.mxu0
      %v691 = vadd.f32 0.0, %v690
      %692 = vmatmul.f32.gmra.mxu0 %v275
      %v693 = vpop.f32.mrf.mxu0
      %v694 = vadd.f32 0.0, %v693
      %695 = vmatmul.f32.gmra.mxu0 %v277
      %v696 = vpop.f32.mrf.mxu0
      %v697 = vadd.f32 0.0, %v696
      %698 = vmatmul.f32.gmra.mxu0 %v279
      %v699 = vpop.f32.mrf.mxu0
      %v700 = vadd.f32 0.0, %v699
      %701 = vmatmul.f32.gmra.mxu0 %v281
      %v702 = vpop.f32.mrf.mxu0
      %v703 = vadd.f32 0.0, %v702
      %704 = vmatmul.f32.gmra.mxu0 %v283
      %v705 = vpop.f32.mrf.mxu0
      %v706 = vadd.f32 0.0, %v705
      %707 = vmatmul.f32.gmra.mxu0 %v285
      %v708 = vpop.f32.mrf.mxu0
      %v709 = vadd.f32 0.0, %v708
      %710 = vmatmul.f32.gmra.mxu0 %v287
      %v711 = vpop.f32.mrf.mxu0
      %v712 = vadd.f32 0.0, %v711
      %713 = vmatmul.f32.gmra.mxu0 %v289
      %v714 = vpop.f32.mrf.mxu0
      %v715 = vadd.f32 0.0, %v714
      %716 = vmatmul.f32.gmra.mxu0 %v291
      %v717 = vpop.f32.mrf.mxu0
      %v718 = vadd.f32 0.0, %v717
      %719 = vmatmul.f32.gmra.mxu0 %v293
      %v720 = vpop.f32.mrf.mxu0
      %v721 = vadd.f32 0.0, %v720
      %722 = vmatmul.f32.gmra.mxu0 %v295
      %v723 = vpop.f32.mrf.mxu0
      %v724 = vadd.f32 0.0, %v723
      %725 = vmatmul.f32.gmra.mxu0 %v297
      %v726 = vpop.f32.mrf.mxu0
      %v727 = vadd.f32 0.0, %v726
      %728 = vmatmul.f32.gmra.mxu0 %v299
      %v729 = vpop.f32.mrf.mxu0
      %v730 = vadd.f32 0.0, %v729
      %731 = vmatmul.f32.gmra.mxu0 %v301
      %v732 = vpop.f32.mrf.mxu0
      %v733 = vadd.f32 0.0, %v732
      %734 = vmatmul.f32.gmra.mxu0 %v303
      %v735 = vpop.f32.mrf.mxu0
      %v736 = vadd.f32 0.0, %v735
      %737 = vmatmul.f32.gmra.mxu0 %v305
      %v738 = vpop.f32.mrf.mxu0
      %v739 = vadd.f32 0.0, %v738
      %740 = vmatmul.f32.gmra.mxu0 %v307
      %v741 = vpop.f32.mrf.mxu0
      %v742 = vadd.f32 0.0, %v741
      %743 = vmatmul.f32.gmra.mxu0 %v309
      %v744 = vpop.f32.mrf.mxu0
      %v745 = vadd.f32 0.0, %v744
      %746 = vmatmul.f32.gmra.mxu0 %v311
      %v747 = vpop.f32.mrf.mxu0
      %v748 = vadd.f32 0.0, %v747
      %749 = vmatmul.f32.gmra.mxu0 %v313
      %v750 = vpop.f32.mrf.mxu0
      %v751 = vadd.f32 0.0, %v750
      %752 = vmatmul.f32.gmra.mxu0 %v315
      %v753 = vpop.f32.mrf.mxu0
      %v754 = vadd.f32 0.0, %v753
      %755 = vmatmul.f32.gmra.mxu0 %v317
      %v756 = vpop.f32.mrf.mxu0
      %v757 = vadd.f32 0.0, %v756
      %758 = vmatmul.f32.gmra.mxu0 %v319
      %v759 = vpop.f32.mrf.mxu0
      %v760 = vadd.f32 0.0, %v759
      %761 = vmatmul.f32.gmra.mxu0 %v321
      %v762 = vpop.f32.mrf.mxu0
      %v763 = vadd.f32 0.0, %v762
      %764 = vmatmul.f32.gmra.mxu0 %v323
      %v765 = vpop.f32.mrf.mxu0
      %v766 = vadd.f32 0.0, %v765
      %767 = vmatmul.f32.gmra.mxu0 %v325
      %v768 = vpop.f32.mrf.mxu0
      %v769 = vadd.f32 0.0, %v768
      %770 = vmatmul.f32.gmra.mxu0 %v327
      %v771 = vpop.f32.mrf.mxu0
      %v772 = vadd.f32 0.0, %v771
      %773 = vmatmul.f32.gmra.mxu0 %v329
      %v774 = vpop.f32.mrf.mxu0
      %v775 = vadd.f32 0.0, %v774
      %776 = vmatmul.f32.gmra.mxu0 %v331
      %v777 = vpop.f32.mrf.mxu0
      %v778 = vadd.f32 0.0, %v777
      %779 = vmatmul.f32.gmra.mxu0 %v333
      %v780 = vpop.f32.mrf.mxu0
      %v781 = vadd.f32 0.0, %v780
      %782 = vmatmul.f32.gmra.mxu0 %v335
      %v783 = vpop.f32.mrf.mxu0
      %v784 = vadd.f32 0.0, %v783
      %785 = vmatmul.f32.gmra.mxu0 %v337
      %v786 = vpop.f32.mrf.mxu0
      %v787 = vadd.f32 0.0, %v786
      %788 = vmatmul.f32.gmra.mxu0 %v339
      %v789 = vpop.f32.mrf.mxu0
      %v790 = vadd.f32 0.0, %v789
      %791 = vmatmul.f32.gmra.mxu0 %v341
      %v792 = vpop.f32.mrf.mxu0
      %v793 = vadd.f32 0.0, %v792
      %794 = vmatmul.f32.gmra.mxu0 %v343
      %v795 = vpop.f32.mrf.mxu0
      %v796 = vadd.f32 0.0, %v795
      %797 = vdwg.mxu0
      %798 = vmatpush.msra.mxu0 %v603
      %799 = vmatpush.msra.mxu0 %v602
      %800 = vmatpush.msra.mxu0 %v601
      %801 = vmatpush.msra.mxu0 %v600
      %802 = vmatpush.msra.mxu0 %v599
      %803 = vmatpush.msra.mxu0 %v598
      %804 = vmatpush.msra.mxu0 %v597
      %805 = vmatpush.msra.mxu0 %v596
      %806 = vmatpush.msra.mxu0 %v595
      %807 = vmatpush.msra.mxu0 %v594
      %808 = vmatpush.msra.mxu0 %v593
      %809 = vmatpush.msra.mxu0 %v592
      %810 = vmatpush.msra.mxu0 %v591
      %811 = vmatpush.msra.mxu0 %v590
      %812 = vmatpush.msra.mxu0 %v589
      %813 = vmatpush.msra.mxu0 %v588
      %814 = vmatmul.f32.gmra.mxu0 %v250
      %v815 = vpop.f32.mrf.mxu0
      %v816 = vadd.f32 %v655, %v815
      %817 = vmatmul.f32.gmra.mxu0 %v252
      %v818 = vpop.f32.mrf.mxu0
      %v819 = vadd.f32 %v658, %v818
      %820 = vmatmul.f32.gmra.mxu0 %v254
      %v821 = vpop.f32.mrf.mxu0
      %v822 = vadd.f32 %v661, %v821
      %823 = vmatmul.f32.gmra.mxu0 %v256
      %v824 = vpop.f32.mrf.mxu0
      %v825 = vadd.f32 %v664, %v824
      %826 = vmatmul.f32.gmra.mxu0 %v258
      %v827 = vpop.f32.mrf.mxu0
      %v828 = vadd.f32 %v667, %v827
      %829 = vmatmul.f32.gmra.mxu0 %v260
      %v830 = vpop.f32.mrf.mxu0
      %v831 = vadd.f32 %v670, %v830
      %832 = vmatmul.f32.gmra.mxu0 %v262
      %v833 = vpop.f32.mrf.mxu0
      %v834 = vadd.f32 %v673, %v833
      %835 = vmatmul.f32.gmra.mxu0 %v264
      %v836 = vpop.f32.mrf.mxu0
      %v837 = vadd.f32 %v676, %v836
      %838 = vmatmul.f32.gmra.mxu0 %v266
      %v839 = vpop.f32.mrf.mxu0
      %v840 = vadd.f32 %v679, %v839
      %841 = vmatmul.f32.gmra.mxu0 %v268
      %v842 = vpop.f32.mrf.mxu0
      %v843 = vadd.f32 %v682, %v842
      %844 = vmatmul.f32.gmra.mxu0 %v270
      %v845 = vpop.f32.mrf.mxu0
      %v846 = vadd.f32 %v685, %v845
      %847 = vmatmul.f32.gmra.mxu0 %v272
      %v848 = vpop.f32.mrf.mxu0
      %v849 = vadd.f32 %v688, %v848
      %850 = vmatmul.f32.gmra.mxu0 %v274
      %v851 = vpop.f32.mrf.mxu0
      %v852 = vadd.f32 %v691, %v851
      %853 = vmatmul.f32.gmra.mxu0 %v276
      %v854 = vpop.f32.mrf.mxu0
      %v855 = vadd.f32 %v694, %v854
      %856 = vmatmul.f32.gmra.mxu0 %v278
      %v857 = vpop.f32.mrf.mxu0
      %v858 = vadd.f32 %v697, %v857
      %859 = vmatmul.f32.gmra.mxu0 %v280
      %v860 = vpop.f32.mrf.mxu0
      %v861 = vadd.f32 %v700, %v860
      %862 = vmatmul.f32.gmra.mxu0 %v282
      %v863 = vpop.f32.mrf.mxu0
      %v864 = vadd.f32 %v703, %v863
      %865 = vmatmul.f32.gmra.mxu0 %v284
      %v866 = vpop.f32.mrf.mxu0
      %v867 = vadd.f32 %v706, %v866
      %868 = vmatmul.f32.gmra.mxu0 %v286
      %v869 = vpop.f32.mrf.mxu0
      %v870 = vadd.f32 %v709, %v869
      %871 = vmatmul.f32.gmra.mxu0 %v288
      %v872 = vpop.f32.mrf.mxu0
      %v873 = vadd.f32 %v712, %v872
      %874 = vmatmul.f32.gmra.mxu0 %v290
      %v875 = vpop.f32.mrf.mxu0
      %v876 = vadd.f32 %v715, %v875
      %877 = vmatmul.f32.gmra.mxu0 %v292
      %v878 = vpop.f32.mrf.mxu0
      %v879 = vadd.f32 %v718, %v878
      %880 = vmatmul.f32.gmra.mxu0 %v294
      %v881 = vpop.f32.mrf.mxu0
      %v882 = vadd.f32 %v721, %v881
      %883 = vmatmul.f32.gmra.mxu0 %v296
      %v884 = vpop.f32.mrf.mxu0
      %v885 = vadd.f32 %v724, %v884
      %886 = vmatmul.f32.gmra.mxu0 %v298
      %v887 = vpop.f32.mrf.mxu0
      %v888 = vadd.f32 %v727, %v887
      %889 = vmatmul.f32.gmra.mxu0 %v300
      %v890 = vpop.f32.mrf.mxu0
      %v891 = vadd.f32 %v730, %v890
      %892 = vmatmul.f32.gmra.mxu0 %v302
      %v893 = vpop.f32.mrf.mxu0
      %v894 = vadd.f32 %v733, %v893
      %895 = vmatmul.f32.gmra.mxu0 %v304
      %v896 = vpop.f32.mrf.mxu0
      %v897 = vadd.f32 %v736, %v896
      %898 = vmatmul.f32.gmra.mxu0 %v306
      %v899 = vpop.f32.mrf.mxu0
      %v900 = vadd.f32 %v739, %v899
      %901 = vmatmul.f32.gmra.mxu0 %v308
      %v902 = vpop.f32.mrf.mxu0
      %v903 = vadd.f32 %v742, %v902
      %904 = vmatmul.f32.gmra.mxu0 %v310
      %v905 = vpop.f32.mrf.mxu0
      %v906 = vadd.f32 %v745, %v905
      %907 = vmatmul.f32.gmra.mxu0 %v312
      %v908 = vpop.f32.mrf.mxu0
      %v909 = vadd.f32 %v748, %v908
      %910 = vmatmul.f32.gmra.mxu0 %v314
      %v911 = vpop.f32.mrf.mxu0
      %v912 = vadd.f32 %v751, %v911
      %913 = vmatmul.f32.gmra.mxu0 %v316
      %v914 = vpop.f32.mrf.mxu0
      %v915 = vadd.f32 %v754, %v914
      %916 = vmatmul.f32.gmra.mxu0 %v318
      %v917 = vpop.f32.mrf.mxu0
      %v918 = vadd.f32 %v757, %v917
      %919 = vmatmul.f32.gmra.mxu0 %v320
      %v920 = vpop.f32.mrf.mxu0
      %v921 = vadd.f32 %v760, %v920
      %922 = vmatmul.f32.gmra.mxu0 %v322
      %v923 = vpop.f32.mrf.mxu0
      %v924 = vadd.f32 %v763, %v923
      %925 = vmatmul.f32.gmra.mxu0 %v324
      %v926 = vpop.f32.mrf.mxu0
      %v927 = vadd.f32 %v766, %v926
      %928 = vmatmul.f32.gmra.mxu0 %v326
      %v929 = vpop.f32.mrf.mxu0
      %v930 = vadd.f32 %v769, %v929
      %931 = vmatmul.f32.gmra.mxu0 %v328
      %v932 = vpop.f32.mrf.mxu0
      %v933 = vadd.f32 %v772, %v932
      %934 = vmatmul.f32.gmra.mxu0 %v330
      %v935 = vpop.f32.mrf.mxu0
      %v936 = vadd.f32 %v775, %v935
      %937 = vmatmul.f32.gmra.mxu0 %v332
      %v938 = vpop.f32.mrf.mxu0
      %v939 = vadd.f32 %v778, %v938
      %940 = vmatmul.f32.gmra.mxu0 %v334
      %v941 = vpop.f32.mrf.mxu0
      %v942 = vadd.f32 %v781, %v941
      %943 = vmatmul.f32.gmra.mxu0 %v336
      %v944 = vpop.f32.mrf.mxu0
      %v945 = vadd.f32 %v784, %v944
      %946 = vmatmul.f32.gmra.mxu0 %v338
      %v947 = vpop.f32.mrf.mxu0
      %v948 = vadd.f32 %v787, %v947
      %949 = vmatmul.f32.gmra.mxu0 %v340
      %v950 = vpop.f32.mrf.mxu0
      %v951 = vadd.f32 %v790, %v950
      %952 = vmatmul.f32.gmra.mxu0 %v342
      %v953 = vpop.f32.mrf.mxu0
      %v954 = vadd.f32 %v793, %v953
      %955 = vmatmul.f32.gmra.mxu0 %v344
      %v956 = vpop.f32.mrf.mxu0
      %v957 = vadd.f32 %v796, %v956
      %958 = vdwg.mxu0
      %v959 = vmul.f32 %v816, %v621
      %v960 = vmul.f32 %v819, %v622
      %v961 = vmul.f32 %v822, %v623
      %v962 = vmul.f32 %v825, %v624
      %v963 = vmul.f32 %v828, %v625
      %v964 = vmul.f32 %v831, %v626
      %v965 = vmul.f32 %v834, %v627
      %v966 = vmul.f32 %v837, %v628
      %v967 = vmul.f32 %v840, %v629
      %v968 = vmul.f32 %v843, %v630
      %v969 = vmul.f32 %v846, %v631
      %v970 = vmul.f32 %v849, %v632
      %v971 = vmul.f32 %v852, %v633
      %v972 = vmul.f32 %v855, %v634
      %v973 = vmul.f32 %v858, %v635
      %v974 = vmul.f32 %v861, %v636
      %v975 = vadd.f32 %v959, %v960
      %v976 = vadd.f32 %v975, %v961
      %v977 = vadd.f32 %v976, %v962
      %v978 = vadd.f32 %v977, %v963
      %v979 = vadd.f32 %v978, %v964
      %v980 = vadd.f32 %v979, %v965
      %v981 = vadd.f32 %v980, %v966
      %v982 = vadd.f32 %v981, %v967
      %v983 = vadd.f32 %v982, %v968
      %v984 = vadd.f32 %v983, %v969
      %v985 = vadd.f32 %v984, %v970
      %v986 = vadd.f32 %v985, %v971
      %v987 = vadd.f32 %v986, %v972
      %v988 = vadd.f32 %v987, %v973
      %v989 = vadd.f32 %v988, %v974
      %v990 = vrot.slane %v989, 4
      %v991 = vadd.f32 %v989, %v990
      %v992 = vrot.slane %v991, 2
      %v993 = vadd.f32 %v991, %v992
      %v994 = vrot.slane %v993, 1
      %v995 = vadd.f32 %v993, %v994
      %v996 = vsub.f32 %v995, %v424
      %v997 = vmul.f32 %v996, %v996
      %v998 = vadd.f32 %v997, 0.0
      %v999 = vmul.f32 %v864, %v621
      %v1000 = vmul.f32 %v867, %v622
      %v1001 = vmul.f32 %v870, %v623
      %v1002 = vmul.f32 %v873, %v624
      %v1003 = vmul.f32 %v876, %v625
      %v1004 = vmul.f32 %v879, %v626
      %v1005 = vmul.f32 %v882, %v627
      %v1006 = vmul.f32 %v885, %v628
      %v1007 = vmul.f32 %v888, %v629
      %v1008 = vmul.f32 %v891, %v630
      %v1009 = vmul.f32 %v894, %v631
      %v1010 = vmul.f32 %v897, %v632
      %v1011 = vmul.f32 %v900, %v633
      %v1012 = vmul.f32 %v903, %v634
      %v1013 = vmul.f32 %v906, %v635
      %v1014 = vmul.f32 %v909, %v636
      %v1015 = vadd.f32 %v999, %v1000
      %v1016 = vadd.f32 %v1015, %v1001
      %v1017 = vadd.f32 %v1016, %v1002
      %v1018 = vadd.f32 %v1017, %v1003
      %v1019 = vadd.f32 %v1018, %v1004
      %v1020 = vadd.f32 %v1019, %v1005
      %v1021 = vadd.f32 %v1020, %v1006
      %v1022 = vadd.f32 %v1021, %v1007
      %v1023 = vadd.f32 %v1022, %v1008
      %v1024 = vadd.f32 %v1023, %v1009
      %v1025 = vadd.f32 %v1024, %v1010
      %v1026 = vadd.f32 %v1025, %v1011
      %v1027 = vadd.f32 %v1026, %v1012
      %v1028 = vadd.f32 %v1027, %v1013
      %v1029 = vadd.f32 %v1028, %v1014
      %v1030 = vrot.slane %v1029, 4
      %v1031 = vadd.f32 %v1029, %v1030
      %v1032 = vrot.slane %v1031, 2
      %v1033 = vadd.f32 %v1031, %v1032
      %v1034 = vrot.slane %v1033, 1
      %v1035 = vadd.f32 %v1033, %v1034
      %v1036 = vsub.f32 %v1035, %v426
      %v1037 = vmul.f32 %v1036, %v1036
      %v1038 = vadd.f32 %v998, %v1037
      %v1039 = vmul.f32 %v912, %v621
      %v1040 = vmul.f32 %v915, %v622
      %v1041 = vmul.f32 %v918, %v623
      %v1042 = vmul.f32 %v921, %v624
      %v1043 = vmul.f32 %v924, %v625
      %v1044 = vmul.f32 %v927, %v626
      %v1045 = vmul.f32 %v930, %v627
      %v1046 = vmul.f32 %v933, %v628
      %v1047 = vmul.f32 %v936, %v629
      %v1048 = vmul.f32 %v939, %v630
      %v1049 = vmul.f32 %v942, %v631
      %v1050 = vmul.f32 %v945, %v632
      %v1051 = vmul.f32 %v948, %v633
      %v1052 = vmul.f32 %v951, %v634
      %v1053 = vmul.f32 %v954, %v635
      %v1054 = vmul.f32 %v957, %v636
      %v1055 = vadd.f32 %v1039, %v1040
      %v1056 = vadd.f32 %v1055, %v1041
      %v1057 = vadd.f32 %v1056, %v1042
      %v1058 = vadd.f32 %v1057, %v1043
      %v1059 = vadd.f32 %v1058, %v1044
      %v1060 = vadd.f32 %v1059, %v1045
      %v1061 = vadd.f32 %v1060, %v1046
      %v1062 = vadd.f32 %v1061, %v1047
      %v1063 = vadd.f32 %v1062, %v1048
      %v1064 = vadd.f32 %v1063, %v1049
      %v1065 = vadd.f32 %v1064, %v1050
      %v1066 = vadd.f32 %v1065, %v1051
      %v1067 = vadd.f32 %v1066, %v1052
      %v1068 = vadd.f32 %v1067, %v1053
      %v1069 = vadd.f32 %v1068, %v1054
      %v1070 = vrot.slane %v1069, 4
      %v1071 = vadd.f32 %v1069, %v1070
      %v1072 = vrot.slane %v1071, 2
      %v1073 = vadd.f32 %v1071, %v1072
      %v1074 = vrot.slane %v1073, 1
      %v1075 = vadd.f32 %v1073, %v1074
      %v1076 = vsub.f32 %v1075, %v428
      %v1077 = vmul.f32 %v1076, %v1076
      %v1078 = vadd.f32 %v1038, %v1077
      %v1079 = vrsqrt.pop %v1078
      %v1080 = vmul.f32 %v1079, %v1078
      %v1081 = vmul.f32 %v1080, %v1079
      %v1082 = vmul.f32 0.5, %v1081
      %v1083 = vsub.f32 1.5, %v1082
      %v1084 = vmul.f32 %v1079, %v1083
      %v1085 = vmul.f32 %v1078, %v1084
      %vm1086 = vcmp.eq.f32.partialorder %v1078, inf
      %v1087 = vsel %vm1086, %v1078, %v1085
      %vm1088 = vcmp.eq.f32.partialorder %v1078, 0.0
      %v1089 = vand.u32 %v1078, 2147483648
      %v1090 = vsel %vm1088, %v1089, %v1087
      %v1091 = vsel %vm248, %v1090, 0.0
      %v1092 = vadd.f32 %v1091, 0.0
      %v1093 = vperm.slane %v537, 1
      %vm1094 = vcmp.eq.s32.totalorder %v346, %v1093
      %vm1095 = vcmp.eq.s32.totalorder %v347, %v1093
      %vm1096 = vcmp.eq.s32.totalorder %v348, %v1093
      %vm1097 = vcmp.eq.s32.totalorder %v349, %v1093
      %vm1098 = vcmp.eq.s32.totalorder %v350, %v1093
      %vm1099 = vcmp.eq.s32.totalorder %v351, %v1093
      %vm1100 = vcmp.eq.s32.totalorder %v352, %v1093
      %vm1101 = vcmp.eq.s32.totalorder %v353, %v1093
      %vm1102 = vcmp.eq.s32.totalorder %v354, %v1093
      %vm1103 = vcmp.eq.s32.totalorder %v355, %v1093
      %vm1104 = vcmp.eq.s32.totalorder %v356, %v1093
      %vm1105 = vcmp.eq.s32.totalorder %v357, %v1093
      %vm1106 = vcmp.eq.s32.totalorder %v358, %v1093
      %vm1107 = vcmp.eq.s32.totalorder %v359, %v1093
      %vm1108 = vcmp.eq.s32.totalorder %v360, %v1093
      %vm1109 = vcmp.eq.s32.totalorder %v361, %v1093
      %vm1110 = vcmp.eq.s32.totalorder %v362, %v1093
      %vm1111 = vcmp.eq.s32.totalorder %v363, %v1093
      %vm1112 = vcmp.eq.s32.totalorder %v364, %v1093
      %vm1113 = vcmp.eq.s32.totalorder %v365, %v1093
      %vm1114 = vcmp.eq.s32.totalorder %v366, %v1093
      %vm1115 = vcmp.eq.s32.totalorder %v367, %v1093
      %vm1116 = vcmp.eq.s32.totalorder %v368, %v1093
      %vm1117 = vcmp.eq.s32.totalorder %v369, %v1093
      %vm1118 = vcmp.eq.s32.totalorder %v370, %v1093
      %vm1119 = vcmp.eq.s32.totalorder %v371, %v1093
      %vm1120 = vcmp.eq.s32.totalorder %v372, %v1093
      %vm1121 = vcmp.eq.s32.totalorder %v373, %v1093
      %vm1122 = vcmp.eq.s32.totalorder %v374, %v1093
      %vm1123 = vcmp.eq.s32.totalorder %v375, %v1093
      %vm1124 = vcmp.eq.s32.totalorder %v376, %v1093
      %vm1125 = vcmp.eq.s32.totalorder %v377, %v1093
      %v1126 = vsel %vm1094, 1.0, 0.0
      %v1127 = vsel %vm1095, 1.0, 0.0
      %v1128 = vsel %vm1096, 1.0, 0.0
      %v1129 = vsel %vm1097, 1.0, 0.0
      %v1130 = vsel %vm1098, 1.0, 0.0
      %v1131 = vsel %vm1099, 1.0, 0.0
      %v1132 = vsel %vm1100, 1.0, 0.0
      %v1133 = vsel %vm1101, 1.0, 0.0
      %v1134 = vsel %vm1102, 1.0, 0.0
      %v1135 = vsel %vm1103, 1.0, 0.0
      %v1136 = vsel %vm1104, 1.0, 0.0
      %v1137 = vsel %vm1105, 1.0, 0.0
      %v1138 = vsel %vm1106, 1.0, 0.0
      %v1139 = vsel %vm1107, 1.0, 0.0
      %v1140 = vsel %vm1108, 1.0, 0.0
      %v1141 = vsel %vm1109, 1.0, 0.0
      %v1142 = vsel %vm1110, 1.0, 0.0
      %v1143 = vsel %vm1111, 1.0, 0.0
      %v1144 = vsel %vm1112, 1.0, 0.0
      %v1145 = vsel %vm1113, 1.0, 0.0
      %v1146 = vsel %vm1114, 1.0, 0.0
      %v1147 = vsel %vm1115, 1.0, 0.0
      %v1148 = vsel %vm1116, 1.0, 0.0
      %v1149 = vsel %vm1117, 1.0, 0.0
      %v1150 = vsel %vm1118, 1.0, 0.0
      %v1151 = vsel %vm1119, 1.0, 0.0
      %v1152 = vsel %vm1120, 1.0, 0.0
      %v1153 = vsel %vm1121, 1.0, 0.0
      %v1154 = vsel %vm1122, 1.0, 0.0
      %v1155 = vsel %vm1123, 1.0, 0.0
      %v1156 = vsel %vm1124, 1.0, 0.0
      %v1157 = vsel %vm1125, 1.0, 0.0
      %v1158 = vperm.slane %v538, 1
      %vm1159 = vcmp.eq.s32.totalorder %v346, %v1158
      %vm1160 = vcmp.eq.s32.totalorder %v347, %v1158
      %vm1161 = vcmp.eq.s32.totalorder %v348, %v1158
      %vm1162 = vcmp.eq.s32.totalorder %v349, %v1158
      %vm1163 = vcmp.eq.s32.totalorder %v350, %v1158
      %vm1164 = vcmp.eq.s32.totalorder %v351, %v1158
      %vm1165 = vcmp.eq.s32.totalorder %v352, %v1158
      %vm1166 = vcmp.eq.s32.totalorder %v353, %v1158
      %vm1167 = vcmp.eq.s32.totalorder %v354, %v1158
      %vm1168 = vcmp.eq.s32.totalorder %v355, %v1158
      %vm1169 = vcmp.eq.s32.totalorder %v356, %v1158
      %vm1170 = vcmp.eq.s32.totalorder %v357, %v1158
      %vm1171 = vcmp.eq.s32.totalorder %v358, %v1158
      %vm1172 = vcmp.eq.s32.totalorder %v359, %v1158
      %vm1173 = vcmp.eq.s32.totalorder %v360, %v1158
      %vm1174 = vcmp.eq.s32.totalorder %v361, %v1158
      %v1175 = vsel %vm1159, 1.0, 0.0
      %v1176 = vsel %vm1160, 1.0, 0.0
      %v1177 = vsel %vm1161, 1.0, 0.0
      %v1178 = vsel %vm1162, 1.0, 0.0
      %v1179 = vsel %vm1163, 1.0, 0.0
      %v1180 = vsel %vm1164, 1.0, 0.0
      %v1181 = vsel %vm1165, 1.0, 0.0
      %v1182 = vsel %vm1166, 1.0, 0.0
      %v1183 = vsel %vm1167, 1.0, 0.0
      %v1184 = vsel %vm1168, 1.0, 0.0
      %v1185 = vsel %vm1169, 1.0, 0.0
      %v1186 = vsel %vm1170, 1.0, 0.0
      %v1187 = vsel %vm1171, 1.0, 0.0
      %v1188 = vsel %vm1172, 1.0, 0.0
      %v1189 = vsel %vm1173, 1.0, 0.0
      %v1190 = vsel %vm1174, 1.0, 0.0
      %1191 = vmatpush.msra.mxu0 %v1141
      %1192 = vmatpush.msra.mxu0 %v1140
      %1193 = vmatpush.msra.mxu0 %v1139
      %1194 = vmatpush.msra.mxu0 %v1138
      %1195 = vmatpush.msra.mxu0 %v1137
      %1196 = vmatpush.msra.mxu0 %v1136
      %1197 = vmatpush.msra.mxu0 %v1135
      %1198 = vmatpush.msra.mxu0 %v1134
      %1199 = vmatpush.msra.mxu0 %v1133
      %1200 = vmatpush.msra.mxu0 %v1132
      %1201 = vmatpush.msra.mxu0 %v1131
      %1202 = vmatpush.msra.mxu0 %v1130
      %1203 = vmatpush.msra.mxu0 %v1129
      %1204 = vmatpush.msra.mxu0 %v1128
      %1205 = vmatpush.msra.mxu0 %v1127
      %1206 = vmatpush.msra.mxu0 %v1126
      %1207 = vmatmul.f32.gmra.mxu0 %v249
      %v1208 = vpop.f32.mrf.mxu0
      %v1209 = vadd.f32 0.0, %v1208
      %1210 = vmatmul.f32.gmra.mxu0 %v251
      %v1211 = vpop.f32.mrf.mxu0
      %v1212 = vadd.f32 0.0, %v1211
      %1213 = vmatmul.f32.gmra.mxu0 %v253
      %v1214 = vpop.f32.mrf.mxu0
      %v1215 = vadd.f32 0.0, %v1214
      %1216 = vmatmul.f32.gmra.mxu0 %v255
      %v1217 = vpop.f32.mrf.mxu0
      %v1218 = vadd.f32 0.0, %v1217
      %1219 = vmatmul.f32.gmra.mxu0 %v257
      %v1220 = vpop.f32.mrf.mxu0
      %v1221 = vadd.f32 0.0, %v1220
      %1222 = vmatmul.f32.gmra.mxu0 %v259
      %v1223 = vpop.f32.mrf.mxu0
      %v1224 = vadd.f32 0.0, %v1223
      %1225 = vmatmul.f32.gmra.mxu0 %v261
      %v1226 = vpop.f32.mrf.mxu0
      %v1227 = vadd.f32 0.0, %v1226
      %1228 = vmatmul.f32.gmra.mxu0 %v263
      %v1229 = vpop.f32.mrf.mxu0
      %v1230 = vadd.f32 0.0, %v1229
      %1231 = vmatmul.f32.gmra.mxu0 %v265
      %v1232 = vpop.f32.mrf.mxu0
      %v1233 = vadd.f32 0.0, %v1232
      %1234 = vmatmul.f32.gmra.mxu0 %v267
      %v1235 = vpop.f32.mrf.mxu0
      %v1236 = vadd.f32 0.0, %v1235
      %1237 = vmatmul.f32.gmra.mxu0 %v269
      %v1238 = vpop.f32.mrf.mxu0
      %v1239 = vadd.f32 0.0, %v1238
      %1240 = vmatmul.f32.gmra.mxu0 %v271
      %v1241 = vpop.f32.mrf.mxu0
      %v1242 = vadd.f32 0.0, %v1241
      %1243 = vmatmul.f32.gmra.mxu0 %v273
      %v1244 = vpop.f32.mrf.mxu0
      %v1245 = vadd.f32 0.0, %v1244
      %1246 = vmatmul.f32.gmra.mxu0 %v275
      %v1247 = vpop.f32.mrf.mxu0
      %v1248 = vadd.f32 0.0, %v1247
      %1249 = vmatmul.f32.gmra.mxu0 %v277
      %v1250 = vpop.f32.mrf.mxu0
      %v1251 = vadd.f32 0.0, %v1250
      %1252 = vmatmul.f32.gmra.mxu0 %v279
      %v1253 = vpop.f32.mrf.mxu0
      %v1254 = vadd.f32 0.0, %v1253
      %1255 = vmatmul.f32.gmra.mxu0 %v281
      %v1256 = vpop.f32.mrf.mxu0
      %v1257 = vadd.f32 0.0, %v1256
      %1258 = vmatmul.f32.gmra.mxu0 %v283
      %v1259 = vpop.f32.mrf.mxu0
      %v1260 = vadd.f32 0.0, %v1259
      %1261 = vmatmul.f32.gmra.mxu0 %v285
      %v1262 = vpop.f32.mrf.mxu0
      %v1263 = vadd.f32 0.0, %v1262
      %1264 = vmatmul.f32.gmra.mxu0 %v287
      %v1265 = vpop.f32.mrf.mxu0
      %v1266 = vadd.f32 0.0, %v1265
      %1267 = vmatmul.f32.gmra.mxu0 %v289
      %v1268 = vpop.f32.mrf.mxu0
      %v1269 = vadd.f32 0.0, %v1268
      %1270 = vmatmul.f32.gmra.mxu0 %v291
      %v1271 = vpop.f32.mrf.mxu0
      %v1272 = vadd.f32 0.0, %v1271
      %1273 = vmatmul.f32.gmra.mxu0 %v293
      %v1274 = vpop.f32.mrf.mxu0
      %v1275 = vadd.f32 0.0, %v1274
      %1276 = vmatmul.f32.gmra.mxu0 %v295
      %v1277 = vpop.f32.mrf.mxu0
      %v1278 = vadd.f32 0.0, %v1277
      %1279 = vmatmul.f32.gmra.mxu0 %v297
      %v1280 = vpop.f32.mrf.mxu0
      %v1281 = vadd.f32 0.0, %v1280
      %1282 = vmatmul.f32.gmra.mxu0 %v299
      %v1283 = vpop.f32.mrf.mxu0
      %v1284 = vadd.f32 0.0, %v1283
      %1285 = vmatmul.f32.gmra.mxu0 %v301
      %v1286 = vpop.f32.mrf.mxu0
      %v1287 = vadd.f32 0.0, %v1286
      %1288 = vmatmul.f32.gmra.mxu0 %v303
      %v1289 = vpop.f32.mrf.mxu0
      %v1290 = vadd.f32 0.0, %v1289
      %1291 = vmatmul.f32.gmra.mxu0 %v305
      %v1292 = vpop.f32.mrf.mxu0
      %v1293 = vadd.f32 0.0, %v1292
      %1294 = vmatmul.f32.gmra.mxu0 %v307
      %v1295 = vpop.f32.mrf.mxu0
      %v1296 = vadd.f32 0.0, %v1295
      %1297 = vmatmul.f32.gmra.mxu0 %v309
      %v1298 = vpop.f32.mrf.mxu0
      %v1299 = vadd.f32 0.0, %v1298
      %1300 = vmatmul.f32.gmra.mxu0 %v311
      %v1301 = vpop.f32.mrf.mxu0
      %v1302 = vadd.f32 0.0, %v1301
      %1303 = vmatmul.f32.gmra.mxu0 %v313
      %v1304 = vpop.f32.mrf.mxu0
      %v1305 = vadd.f32 0.0, %v1304
      %1306 = vmatmul.f32.gmra.mxu0 %v315
      %v1307 = vpop.f32.mrf.mxu0
      %v1308 = vadd.f32 0.0, %v1307
      %1309 = vmatmul.f32.gmra.mxu0 %v317
      %v1310 = vpop.f32.mrf.mxu0
      %v1311 = vadd.f32 0.0, %v1310
      %1312 = vmatmul.f32.gmra.mxu0 %v319
      %v1313 = vpop.f32.mrf.mxu0
      %v1314 = vadd.f32 0.0, %v1313
      %1315 = vmatmul.f32.gmra.mxu0 %v321
      %v1316 = vpop.f32.mrf.mxu0
      %v1317 = vadd.f32 0.0, %v1316
      %1318 = vmatmul.f32.gmra.mxu0 %v323
      %v1319 = vpop.f32.mrf.mxu0
      %v1320 = vadd.f32 0.0, %v1319
      %1321 = vmatmul.f32.gmra.mxu0 %v325
      %v1322 = vpop.f32.mrf.mxu0
      %v1323 = vadd.f32 0.0, %v1322
      %1324 = vmatmul.f32.gmra.mxu0 %v327
      %v1325 = vpop.f32.mrf.mxu0
      %v1326 = vadd.f32 0.0, %v1325
      %1327 = vmatmul.f32.gmra.mxu0 %v329
      %v1328 = vpop.f32.mrf.mxu0
      %v1329 = vadd.f32 0.0, %v1328
      %1330 = vmatmul.f32.gmra.mxu0 %v331
      %v1331 = vpop.f32.mrf.mxu0
      %v1332 = vadd.f32 0.0, %v1331
      %1333 = vmatmul.f32.gmra.mxu0 %v333
      %v1334 = vpop.f32.mrf.mxu0
      %v1335 = vadd.f32 0.0, %v1334
      %1336 = vmatmul.f32.gmra.mxu0 %v335
      %v1337 = vpop.f32.mrf.mxu0
      %v1338 = vadd.f32 0.0, %v1337
      %1339 = vmatmul.f32.gmra.mxu0 %v337
      %v1340 = vpop.f32.mrf.mxu0
      %v1341 = vadd.f32 0.0, %v1340
      %1342 = vmatmul.f32.gmra.mxu0 %v339
      %v1343 = vpop.f32.mrf.mxu0
      %v1344 = vadd.f32 0.0, %v1343
      %1345 = vmatmul.f32.gmra.mxu0 %v341
      %v1346 = vpop.f32.mrf.mxu0
      %v1347 = vadd.f32 0.0, %v1346
      %1348 = vmatmul.f32.gmra.mxu0 %v343
      %v1349 = vpop.f32.mrf.mxu0
      %v1350 = vadd.f32 0.0, %v1349
      %1351 = vdwg.mxu0
      %1352 = vmatpush.msra.mxu0 %v1157
      %1353 = vmatpush.msra.mxu0 %v1156
      %1354 = vmatpush.msra.mxu0 %v1155
      %1355 = vmatpush.msra.mxu0 %v1154
      %1356 = vmatpush.msra.mxu0 %v1153
      %1357 = vmatpush.msra.mxu0 %v1152
      %1358 = vmatpush.msra.mxu0 %v1151
      %1359 = vmatpush.msra.mxu0 %v1150
      %1360 = vmatpush.msra.mxu0 %v1149
      %1361 = vmatpush.msra.mxu0 %v1148
      %1362 = vmatpush.msra.mxu0 %v1147
      %1363 = vmatpush.msra.mxu0 %v1146
      %1364 = vmatpush.msra.mxu0 %v1145
      %1365 = vmatpush.msra.mxu0 %v1144
      %1366 = vmatpush.msra.mxu0 %v1143
      %1367 = vmatpush.msra.mxu0 %v1142
      %1368 = vmatmul.f32.gmra.mxu0 %v250
      %v1369 = vpop.f32.mrf.mxu0
      %v1370 = vadd.f32 %v1209, %v1369
      %1371 = vmatmul.f32.gmra.mxu0 %v252
      %v1372 = vpop.f32.mrf.mxu0
      %v1373 = vadd.f32 %v1212, %v1372
      %1374 = vmatmul.f32.gmra.mxu0 %v254
      %v1375 = vpop.f32.mrf.mxu0
      %v1376 = vadd.f32 %v1215, %v1375
      %1377 = vmatmul.f32.gmra.mxu0 %v256
      %v1378 = vpop.f32.mrf.mxu0
      %v1379 = vadd.f32 %v1218, %v1378
      %1380 = vmatmul.f32.gmra.mxu0 %v258
      %v1381 = vpop.f32.mrf.mxu0
      %v1382 = vadd.f32 %v1221, %v1381
      %1383 = vmatmul.f32.gmra.mxu0 %v260
      %v1384 = vpop.f32.mrf.mxu0
      %v1385 = vadd.f32 %v1224, %v1384
      %1386 = vmatmul.f32.gmra.mxu0 %v262
      %v1387 = vpop.f32.mrf.mxu0
      %v1388 = vadd.f32 %v1227, %v1387
      %1389 = vmatmul.f32.gmra.mxu0 %v264
      %v1390 = vpop.f32.mrf.mxu0
      %v1391 = vadd.f32 %v1230, %v1390
      %1392 = vmatmul.f32.gmra.mxu0 %v266
      %v1393 = vpop.f32.mrf.mxu0
      %v1394 = vadd.f32 %v1233, %v1393
      %1395 = vmatmul.f32.gmra.mxu0 %v268
      %v1396 = vpop.f32.mrf.mxu0
      %v1397 = vadd.f32 %v1236, %v1396
      %1398 = vmatmul.f32.gmra.mxu0 %v270
      %v1399 = vpop.f32.mrf.mxu0
      %v1400 = vadd.f32 %v1239, %v1399
      %1401 = vmatmul.f32.gmra.mxu0 %v272
      %v1402 = vpop.f32.mrf.mxu0
      %v1403 = vadd.f32 %v1242, %v1402
      %1404 = vmatmul.f32.gmra.mxu0 %v274
      %v1405 = vpop.f32.mrf.mxu0
      %v1406 = vadd.f32 %v1245, %v1405
      %1407 = vmatmul.f32.gmra.mxu0 %v276
      %v1408 = vpop.f32.mrf.mxu0
      %v1409 = vadd.f32 %v1248, %v1408
      %1410 = vmatmul.f32.gmra.mxu0 %v278
      %v1411 = vpop.f32.mrf.mxu0
      %v1412 = vadd.f32 %v1251, %v1411
      %1413 = vmatmul.f32.gmra.mxu0 %v280
      %v1414 = vpop.f32.mrf.mxu0
      %v1415 = vadd.f32 %v1254, %v1414
      %1416 = vmatmul.f32.gmra.mxu0 %v282
      %v1417 = vpop.f32.mrf.mxu0
      %v1418 = vadd.f32 %v1257, %v1417
      %1419 = vmatmul.f32.gmra.mxu0 %v284
      %v1420 = vpop.f32.mrf.mxu0
      %v1421 = vadd.f32 %v1260, %v1420
      %1422 = vmatmul.f32.gmra.mxu0 %v286
      %v1423 = vpop.f32.mrf.mxu0
      %v1424 = vadd.f32 %v1263, %v1423
      %1425 = vmatmul.f32.gmra.mxu0 %v288
      %v1426 = vpop.f32.mrf.mxu0
      %v1427 = vadd.f32 %v1266, %v1426
      %1428 = vmatmul.f32.gmra.mxu0 %v290
      %v1429 = vpop.f32.mrf.mxu0
      %v1430 = vadd.f32 %v1269, %v1429
      %1431 = vmatmul.f32.gmra.mxu0 %v292
      %v1432 = vpop.f32.mrf.mxu0
      %v1433 = vadd.f32 %v1272, %v1432
      %1434 = vmatmul.f32.gmra.mxu0 %v294
      %v1435 = vpop.f32.mrf.mxu0
      %v1436 = vadd.f32 %v1275, %v1435
      %1437 = vmatmul.f32.gmra.mxu0 %v296
      %v1438 = vpop.f32.mrf.mxu0
      %v1439 = vadd.f32 %v1278, %v1438
      %1440 = vmatmul.f32.gmra.mxu0 %v298
      %v1441 = vpop.f32.mrf.mxu0
      %v1442 = vadd.f32 %v1281, %v1441
      %1443 = vmatmul.f32.gmra.mxu0 %v300
      %v1444 = vpop.f32.mrf.mxu0
      %v1445 = vadd.f32 %v1284, %v1444
      %1446 = vmatmul.f32.gmra.mxu0 %v302
      %v1447 = vpop.f32.mrf.mxu0
      %v1448 = vadd.f32 %v1287, %v1447
      %1449 = vmatmul.f32.gmra.mxu0 %v304
      %v1450 = vpop.f32.mrf.mxu0
      %v1451 = vadd.f32 %v1290, %v1450
      %1452 = vmatmul.f32.gmra.mxu0 %v306
      %v1453 = vpop.f32.mrf.mxu0
      %v1454 = vadd.f32 %v1293, %v1453
      %1455 = vmatmul.f32.gmra.mxu0 %v308
      %v1456 = vpop.f32.mrf.mxu0
      %v1457 = vadd.f32 %v1296, %v1456
      %1458 = vmatmul.f32.gmra.mxu0 %v310
      %v1459 = vpop.f32.mrf.mxu0
      %v1460 = vadd.f32 %v1299, %v1459
      %1461 = vmatmul.f32.gmra.mxu0 %v312
      %v1462 = vpop.f32.mrf.mxu0
      %v1463 = vadd.f32 %v1302, %v1462
      %1464 = vmatmul.f32.gmra.mxu0 %v314
      %v1465 = vpop.f32.mrf.mxu0
      %v1466 = vadd.f32 %v1305, %v1465
      %1467 = vmatmul.f32.gmra.mxu0 %v316
      %v1468 = vpop.f32.mrf.mxu0
      %v1469 = vadd.f32 %v1308, %v1468
      %1470 = vmatmul.f32.gmra.mxu0 %v318
      %v1471 = vpop.f32.mrf.mxu0
      %v1472 = vadd.f32 %v1311, %v1471
      %1473 = vmatmul.f32.gmra.mxu0 %v320
      %v1474 = vpop.f32.mrf.mxu0
      %v1475 = vadd.f32 %v1314, %v1474
      %1476 = vmatmul.f32.gmra.mxu0 %v322
      %v1477 = vpop.f32.mrf.mxu0
      %v1478 = vadd.f32 %v1317, %v1477
      %1479 = vmatmul.f32.gmra.mxu0 %v324
      %v1480 = vpop.f32.mrf.mxu0
      %v1481 = vadd.f32 %v1320, %v1480
      %1482 = vmatmul.f32.gmra.mxu0 %v326
      %v1483 = vpop.f32.mrf.mxu0
      %v1484 = vadd.f32 %v1323, %v1483
      %1485 = vmatmul.f32.gmra.mxu0 %v328
      %v1486 = vpop.f32.mrf.mxu0
      %v1487 = vadd.f32 %v1326, %v1486
      %1488 = vmatmul.f32.gmra.mxu0 %v330
      %v1489 = vpop.f32.mrf.mxu0
      %v1490 = vadd.f32 %v1329, %v1489
      %1491 = vmatmul.f32.gmra.mxu0 %v332
      %v1492 = vpop.f32.mrf.mxu0
      %v1493 = vadd.f32 %v1332, %v1492
      %1494 = vmatmul.f32.gmra.mxu0 %v334
      %v1495 = vpop.f32.mrf.mxu0
      %v1496 = vadd.f32 %v1335, %v1495
      %1497 = vmatmul.f32.gmra.mxu0 %v336
      %v1498 = vpop.f32.mrf.mxu0
      %v1499 = vadd.f32 %v1338, %v1498
      %1500 = vmatmul.f32.gmra.mxu0 %v338
      %v1501 = vpop.f32.mrf.mxu0
      %v1502 = vadd.f32 %v1341, %v1501
      %1503 = vmatmul.f32.gmra.mxu0 %v340
      %v1504 = vpop.f32.mrf.mxu0
      %v1505 = vadd.f32 %v1344, %v1504
      %1506 = vmatmul.f32.gmra.mxu0 %v342
      %v1507 = vpop.f32.mrf.mxu0
      %v1508 = vadd.f32 %v1347, %v1507
      %1509 = vmatmul.f32.gmra.mxu0 %v344
      %v1510 = vpop.f32.mrf.mxu0
      %v1511 = vadd.f32 %v1350, %v1510
      %1512 = vdwg.mxu0
      %v1513 = vmul.f32 %v1370, %v1175
      %v1514 = vmul.f32 %v1373, %v1176
      %v1515 = vmul.f32 %v1376, %v1177
      %v1516 = vmul.f32 %v1379, %v1178
      %v1517 = vmul.f32 %v1382, %v1179
      %v1518 = vmul.f32 %v1385, %v1180
      %v1519 = vmul.f32 %v1388, %v1181
      %v1520 = vmul.f32 %v1391, %v1182
      %v1521 = vmul.f32 %v1394, %v1183
      %v1522 = vmul.f32 %v1397, %v1184
      %v1523 = vmul.f32 %v1400, %v1185
      %v1524 = vmul.f32 %v1403, %v1186
      %v1525 = vmul.f32 %v1406, %v1187
      %v1526 = vmul.f32 %v1409, %v1188
      %v1527 = vmul.f32 %v1412, %v1189
      %v1528 = vmul.f32 %v1415, %v1190
      %v1529 = vadd.f32 %v1513, %v1514
      %v1530 = vadd.f32 %v1529, %v1515
      %v1531 = vadd.f32 %v1530, %v1516
      %v1532 = vadd.f32 %v1531, %v1517
      %v1533 = vadd.f32 %v1532, %v1518
      %v1534 = vadd.f32 %v1533, %v1519
      %v1535 = vadd.f32 %v1534, %v1520
      %v1536 = vadd.f32 %v1535, %v1521
      %v1537 = vadd.f32 %v1536, %v1522
      %v1538 = vadd.f32 %v1537, %v1523
      %v1539 = vadd.f32 %v1538, %v1524
      %v1540 = vadd.f32 %v1539, %v1525
      %v1541 = vadd.f32 %v1540, %v1526
      %v1542 = vadd.f32 %v1541, %v1527
      %v1543 = vadd.f32 %v1542, %v1528
      %v1544 = vrot.slane %v1543, 4
      %v1545 = vadd.f32 %v1543, %v1544
      %v1546 = vrot.slane %v1545, 2
      %v1547 = vadd.f32 %v1545, %v1546
      %v1548 = vrot.slane %v1547, 1
      %v1549 = vadd.f32 %v1547, %v1548
      %v1550 = vsub.f32 %v1549, %v424
      %v1551 = vmul.f32 %v1550, %v1550
      %v1552 = vadd.f32 %v1551, 0.0
      %v1553 = vmul.f32 %v1418, %v1175
      %v1554 = vmul.f32 %v1421, %v1176
      %v1555 = vmul.f32 %v1424, %v1177
      %v1556 = vmul.f32 %v1427, %v1178
      %v1557 = vmul.f32 %v1430, %v1179
      %v1558 = vmul.f32 %v1433, %v1180
      %v1559 = vmul.f32 %v1436, %v1181
      %v1560 = vmul.f32 %v1439, %v1182
      %v1561 = vmul.f32 %v1442, %v1183
      %v1562 = vmul.f32 %v1445, %v1184
      %v1563 = vmul.f32 %v1448, %v1185
      %v1564 = vmul.f32 %v1451, %v1186
      %v1565 = vmul.f32 %v1454, %v1187
      %v1566 = vmul.f32 %v1457, %v1188
      %v1567 = vmul.f32 %v1460, %v1189
      %v1568 = vmul.f32 %v1463, %v1190
      %v1569 = vadd.f32 %v1553, %v1554
      %v1570 = vadd.f32 %v1569, %v1555
      %v1571 = vadd.f32 %v1570, %v1556
      %v1572 = vadd.f32 %v1571, %v1557
      %v1573 = vadd.f32 %v1572, %v1558
      %v1574 = vadd.f32 %v1573, %v1559
      %v1575 = vadd.f32 %v1574, %v1560
      %v1576 = vadd.f32 %v1575, %v1561
      %v1577 = vadd.f32 %v1576, %v1562
      %v1578 = vadd.f32 %v1577, %v1563
      %v1579 = vadd.f32 %v1578, %v1564
      %v1580 = vadd.f32 %v1579, %v1565
      %v1581 = vadd.f32 %v1580, %v1566
      %v1582 = vadd.f32 %v1581, %v1567
      %v1583 = vadd.f32 %v1582, %v1568
      %v1584 = vrot.slane %v1583, 4
      %v1585 = vadd.f32 %v1583, %v1584
      %v1586 = vrot.slane %v1585, 2
      %v1587 = vadd.f32 %v1585, %v1586
      %v1588 = vrot.slane %v1587, 1
      %v1589 = vadd.f32 %v1587, %v1588
      %v1590 = vsub.f32 %v1589, %v426
      %v1591 = vmul.f32 %v1590, %v1590
      %v1592 = vadd.f32 %v1552, %v1591
      %v1593 = vmul.f32 %v1466, %v1175
      %v1594 = vmul.f32 %v1469, %v1176
      %v1595 = vmul.f32 %v1472, %v1177
      %v1596 = vmul.f32 %v1475, %v1178
      %v1597 = vmul.f32 %v1478, %v1179
      %v1598 = vmul.f32 %v1481, %v1180
      %v1599 = vmul.f32 %v1484, %v1181
      %v1600 = vmul.f32 %v1487, %v1182
      %v1601 = vmul.f32 %v1490, %v1183
      %v1602 = vmul.f32 %v1493, %v1184
      %v1603 = vmul.f32 %v1496, %v1185
      %v1604 = vmul.f32 %v1499, %v1186
      %v1605 = vmul.f32 %v1502, %v1187
      %v1606 = vmul.f32 %v1505, %v1188
      %v1607 = vmul.f32 %v1508, %v1189
      %v1608 = vmul.f32 %v1511, %v1190
      %v1609 = vadd.f32 %v1593, %v1594
      %v1610 = vadd.f32 %v1609, %v1595
      %v1611 = vadd.f32 %v1610, %v1596
      %v1612 = vadd.f32 %v1611, %v1597
      %v1613 = vadd.f32 %v1612, %v1598
      %v1614 = vadd.f32 %v1613, %v1599
      %v1615 = vadd.f32 %v1614, %v1600
      %v1616 = vadd.f32 %v1615, %v1601
      %v1617 = vadd.f32 %v1616, %v1602
      %v1618 = vadd.f32 %v1617, %v1603
      %v1619 = vadd.f32 %v1618, %v1604
      %v1620 = vadd.f32 %v1619, %v1605
      %v1621 = vadd.f32 %v1620, %v1606
      %v1622 = vadd.f32 %v1621, %v1607
      %v1623 = vadd.f32 %v1622, %v1608
      %v1624 = vrot.slane %v1623, 4
      %v1625 = vadd.f32 %v1623, %v1624
      %v1626 = vrot.slane %v1625, 2
      %v1627 = vadd.f32 %v1625, %v1626
      %v1628 = vrot.slane %v1627, 1
      %v1629 = vadd.f32 %v1627, %v1628
      %v1630 = vsub.f32 %v1629, %v428
      %v1631 = vmul.f32 %v1630, %v1630
      %v1632 = vadd.f32 %v1592, %v1631
      %v1633 = vrsqrt.pop %v1632
      %v1634 = vmul.f32 %v1633, %v1632
      %v1635 = vmul.f32 %v1634, %v1633
      %v1636 = vmul.f32 0.5, %v1635
      %v1637 = vsub.f32 1.5, %v1636
      %v1638 = vmul.f32 %v1633, %v1637
      %v1639 = vmul.f32 %v1632, %v1638
      %vm1640 = vcmp.eq.f32.partialorder %v1632, inf
      %v1641 = vsel %vm1640, %v1632, %v1639
      %vm1642 = vcmp.eq.f32.partialorder %v1632, 0.0
      %v1643 = vand.u32 %v1632, 2147483648
      %v1644 = vsel %vm1642, %v1643, %v1641
      %v1645 = vsel %vm248, %v1644, 0.0
      %v1647 = vrot.slane %v1645, 1
      %v1649 = vadd.f32 %v1092, %v1647
      %v1650 = vperm.slane %v537, 2
      %vm1651 = vcmp.eq.s32.totalorder %v346, %v1650
      %vm1652 = vcmp.eq.s32.totalorder %v347, %v1650
      %vm1653 = vcmp.eq.s32.totalorder %v348, %v1650
      %vm1654 = vcmp.eq.s32.totalorder %v349, %v1650
      %vm1655 = vcmp.eq.s32.totalorder %v350, %v1650
      %vm1656 = vcmp.eq.s32.totalorder %v351, %v1650
      %vm1657 = vcmp.eq.s32.totalorder %v352, %v1650
      %vm1658 = vcmp.eq.s32.totalorder %v353, %v1650
      %vm1659 = vcmp.eq.s32.totalorder %v354, %v1650
      %vm1660 = vcmp.eq.s32.totalorder %v355, %v1650
      %vm1661 = vcmp.eq.s32.totalorder %v356, %v1650
      %vm1662 = vcmp.eq.s32.totalorder %v357, %v1650
      %vm1663 = vcmp.eq.s32.totalorder %v358, %v1650
      %vm1664 = vcmp.eq.s32.totalorder %v359, %v1650
      %vm1665 = vcmp.eq.s32.totalorder %v360, %v1650
      %vm1666 = vcmp.eq.s32.totalorder %v361, %v1650
      %vm1667 = vcmp.eq.s32.totalorder %v362, %v1650
      %vm1668 = vcmp.eq.s32.totalorder %v363, %v1650
      %vm1669 = vcmp.eq.s32.totalorder %v364, %v1650
      %vm1670 = vcmp.eq.s32.totalorder %v365, %v1650
      %vm1671 = vcmp.eq.s32.totalorder %v366, %v1650
      %vm1672 = vcmp.eq.s32.totalorder %v367, %v1650
      %vm1673 = vcmp.eq.s32.totalorder %v368, %v1650
      %vm1674 = vcmp.eq.s32.totalorder %v369, %v1650
      %vm1675 = vcmp.eq.s32.totalorder %v370, %v1650
      %vm1676 = vcmp.eq.s32.totalorder %v371, %v1650
      %vm1677 = vcmp.eq.s32.totalorder %v372, %v1650
      %vm1678 = vcmp.eq.s32.totalorder %v373, %v1650
      %vm1679 = vcmp.eq.s32.totalorder %v374, %v1650
      %vm1680 = vcmp.eq.s32.totalorder %v375, %v1650
      %vm1681 = vcmp.eq.s32.totalorder %v376, %v1650
      %vm1682 = vcmp.eq.s32.totalorder %v377, %v1650
      %v1683 = vsel %vm1651, 1.0, 0.0
      %v1684 = vsel %vm1652, 1.0, 0.0
      %v1685 = vsel %vm1653, 1.0, 0.0
      %v1686 = vsel %vm1654, 1.0, 0.0
      %v1687 = vsel %vm1655, 1.0, 0.0
      %v1688 = vsel %vm1656, 1.0, 0.0
      %v1689 = vsel %vm1657, 1.0, 0.0
      %v1690 = vsel %vm1658, 1.0, 0.0
      %v1691 = vsel %vm1659, 1.0, 0.0
      %v1692 = vsel %vm1660, 1.0, 0.0
      %v1693 = vsel %vm1661, 1.0, 0.0
      %v1694 = vsel %vm1662, 1.0, 0.0
      %v1695 = vsel %vm1663, 1.0, 0.0
      %v1696 = vsel %vm1664, 1.0, 0.0
      %v1697 = vsel %vm1665, 1.0, 0.0
      %v1698 = vsel %vm1666, 1.0, 0.0
      %v1699 = vsel %vm1667, 1.0, 0.0
      %v1700 = vsel %vm1668, 1.0, 0.0
      %v1701 = vsel %vm1669, 1.0, 0.0
      %v1702 = vsel %vm1670, 1.0, 0.0
      %v1703 = vsel %vm1671, 1.0, 0.0
      %v1704 = vsel %vm1672, 1.0, 0.0
      %v1705 = vsel %vm1673, 1.0, 0.0
      %v1706 = vsel %vm1674, 1.0, 0.0
      %v1707 = vsel %vm1675, 1.0, 0.0
      %v1708 = vsel %vm1676, 1.0, 0.0
      %v1709 = vsel %vm1677, 1.0, 0.0
      %v1710 = vsel %vm1678, 1.0, 0.0
      %v1711 = vsel %vm1679, 1.0, 0.0
      %v1712 = vsel %vm1680, 1.0, 0.0
      %v1713 = vsel %vm1681, 1.0, 0.0
      %v1714 = vsel %vm1682, 1.0, 0.0
      %v1715 = vperm.slane %v538, 2
      %vm1716 = vcmp.eq.s32.totalorder %v346, %v1715
      %vm1717 = vcmp.eq.s32.totalorder %v347, %v1715
      %vm1718 = vcmp.eq.s32.totalorder %v348, %v1715
      %vm1719 = vcmp.eq.s32.totalorder %v349, %v1715
      %vm1720 = vcmp.eq.s32.totalorder %v350, %v1715
      %vm1721 = vcmp.eq.s32.totalorder %v351, %v1715
      %vm1722 = vcmp.eq.s32.totalorder %v352, %v1715
      %vm1723 = vcmp.eq.s32.totalorder %v353, %v1715
      %vm1724 = vcmp.eq.s32.totalorder %v354, %v1715
      %vm1725 = vcmp.eq.s32.totalorder %v355, %v1715
      %vm1726 = vcmp.eq.s32.totalorder %v356, %v1715
      %vm1727 = vcmp.eq.s32.totalorder %v357, %v1715
      %vm1728 = vcmp.eq.s32.totalorder %v358, %v1715
      %vm1729 = vcmp.eq.s32.totalorder %v359, %v1715
      %vm1730 = vcmp.eq.s32.totalorder %v360, %v1715
      %vm1731 = vcmp.eq.s32.totalorder %v361, %v1715
      %v1732 = vsel %vm1716, 1.0, 0.0
      %v1733 = vsel %vm1717, 1.0, 0.0
      %v1734 = vsel %vm1718, 1.0, 0.0
      %v1735 = vsel %vm1719, 1.0, 0.0
      %v1736 = vsel %vm1720, 1.0, 0.0
      %v1737 = vsel %vm1721, 1.0, 0.0
      %v1738 = vsel %vm1722, 1.0, 0.0
      %v1739 = vsel %vm1723, 1.0, 0.0
      %v1740 = vsel %vm1724, 1.0, 0.0
      %v1741 = vsel %vm1725, 1.0, 0.0
      %v1742 = vsel %vm1726, 1.0, 0.0
      %v1743 = vsel %vm1727, 1.0, 0.0
      %v1744 = vsel %vm1728, 1.0, 0.0
      %v1745 = vsel %vm1729, 1.0, 0.0
      %v1746 = vsel %vm1730, 1.0, 0.0
      %v1747 = vsel %vm1731, 1.0, 0.0
      %1748 = vmatpush.msra.mxu0 %v1698
      %1749 = vmatpush.msra.mxu0 %v1697
      %1750 = vmatpush.msra.mxu0 %v1696
      %1751 = vmatpush.msra.mxu0 %v1695
      %1752 = vmatpush.msra.mxu0 %v1694
      %1753 = vmatpush.msra.mxu0 %v1693
      %1754 = vmatpush.msra.mxu0 %v1692
      %1755 = vmatpush.msra.mxu0 %v1691
      %1756 = vmatpush.msra.mxu0 %v1690
      %1757 = vmatpush.msra.mxu0 %v1689
      %1758 = vmatpush.msra.mxu0 %v1688
      %1759 = vmatpush.msra.mxu0 %v1687
      %1760 = vmatpush.msra.mxu0 %v1686
      %1761 = vmatpush.msra.mxu0 %v1685
      %1762 = vmatpush.msra.mxu0 %v1684
      %1763 = vmatpush.msra.mxu0 %v1683
      %1764 = vmatmul.f32.gmra.mxu0 %v249
      %v1765 = vpop.f32.mrf.mxu0
      %v1766 = vadd.f32 0.0, %v1765
      %1767 = vmatmul.f32.gmra.mxu0 %v251
      %v1768 = vpop.f32.mrf.mxu0
      %v1769 = vadd.f32 0.0, %v1768
      %1770 = vmatmul.f32.gmra.mxu0 %v253
      %v1771 = vpop.f32.mrf.mxu0
      %v1772 = vadd.f32 0.0, %v1771
      %1773 = vmatmul.f32.gmra.mxu0 %v255
      %v1774 = vpop.f32.mrf.mxu0
      %v1775 = vadd.f32 0.0, %v1774
      %1776 = vmatmul.f32.gmra.mxu0 %v257
      %v1777 = vpop.f32.mrf.mxu0
      %v1778 = vadd.f32 0.0, %v1777
      %1779 = vmatmul.f32.gmra.mxu0 %v259
      %v1780 = vpop.f32.mrf.mxu0
      %v1781 = vadd.f32 0.0, %v1780
      %1782 = vmatmul.f32.gmra.mxu0 %v261
      %v1783 = vpop.f32.mrf.mxu0
      %v1784 = vadd.f32 0.0, %v1783
      %1785 = vmatmul.f32.gmra.mxu0 %v263
      %v1786 = vpop.f32.mrf.mxu0
      %v1787 = vadd.f32 0.0, %v1786
      %1788 = vmatmul.f32.gmra.mxu0 %v265
      %v1789 = vpop.f32.mrf.mxu0
      %v1790 = vadd.f32 0.0, %v1789
      %1791 = vmatmul.f32.gmra.mxu0 %v267
      %v1792 = vpop.f32.mrf.mxu0
      %v1793 = vadd.f32 0.0, %v1792
      %1794 = vmatmul.f32.gmra.mxu0 %v269
      %v1795 = vpop.f32.mrf.mxu0
      %v1796 = vadd.f32 0.0, %v1795
      %1797 = vmatmul.f32.gmra.mxu0 %v271
      %v1798 = vpop.f32.mrf.mxu0
      %v1799 = vadd.f32 0.0, %v1798
      %1800 = vmatmul.f32.gmra.mxu0 %v273
      %v1801 = vpop.f32.mrf.mxu0
      %v1802 = vadd.f32 0.0, %v1801
      %1803 = vmatmul.f32.gmra.mxu0 %v275
      %v1804 = vpop.f32.mrf.mxu0
      %v1805 = vadd.f32 0.0, %v1804
      %1806 = vmatmul.f32.gmra.mxu0 %v277
      %v1807 = vpop.f32.mrf.mxu0
      %v1808 = vadd.f32 0.0, %v1807
      %1809 = vmatmul.f32.gmra.mxu0 %v279
      %v1810 = vpop.f32.mrf.mxu0
      %v1811 = vadd.f32 0.0, %v1810
      %1812 = vmatmul.f32.gmra.mxu0 %v281
      %v1813 = vpop.f32.mrf.mxu0
      %v1814 = vadd.f32 0.0, %v1813
      %1815 = vmatmul.f32.gmra.mxu0 %v283
      %v1816 = vpop.f32.mrf.mxu0
      %v1817 = vadd.f32 0.0, %v1816
      %1818 = vmatmul.f32.gmra.mxu0 %v285
      %v1819 = vpop.f32.mrf.mxu0
      %v1820 = vadd.f32 0.0, %v1819
      %1821 = vmatmul.f32.gmra.mxu0 %v287
      %v1822 = vpop.f32.mrf.mxu0
      %v1823 = vadd.f32 0.0, %v1822
      %1824 = vmatmul.f32.gmra.mxu0 %v289
      %v1825 = vpop.f32.mrf.mxu0
      %v1826 = vadd.f32 0.0, %v1825
      %1827 = vmatmul.f32.gmra.mxu0 %v291
      %v1828 = vpop.f32.mrf.mxu0
      %v1829 = vadd.f32 0.0, %v1828
      %1830 = vmatmul.f32.gmra.mxu0 %v293
      %v1831 = vpop.f32.mrf.mxu0
      %v1832 = vadd.f32 0.0, %v1831
      %1833 = vmatmul.f32.gmra.mxu0 %v295
      %v1834 = vpop.f32.mrf.mxu0
      %v1835 = vadd.f32 0.0, %v1834
      %1836 = vmatmul.f32.gmra.mxu0 %v297
      %v1837 = vpop.f32.mrf.mxu0
      %v1838 = vadd.f32 0.0, %v1837
      %1839 = vmatmul.f32.gmra.mxu0 %v299
      %v1840 = vpop.f32.mrf.mxu0
      %v1841 = vadd.f32 0.0, %v1840
      %1842 = vmatmul.f32.gmra.mxu0 %v301
      %v1843 = vpop.f32.mrf.mxu0
      %v1844 = vadd.f32 0.0, %v1843
      %1845 = vmatmul.f32.gmra.mxu0 %v303
      %v1846 = vpop.f32.mrf.mxu0
      %v1847 = vadd.f32 0.0, %v1846
      %1848 = vmatmul.f32.gmra.mxu0 %v305
      %v1849 = vpop.f32.mrf.mxu0
      %v1850 = vadd.f32 0.0, %v1849
      %1851 = vmatmul.f32.gmra.mxu0 %v307
      %v1852 = vpop.f32.mrf.mxu0
      %v1853 = vadd.f32 0.0, %v1852
      %1854 = vmatmul.f32.gmra.mxu0 %v309
      %v1855 = vpop.f32.mrf.mxu0
      %v1856 = vadd.f32 0.0, %v1855
      %1857 = vmatmul.f32.gmra.mxu0 %v311
      %v1858 = vpop.f32.mrf.mxu0
      %v1859 = vadd.f32 0.0, %v1858
      %1860 = vmatmul.f32.gmra.mxu0 %v313
      %v1861 = vpop.f32.mrf.mxu0
      %v1862 = vadd.f32 0.0, %v1861
      %1863 = vmatmul.f32.gmra.mxu0 %v315
      %v1864 = vpop.f32.mrf.mxu0
      %v1865 = vadd.f32 0.0, %v1864
      %1866 = vmatmul.f32.gmra.mxu0 %v317
      %v1867 = vpop.f32.mrf.mxu0
      %v1868 = vadd.f32 0.0, %v1867
      %1869 = vmatmul.f32.gmra.mxu0 %v319
      %v1870 = vpop.f32.mrf.mxu0
      %v1871 = vadd.f32 0.0, %v1870
      %1872 = vmatmul.f32.gmra.mxu0 %v321
      %v1873 = vpop.f32.mrf.mxu0
      %v1874 = vadd.f32 0.0, %v1873
      %1875 = vmatmul.f32.gmra.mxu0 %v323
      %v1876 = vpop.f32.mrf.mxu0
      %v1877 = vadd.f32 0.0, %v1876
      %1878 = vmatmul.f32.gmra.mxu0 %v325
      %v1879 = vpop.f32.mrf.mxu0
      %v1880 = vadd.f32 0.0, %v1879
      %1881 = vmatmul.f32.gmra.mxu0 %v327
      %v1882 = vpop.f32.mrf.mxu0
      %v1883 = vadd.f32 0.0, %v1882
      %1884 = vmatmul.f32.gmra.mxu0 %v329
      %v1885 = vpop.f32.mrf.mxu0
      %v1886 = vadd.f32 0.0, %v1885
      %1887 = vmatmul.f32.gmra.mxu0 %v331
      %v1888 = vpop.f32.mrf.mxu0
      %v1889 = vadd.f32 0.0, %v1888
      %1890 = vmatmul.f32.gmra.mxu0 %v333
      %v1891 = vpop.f32.mrf.mxu0
      %v1892 = vadd.f32 0.0, %v1891
      %1893 = vmatmul.f32.gmra.mxu0 %v335
      %v1894 = vpop.f32.mrf.mxu0
      %v1895 = vadd.f32 0.0, %v1894
      %1896 = vmatmul.f32.gmra.mxu0 %v337
      %v1897 = vpop.f32.mrf.mxu0
      %v1898 = vadd.f32 0.0, %v1897
      %1899 = vmatmul.f32.gmra.mxu0 %v339
      %v1900 = vpop.f32.mrf.mxu0
      %v1901 = vadd.f32 0.0, %v1900
      %1902 = vmatmul.f32.gmra.mxu0 %v341
      %v1903 = vpop.f32.mrf.mxu0
      %v1904 = vadd.f32 0.0, %v1903
      %1905 = vmatmul.f32.gmra.mxu0 %v343
      %v1906 = vpop.f32.mrf.mxu0
      %v1907 = vadd.f32 0.0, %v1906
      %1908 = vdwg.mxu0
      %1909 = vmatpush.msra.mxu0 %v1714
      %1910 = vmatpush.msra.mxu0 %v1713
      %1911 = vmatpush.msra.mxu0 %v1712
      %1912 = vmatpush.msra.mxu0 %v1711
      %1913 = vmatpush.msra.mxu0 %v1710
      %1914 = vmatpush.msra.mxu0 %v1709
      %1915 = vmatpush.msra.mxu0 %v1708
      %1916 = vmatpush.msra.mxu0 %v1707
      %1917 = vmatpush.msra.mxu0 %v1706
      %1918 = vmatpush.msra.mxu0 %v1705
      %1919 = vmatpush.msra.mxu0 %v1704
      %1920 = vmatpush.msra.mxu0 %v1703
      %1921 = vmatpush.msra.mxu0 %v1702
      %1922 = vmatpush.msra.mxu0 %v1701
      %1923 = vmatpush.msra.mxu0 %v1700
      %1924 = vmatpush.msra.mxu0 %v1699
      %1925 = vmatmul.f32.gmra.mxu0 %v250
      %v1926 = vpop.f32.mrf.mxu0
      %v1927 = vadd.f32 %v1766, %v1926
      %1928 = vmatmul.f32.gmra.mxu0 %v252
      %v1929 = vpop.f32.mrf.mxu0
      %v1930 = vadd.f32 %v1769, %v1929
      %1931 = vmatmul.f32.gmra.mxu0 %v254
      %v1932 = vpop.f32.mrf.mxu0
      %v1933 = vadd.f32 %v1772, %v1932
      %1934 = vmatmul.f32.gmra.mxu0 %v256
      %v1935 = vpop.f32.mrf.mxu0
      %v1936 = vadd.f32 %v1775, %v1935
      %1937 = vmatmul.f32.gmra.mxu0 %v258
      %v1938 = vpop.f32.mrf.mxu0
      %v1939 = vadd.f32 %v1778, %v1938
      %1940 = vmatmul.f32.gmra.mxu0 %v260
      %v1941 = vpop.f32.mrf.mxu0
      %v1942 = vadd.f32 %v1781, %v1941
      %1943 = vmatmul.f32.gmra.mxu0 %v262
      %v1944 = vpop.f32.mrf.mxu0
      %v1945 = vadd.f32 %v1784, %v1944
      %1946 = vmatmul.f32.gmra.mxu0 %v264
      %v1947 = vpop.f32.mrf.mxu0
      %v1948 = vadd.f32 %v1787, %v1947
      %1949 = vmatmul.f32.gmra.mxu0 %v266
      %v1950 = vpop.f32.mrf.mxu0
      %v1951 = vadd.f32 %v1790, %v1950
      %1952 = vmatmul.f32.gmra.mxu0 %v268
      %v1953 = vpop.f32.mrf.mxu0
      %v1954 = vadd.f32 %v1793, %v1953
      %1955 = vmatmul.f32.gmra.mxu0 %v270
      %v1956 = vpop.f32.mrf.mxu0
      %v1957 = vadd.f32 %v1796, %v1956
      %1958 = vmatmul.f32.gmra.mxu0 %v272
      %v1959 = vpop.f32.mrf.mxu0
      %v1960 = vadd.f32 %v1799, %v1959
      %1961 = vmatmul.f32.gmra.mxu0 %v274
      %v1962 = vpop.f32.mrf.mxu0
      %v1963 = vadd.f32 %v1802, %v1962
      %1964 = vmatmul.f32.gmra.mxu0 %v276
      %v1965 = vpop.f32.mrf.mxu0
      %v1966 = vadd.f32 %v1805, %v1965
      %1967 = vmatmul.f32.gmra.mxu0 %v278
      %v1968 = vpop.f32.mrf.mxu0
      %v1969 = vadd.f32 %v1808, %v1968
      %1970 = vmatmul.f32.gmra.mxu0 %v280
      %v1971 = vpop.f32.mrf.mxu0
      %v1972 = vadd.f32 %v1811, %v1971
      %1973 = vmatmul.f32.gmra.mxu0 %v282
      %v1974 = vpop.f32.mrf.mxu0
      %v1975 = vadd.f32 %v1814, %v1974
      %1976 = vmatmul.f32.gmra.mxu0 %v284
      %v1977 = vpop.f32.mrf.mxu0
      %v1978 = vadd.f32 %v1817, %v1977
      %1979 = vmatmul.f32.gmra.mxu0 %v286
      %v1980 = vpop.f32.mrf.mxu0
      %v1981 = vadd.f32 %v1820, %v1980
      %1982 = vmatmul.f32.gmra.mxu0 %v288
      %v1983 = vpop.f32.mrf.mxu0
      %v1984 = vadd.f32 %v1823, %v1983
      %1985 = vmatmul.f32.gmra.mxu0 %v290
      %v1986 = vpop.f32.mrf.mxu0
      %v1987 = vadd.f32 %v1826, %v1986
      %1988 = vmatmul.f32.gmra.mxu0 %v292
      %v1989 = vpop.f32.mrf.mxu0
      %v1990 = vadd.f32 %v1829, %v1989
      %1991 = vmatmul.f32.gmra.mxu0 %v294
      %v1992 = vpop.f32.mrf.mxu0
      %v1993 = vadd.f32 %v1832, %v1992
      %1994 = vmatmul.f32.gmra.mxu0 %v296
      %v1995 = vpop.f32.mrf.mxu0
      %v1996 = vadd.f32 %v1835, %v1995
      %1997 = vmatmul.f32.gmra.mxu0 %v298
      %v1998 = vpop.f32.mrf.mxu0
      %v1999 = vadd.f32 %v1838, %v1998
      %2000 = vmatmul.f32.gmra.mxu0 %v300
      %v2001 = vpop.f32.mrf.mxu0
      %v2002 = vadd.f32 %v1841, %v2001
      %2003 = vmatmul.f32.gmra.mxu0 %v302
      %v2004 = vpop.f32.mrf.mxu0
      %v2005 = vadd.f32 %v1844, %v2004
      %2006 = vmatmul.f32.gmra.mxu0 %v304
      %v2007 = vpop.f32.mrf.mxu0
      %v2008 = vadd.f32 %v1847, %v2007
      %2009 = vmatmul.f32.gmra.mxu0 %v306
      %v2010 = vpop.f32.mrf.mxu0
      %v2011 = vadd.f32 %v1850, %v2010
      %2012 = vmatmul.f32.gmra.mxu0 %v308
      %v2013 = vpop.f32.mrf.mxu0
      %v2014 = vadd.f32 %v1853, %v2013
      %2015 = vmatmul.f32.gmra.mxu0 %v310
      %v2016 = vpop.f32.mrf.mxu0
      %v2017 = vadd.f32 %v1856, %v2016
      %2018 = vmatmul.f32.gmra.mxu0 %v312
      %v2019 = vpop.f32.mrf.mxu0
      %v2020 = vadd.f32 %v1859, %v2019
      %2021 = vmatmul.f32.gmra.mxu0 %v314
      %v2022 = vpop.f32.mrf.mxu0
      %v2023 = vadd.f32 %v1862, %v2022
      %2024 = vmatmul.f32.gmra.mxu0 %v316
      %v2025 = vpop.f32.mrf.mxu0
      %v2026 = vadd.f32 %v1865, %v2025
      %2027 = vmatmul.f32.gmra.mxu0 %v318
      %v2028 = vpop.f32.mrf.mxu0
      %v2029 = vadd.f32 %v1868, %v2028
      %2030 = vmatmul.f32.gmra.mxu0 %v320
      %v2031 = vpop.f32.mrf.mxu0
      %v2032 = vadd.f32 %v1871, %v2031
      %2033 = vmatmul.f32.gmra.mxu0 %v322
      %v2034 = vpop.f32.mrf.mxu0
      %v2035 = vadd.f32 %v1874, %v2034
      %2036 = vmatmul.f32.gmra.mxu0 %v324
      %v2037 = vpop.f32.mrf.mxu0
      %v2038 = vadd.f32 %v1877, %v2037
      %2039 = vmatmul.f32.gmra.mxu0 %v326
      %v2040 = vpop.f32.mrf.mxu0
      %v2041 = vadd.f32 %v1880, %v2040
      %2042 = vmatmul.f32.gmra.mxu0 %v328
      %v2043 = vpop.f32.mrf.mxu0
      %v2044 = vadd.f32 %v1883, %v2043
      %2045 = vmatmul.f32.gmra.mxu0 %v330
      %v2046 = vpop.f32.mrf.mxu0
      %v2047 = vadd.f32 %v1886, %v2046
      %2048 = vmatmul.f32.gmra.mxu0 %v332
      %v2049 = vpop.f32.mrf.mxu0
      %v2050 = vadd.f32 %v1889, %v2049
      %2051 = vmatmul.f32.gmra.mxu0 %v334
      %v2052 = vpop.f32.mrf.mxu0
      %v2053 = vadd.f32 %v1892, %v2052
      %2054 = vmatmul.f32.gmra.mxu0 %v336
      %v2055 = vpop.f32.mrf.mxu0
      %v2056 = vadd.f32 %v1895, %v2055
      %2057 = vmatmul.f32.gmra.mxu0 %v338
      %v2058 = vpop.f32.mrf.mxu0
      %v2059 = vadd.f32 %v1898, %v2058
      %2060 = vmatmul.f32.gmra.mxu0 %v340
      %v2061 = vpop.f32.mrf.mxu0
      %v2062 = vadd.f32 %v1901, %v2061
      %2063 = vmatmul.f32.gmra.mxu0 %v342
      %v2064 = vpop.f32.mrf.mxu0
      %v2065 = vadd.f32 %v1904, %v2064
      %2066 = vmatmul.f32.gmra.mxu0 %v344
      %v2067 = vpop.f32.mrf.mxu0
      %v2068 = vadd.f32 %v1907, %v2067
      %2069 = vdwg.mxu0
      %v2070 = vmul.f32 %v1927, %v1732
      %v2071 = vmul.f32 %v1930, %v1733
      %v2072 = vmul.f32 %v1933, %v1734
      %v2073 = vmul.f32 %v1936, %v1735
      %v2074 = vmul.f32 %v1939, %v1736
      %v2075 = vmul.f32 %v1942, %v1737
      %v2076 = vmul.f32 %v1945, %v1738
      %v2077 = vmul.f32 %v1948, %v1739
      %v2078 = vmul.f32 %v1951, %v1740
      %v2079 = vmul.f32 %v1954, %v1741
      %v2080 = vmul.f32 %v1957, %v1742
      %v2081 = vmul.f32 %v1960, %v1743
      %v2082 = vmul.f32 %v1963, %v1744
      %v2083 = vmul.f32 %v1966, %v1745
      %v2084 = vmul.f32 %v1969, %v1746
      %v2085 = vmul.f32 %v1972, %v1747
      %v2086 = vadd.f32 %v2070, %v2071
      %v2087 = vadd.f32 %v2086, %v2072
      %v2088 = vadd.f32 %v2087, %v2073
      %v2089 = vadd.f32 %v2088, %v2074
      %v2090 = vadd.f32 %v2089, %v2075
      %v2091 = vadd.f32 %v2090, %v2076
      %v2092 = vadd.f32 %v2091, %v2077
      %v2093 = vadd.f32 %v2092, %v2078
      %v2094 = vadd.f32 %v2093, %v2079
      %v2095 = vadd.f32 %v2094, %v2080
      %v2096 = vadd.f32 %v2095, %v2081
      %v2097 = vadd.f32 %v2096, %v2082
      %v2098 = vadd.f32 %v2097, %v2083
      %v2099 = vadd.f32 %v2098, %v2084
      %v2100 = vadd.f32 %v2099, %v2085
      %v2101 = vrot.slane %v2100, 4
      %v2102 = vadd.f32 %v2100, %v2101
      %v2103 = vrot.slane %v2102, 2
      %v2104 = vadd.f32 %v2102, %v2103
      %v2105 = vrot.slane %v2104, 1
      %v2106 = vadd.f32 %v2104, %v2105
      %v2107 = vsub.f32 %v2106, %v424
      %v2108 = vmul.f32 %v2107, %v2107
      %v2109 = vadd.f32 %v2108, 0.0
      %v2110 = vmul.f32 %v1975, %v1732
      %v2111 = vmul.f32 %v1978, %v1733
      %v2112 = vmul.f32 %v1981, %v1734
      %v2113 = vmul.f32 %v1984, %v1735
      %v2114 = vmul.f32 %v1987, %v1736
      %v2115 = vmul.f32 %v1990, %v1737
      %v2116 = vmul.f32 %v1993, %v1738
      %v2117 = vmul.f32 %v1996, %v1739
      %v2118 = vmul.f32 %v1999, %v1740
      %v2119 = vmul.f32 %v2002, %v1741
      %v2120 = vmul.f32 %v2005, %v1742
      %v2121 = vmul.f32 %v2008, %v1743
      %v2122 = vmul.f32 %v2011, %v1744
      %v2123 = vmul.f32 %v2014, %v1745
      %v2124 = vmul.f32 %v2017, %v1746
      %v2125 = vmul.f32 %v2020, %v1747
      %v2126 = vadd.f32 %v2110, %v2111
      %v2127 = vadd.f32 %v2126, %v2112
      %v2128 = vadd.f32 %v2127, %v2113
      %v2129 = vadd.f32 %v2128, %v2114
      %v2130 = vadd.f32 %v2129, %v2115
      %v2131 = vadd.f32 %v2130, %v2116
      %v2132 = vadd.f32 %v2131, %v2117
      %v2133 = vadd.f32 %v2132, %v2118
      %v2134 = vadd.f32 %v2133, %v2119
      %v2135 = vadd.f32 %v2134, %v2120
      %v2136 = vadd.f32 %v2135, %v2121
      %v2137 = vadd.f32 %v2136, %v2122
      %v2138 = vadd.f32 %v2137, %v2123
      %v2139 = vadd.f32 %v2138, %v2124
      %v2140 = vadd.f32 %v2139, %v2125
      %v2141 = vrot.slane %v2140, 4
      %v2142 = vadd.f32 %v2140, %v2141
      %v2143 = vrot.slane %v2142, 2
      %v2144 = vadd.f32 %v2142, %v2143
      %v2145 = vrot.slane %v2144, 1
      %v2146 = vadd.f32 %v2144, %v2145
      %v2147 = vsub.f32 %v2146, %v426
      %v2148 = vmul.f32 %v2147, %v2147
      %v2149 = vadd.f32 %v2109, %v2148
      %v2150 = vmul.f32 %v2023, %v1732
      %v2151 = vmul.f32 %v2026, %v1733
      %v2152 = vmul.f32 %v2029, %v1734
      %v2153 = vmul.f32 %v2032, %v1735
      %v2154 = vmul.f32 %v2035, %v1736
      %v2155 = vmul.f32 %v2038, %v1737
      %v2156 = vmul.f32 %v2041, %v1738
      %v2157 = vmul.f32 %v2044, %v1739
      %v2158 = vmul.f32 %v2047, %v1740
      %v2159 = vmul.f32 %v2050, %v1741
      %v2160 = vmul.f32 %v2053, %v1742
      %v2161 = vmul.f32 %v2056, %v1743
      %v2162 = vmul.f32 %v2059, %v1744
      %v2163 = vmul.f32 %v2062, %v1745
      %v2164 = vmul.f32 %v2065, %v1746
      %v2165 = vmul.f32 %v2068, %v1747
      %v2166 = vadd.f32 %v2150, %v2151
      %v2167 = vadd.f32 %v2166, %v2152
      %v2168 = vadd.f32 %v2167, %v2153
      %v2169 = vadd.f32 %v2168, %v2154
      %v2170 = vadd.f32 %v2169, %v2155
      %v2171 = vadd.f32 %v2170, %v2156
      %v2172 = vadd.f32 %v2171, %v2157
      %v2173 = vadd.f32 %v2172, %v2158
      %v2174 = vadd.f32 %v2173, %v2159
      %v2175 = vadd.f32 %v2174, %v2160
      %v2176 = vadd.f32 %v2175, %v2161
      %v2177 = vadd.f32 %v2176, %v2162
      %v2178 = vadd.f32 %v2177, %v2163
      %v2179 = vadd.f32 %v2178, %v2164
      %v2180 = vadd.f32 %v2179, %v2165
      %v2181 = vrot.slane %v2180, 4
      %v2182 = vadd.f32 %v2180, %v2181
      %v2183 = vrot.slane %v2182, 2
      %v2184 = vadd.f32 %v2182, %v2183
      %v2185 = vrot.slane %v2184, 1
      %v2186 = vadd.f32 %v2184, %v2185
      %v2187 = vsub.f32 %v2186, %v428
      %v2188 = vmul.f32 %v2187, %v2187
      %v2189 = vadd.f32 %v2149, %v2188
      %v2190 = vrsqrt.pop %v2189
      %v2191 = vmul.f32 %v2190, %v2189
      %v2192 = vmul.f32 %v2191, %v2190
      %v2193 = vmul.f32 0.5, %v2192
      %v2194 = vsub.f32 1.5, %v2193
      %v2195 = vmul.f32 %v2190, %v2194
      %v2196 = vmul.f32 %v2189, %v2195
      %vm2197 = vcmp.eq.f32.partialorder %v2189, inf
      %v2198 = vsel %vm2197, %v2189, %v2196
      %vm2199 = vcmp.eq.f32.partialorder %v2189, 0.0
      %v2200 = vand.u32 %v2189, 2147483648
      %v2201 = vsel %vm2199, %v2200, %v2198
      %v2202 = vsel %vm248, %v2201, 0.0
      %v2204 = vrot.slane %v2202, 2
      %v2206 = vadd.f32 %v1649, %v2204
      %v2207 = vmul.f32 %v490, 16.0
      %v2208 = vadd.f32 %v2207, 16.0
      %v2209 = vfloor.f32 %v2208
      %v2210 = vmax.f32 %v2209, 0.0
      %v2211 = vmin.f32 %v2210, 31.0
      %v2212 = vcvt.f32.s32.to.zero.pseudo %v2211
      %v2213 = vmul.f32 %v503, 16.0
      %v2214 = vadd.f32 %v2213, 16.0
      %v2215 = vfloor.f32 %v2214
      %v2216 = vmax.f32 %v2215, 0.0
      %v2217 = vmin.f32 %v2216, 31.0
      %v2218 = vcvt.f32.s32.to.zero.pseudo %v2217
      %v2219 = vmul.f32 %v514, 16.0
      %v2220 = vadd.f32 %v2219, 16.0
      %v2221 = vfloor.f32 %v2220
      %v2222 = vmax.f32 %v2221, 0.0
      %v2223 = vmin.f32 %v2222, 31.0
      %v2224 = vcvt.f32.s32.to.zero.pseudo %v2223
      %v2225 = vmul.u32 %v2212, 1024
      %v2226 = vmul.u32 %v2218, 32
      %v2227 = vadd.s32 %v2225, %v2226
      %v2228 = vadd.s32 %v2227, %v2224
      %v2229 = vshra.s32 %v2228, 7
      %v2230 = vand.u32 %v2228, 127
      %v2231 = vperm.slane %v2229, 0
      %vm2232 = vcmp.eq.s32.totalorder %v346, %v2231
      %vm2233 = vcmp.eq.s32.totalorder %v347, %v2231
      %vm2234 = vcmp.eq.s32.totalorder %v348, %v2231
      %vm2235 = vcmp.eq.s32.totalorder %v349, %v2231
      %vm2236 = vcmp.eq.s32.totalorder %v350, %v2231
      %vm2237 = vcmp.eq.s32.totalorder %v351, %v2231
      %vm2238 = vcmp.eq.s32.totalorder %v352, %v2231
      %vm2239 = vcmp.eq.s32.totalorder %v353, %v2231
      %vm2240 = vcmp.eq.s32.totalorder %v354, %v2231
      %vm2241 = vcmp.eq.s32.totalorder %v355, %v2231
      %vm2242 = vcmp.eq.s32.totalorder %v356, %v2231
      %vm2243 = vcmp.eq.s32.totalorder %v357, %v2231
      %vm2244 = vcmp.eq.s32.totalorder %v358, %v2231
      %vm2245 = vcmp.eq.s32.totalorder %v359, %v2231
      %vm2246 = vcmp.eq.s32.totalorder %v360, %v2231
      %vm2247 = vcmp.eq.s32.totalorder %v361, %v2231
      %vm2248 = vcmp.eq.s32.totalorder %v362, %v2231
      %vm2249 = vcmp.eq.s32.totalorder %v363, %v2231
      %vm2250 = vcmp.eq.s32.totalorder %v364, %v2231
      %vm2251 = vcmp.eq.s32.totalorder %v365, %v2231
      %vm2252 = vcmp.eq.s32.totalorder %v366, %v2231
      %vm2253 = vcmp.eq.s32.totalorder %v367, %v2231
      %vm2254 = vcmp.eq.s32.totalorder %v368, %v2231
      %vm2255 = vcmp.eq.s32.totalorder %v369, %v2231
      %vm2256 = vcmp.eq.s32.totalorder %v370, %v2231
      %vm2257 = vcmp.eq.s32.totalorder %v371, %v2231
      %vm2258 = vcmp.eq.s32.totalorder %v372, %v2231
      %vm2259 = vcmp.eq.s32.totalorder %v373, %v2231
      %vm2260 = vcmp.eq.s32.totalorder %v374, %v2231
      %vm2261 = vcmp.eq.s32.totalorder %v375, %v2231
      %vm2262 = vcmp.eq.s32.totalorder %v376, %v2231
      %vm2263 = vcmp.eq.s32.totalorder %v377, %v2231
      %v2264 = vsel %vm2232, 1.0, 0.0
      %v2265 = vsel %vm2233, 1.0, 0.0
      %v2266 = vsel %vm2234, 1.0, 0.0
      %v2267 = vsel %vm2235, 1.0, 0.0
      %v2268 = vsel %vm2236, 1.0, 0.0
      %v2269 = vsel %vm2237, 1.0, 0.0
      %v2270 = vsel %vm2238, 1.0, 0.0
      %v2271 = vsel %vm2239, 1.0, 0.0
      %v2272 = vsel %vm2240, 1.0, 0.0
      %v2273 = vsel %vm2241, 1.0, 0.0
      %v2274 = vsel %vm2242, 1.0, 0.0
      %v2275 = vsel %vm2243, 1.0, 0.0
      %v2276 = vsel %vm2244, 1.0, 0.0
      %v2277 = vsel %vm2245, 1.0, 0.0
      %v2278 = vsel %vm2246, 1.0, 0.0
      %v2279 = vsel %vm2247, 1.0, 0.0
      %v2280 = vsel %vm2248, 1.0, 0.0
      %v2281 = vsel %vm2249, 1.0, 0.0
      %v2282 = vsel %vm2250, 1.0, 0.0
      %v2283 = vsel %vm2251, 1.0, 0.0
      %v2284 = vsel %vm2252, 1.0, 0.0
      %v2285 = vsel %vm2253, 1.0, 0.0
      %v2286 = vsel %vm2254, 1.0, 0.0
      %v2287 = vsel %vm2255, 1.0, 0.0
      %v2288 = vsel %vm2256, 1.0, 0.0
      %v2289 = vsel %vm2257, 1.0, 0.0
      %v2290 = vsel %vm2258, 1.0, 0.0
      %v2291 = vsel %vm2259, 1.0, 0.0
      %v2292 = vsel %vm2260, 1.0, 0.0
      %v2293 = vsel %vm2261, 1.0, 0.0
      %v2294 = vsel %vm2262, 1.0, 0.0
      %v2295 = vsel %vm2263, 1.0, 0.0
      %v2296 = vperm.slane %v2230, 0
      %vm2297 = vcmp.eq.s32.totalorder %v346, %v2296
      %vm2298 = vcmp.eq.s32.totalorder %v347, %v2296
      %vm2299 = vcmp.eq.s32.totalorder %v348, %v2296
      %vm2300 = vcmp.eq.s32.totalorder %v349, %v2296
      %vm2301 = vcmp.eq.s32.totalorder %v350, %v2296
      %vm2302 = vcmp.eq.s32.totalorder %v351, %v2296
      %vm2303 = vcmp.eq.s32.totalorder %v352, %v2296
      %vm2304 = vcmp.eq.s32.totalorder %v353, %v2296
      %vm2305 = vcmp.eq.s32.totalorder %v354, %v2296
      %vm2306 = vcmp.eq.s32.totalorder %v355, %v2296
      %vm2307 = vcmp.eq.s32.totalorder %v356, %v2296
      %vm2308 = vcmp.eq.s32.totalorder %v357, %v2296
      %vm2309 = vcmp.eq.s32.totalorder %v358, %v2296
      %vm2310 = vcmp.eq.s32.totalorder %v359, %v2296
      %vm2311 = vcmp.eq.s32.totalorder %v360, %v2296
      %vm2312 = vcmp.eq.s32.totalorder %v361, %v2296
      %v2313 = vsel %vm2297, 1.0, 0.0
      %v2314 = vsel %vm2298, 1.0, 0.0
      %v2315 = vsel %vm2299, 1.0, 0.0
      %v2316 = vsel %vm2300, 1.0, 0.0
      %v2317 = vsel %vm2301, 1.0, 0.0
      %v2318 = vsel %vm2302, 1.0, 0.0
      %v2319 = vsel %vm2303, 1.0, 0.0
      %v2320 = vsel %vm2304, 1.0, 0.0
      %v2321 = vsel %vm2305, 1.0, 0.0
      %v2322 = vsel %vm2306, 1.0, 0.0
      %v2323 = vsel %vm2307, 1.0, 0.0
      %v2324 = vsel %vm2308, 1.0, 0.0
      %v2325 = vsel %vm2309, 1.0, 0.0
      %v2326 = vsel %vm2310, 1.0, 0.0
      %v2327 = vsel %vm2311, 1.0, 0.0
      %v2328 = vsel %vm2312, 1.0, 0.0
      %2329 = vmatpush.msra.mxu0 %v2279
      %2330 = vmatpush.msra.mxu0 %v2278
      %2331 = vmatpush.msra.mxu0 %v2277
      %2332 = vmatpush.msra.mxu0 %v2276
      %2333 = vmatpush.msra.mxu0 %v2275
      %2334 = vmatpush.msra.mxu0 %v2274
      %2335 = vmatpush.msra.mxu0 %v2273
      %2336 = vmatpush.msra.mxu0 %v2272
      %2337 = vmatpush.msra.mxu0 %v2271
      %2338 = vmatpush.msra.mxu0 %v2270
      %2339 = vmatpush.msra.mxu0 %v2269
      %2340 = vmatpush.msra.mxu0 %v2268
      %2341 = vmatpush.msra.mxu0 %v2267
      %2342 = vmatpush.msra.mxu0 %v2266
      %2343 = vmatpush.msra.mxu0 %v2265
      %2344 = vmatpush.msra.mxu0 %v2264
      %2345 = vmatmul.f32.gmra.mxu0 %v249
      %v2346 = vpop.f32.mrf.mxu0
      %v2347 = vadd.f32 0.0, %v2346
      %2348 = vmatmul.f32.gmra.mxu0 %v251
      %v2349 = vpop.f32.mrf.mxu0
      %v2350 = vadd.f32 0.0, %v2349
      %2351 = vmatmul.f32.gmra.mxu0 %v253
      %v2352 = vpop.f32.mrf.mxu0
      %v2353 = vadd.f32 0.0, %v2352
      %2354 = vmatmul.f32.gmra.mxu0 %v255
      %v2355 = vpop.f32.mrf.mxu0
      %v2356 = vadd.f32 0.0, %v2355
      %2357 = vmatmul.f32.gmra.mxu0 %v257
      %v2358 = vpop.f32.mrf.mxu0
      %v2359 = vadd.f32 0.0, %v2358
      %2360 = vmatmul.f32.gmra.mxu0 %v259
      %v2361 = vpop.f32.mrf.mxu0
      %v2362 = vadd.f32 0.0, %v2361
      %2363 = vmatmul.f32.gmra.mxu0 %v261
      %v2364 = vpop.f32.mrf.mxu0
      %v2365 = vadd.f32 0.0, %v2364
      %2366 = vmatmul.f32.gmra.mxu0 %v263
      %v2367 = vpop.f32.mrf.mxu0
      %v2368 = vadd.f32 0.0, %v2367
      %2369 = vmatmul.f32.gmra.mxu0 %v265
      %v2370 = vpop.f32.mrf.mxu0
      %v2371 = vadd.f32 0.0, %v2370
      %2372 = vmatmul.f32.gmra.mxu0 %v267
      %v2373 = vpop.f32.mrf.mxu0
      %v2374 = vadd.f32 0.0, %v2373
      %2375 = vmatmul.f32.gmra.mxu0 %v269
      %v2376 = vpop.f32.mrf.mxu0
      %v2377 = vadd.f32 0.0, %v2376
      %2378 = vmatmul.f32.gmra.mxu0 %v271
      %v2379 = vpop.f32.mrf.mxu0
      %v2380 = vadd.f32 0.0, %v2379
      %2381 = vmatmul.f32.gmra.mxu0 %v273
      %v2382 = vpop.f32.mrf.mxu0
      %v2383 = vadd.f32 0.0, %v2382
      %2384 = vmatmul.f32.gmra.mxu0 %v275
      %v2385 = vpop.f32.mrf.mxu0
      %v2386 = vadd.f32 0.0, %v2385
      %2387 = vmatmul.f32.gmra.mxu0 %v277
      %v2388 = vpop.f32.mrf.mxu0
      %v2389 = vadd.f32 0.0, %v2388
      %2390 = vmatmul.f32.gmra.mxu0 %v279
      %v2391 = vpop.f32.mrf.mxu0
      %v2392 = vadd.f32 0.0, %v2391
      %2393 = vmatmul.f32.gmra.mxu0 %v281
      %v2394 = vpop.f32.mrf.mxu0
      %v2395 = vadd.f32 0.0, %v2394
      %2396 = vmatmul.f32.gmra.mxu0 %v283
      %v2397 = vpop.f32.mrf.mxu0
      %v2398 = vadd.f32 0.0, %v2397
      %2399 = vmatmul.f32.gmra.mxu0 %v285
      %v2400 = vpop.f32.mrf.mxu0
      %v2401 = vadd.f32 0.0, %v2400
      %2402 = vmatmul.f32.gmra.mxu0 %v287
      %v2403 = vpop.f32.mrf.mxu0
      %v2404 = vadd.f32 0.0, %v2403
      %2405 = vmatmul.f32.gmra.mxu0 %v289
      %v2406 = vpop.f32.mrf.mxu0
      %v2407 = vadd.f32 0.0, %v2406
      %2408 = vmatmul.f32.gmra.mxu0 %v291
      %v2409 = vpop.f32.mrf.mxu0
      %v2410 = vadd.f32 0.0, %v2409
      %2411 = vmatmul.f32.gmra.mxu0 %v293
      %v2412 = vpop.f32.mrf.mxu0
      %v2413 = vadd.f32 0.0, %v2412
      %2414 = vmatmul.f32.gmra.mxu0 %v295
      %v2415 = vpop.f32.mrf.mxu0
      %v2416 = vadd.f32 0.0, %v2415
      %2417 = vmatmul.f32.gmra.mxu0 %v297
      %v2418 = vpop.f32.mrf.mxu0
      %v2419 = vadd.f32 0.0, %v2418
      %2420 = vmatmul.f32.gmra.mxu0 %v299
      %v2421 = vpop.f32.mrf.mxu0
      %v2422 = vadd.f32 0.0, %v2421
      %2423 = vmatmul.f32.gmra.mxu0 %v301
      %v2424 = vpop.f32.mrf.mxu0
      %v2425 = vadd.f32 0.0, %v2424
      %2426 = vmatmul.f32.gmra.mxu0 %v303
      %v2427 = vpop.f32.mrf.mxu0
      %v2428 = vadd.f32 0.0, %v2427
      %2429 = vmatmul.f32.gmra.mxu0 %v305
      %v2430 = vpop.f32.mrf.mxu0
      %v2431 = vadd.f32 0.0, %v2430
      %2432 = vmatmul.f32.gmra.mxu0 %v307
      %v2433 = vpop.f32.mrf.mxu0
      %v2434 = vadd.f32 0.0, %v2433
      %2435 = vmatmul.f32.gmra.mxu0 %v309
      %v2436 = vpop.f32.mrf.mxu0
      %v2437 = vadd.f32 0.0, %v2436
      %2438 = vmatmul.f32.gmra.mxu0 %v311
      %v2439 = vpop.f32.mrf.mxu0
      %v2440 = vadd.f32 0.0, %v2439
      %2441 = vmatmul.f32.gmra.mxu0 %v313
      %v2442 = vpop.f32.mrf.mxu0
      %v2443 = vadd.f32 0.0, %v2442
      %2444 = vmatmul.f32.gmra.mxu0 %v315
      %v2445 = vpop.f32.mrf.mxu0
      %v2446 = vadd.f32 0.0, %v2445
      %2447 = vmatmul.f32.gmra.mxu0 %v317
      %v2448 = vpop.f32.mrf.mxu0
      %v2449 = vadd.f32 0.0, %v2448
      %2450 = vmatmul.f32.gmra.mxu0 %v319
      %v2451 = vpop.f32.mrf.mxu0
      %v2452 = vadd.f32 0.0, %v2451
      %2453 = vmatmul.f32.gmra.mxu0 %v321
      %v2454 = vpop.f32.mrf.mxu0
      %v2455 = vadd.f32 0.0, %v2454
      %2456 = vmatmul.f32.gmra.mxu0 %v323
      %v2457 = vpop.f32.mrf.mxu0
      %v2458 = vadd.f32 0.0, %v2457
      %2459 = vmatmul.f32.gmra.mxu0 %v325
      %v2460 = vpop.f32.mrf.mxu0
      %v2461 = vadd.f32 0.0, %v2460
      %2462 = vmatmul.f32.gmra.mxu0 %v327
      %v2463 = vpop.f32.mrf.mxu0
      %v2464 = vadd.f32 0.0, %v2463
      %2465 = vmatmul.f32.gmra.mxu0 %v329
      %v2466 = vpop.f32.mrf.mxu0
      %v2467 = vadd.f32 0.0, %v2466
      %2468 = vmatmul.f32.gmra.mxu0 %v331
      %v2469 = vpop.f32.mrf.mxu0
      %v2470 = vadd.f32 0.0, %v2469
      %2471 = vmatmul.f32.gmra.mxu0 %v333
      %v2472 = vpop.f32.mrf.mxu0
      %v2473 = vadd.f32 0.0, %v2472
      %2474 = vmatmul.f32.gmra.mxu0 %v335
      %v2475 = vpop.f32.mrf.mxu0
      %v2476 = vadd.f32 0.0, %v2475
      %2477 = vmatmul.f32.gmra.mxu0 %v337
      %v2478 = vpop.f32.mrf.mxu0
      %v2479 = vadd.f32 0.0, %v2478
      %2480 = vmatmul.f32.gmra.mxu0 %v339
      %v2481 = vpop.f32.mrf.mxu0
      %v2482 = vadd.f32 0.0, %v2481
      %2483 = vmatmul.f32.gmra.mxu0 %v341
      %v2484 = vpop.f32.mrf.mxu0
      %v2485 = vadd.f32 0.0, %v2484
      %2486 = vmatmul.f32.gmra.mxu0 %v343
      %v2487 = vpop.f32.mrf.mxu0
      %v2488 = vadd.f32 0.0, %v2487
      %2489 = vdwg.mxu0
      %2490 = vmatpush.msra.mxu0 %v2295
      %2491 = vmatpush.msra.mxu0 %v2294
      %2492 = vmatpush.msra.mxu0 %v2293
      %2493 = vmatpush.msra.mxu0 %v2292
      %2494 = vmatpush.msra.mxu0 %v2291
      %2495 = vmatpush.msra.mxu0 %v2290
      %2496 = vmatpush.msra.mxu0 %v2289
      %2497 = vmatpush.msra.mxu0 %v2288
      %2498 = vmatpush.msra.mxu0 %v2287
      %2499 = vmatpush.msra.mxu0 %v2286
      %2500 = vmatpush.msra.mxu0 %v2285
      %2501 = vmatpush.msra.mxu0 %v2284
      %2502 = vmatpush.msra.mxu0 %v2283
      %2503 = vmatpush.msra.mxu0 %v2282
      %2504 = vmatpush.msra.mxu0 %v2281
      %2505 = vmatpush.msra.mxu0 %v2280
      %2506 = vmatmul.f32.gmra.mxu0 %v250
      %v2507 = vpop.f32.mrf.mxu0
      %v2508 = vadd.f32 %v2347, %v2507
      %2509 = vmatmul.f32.gmra.mxu0 %v252
      %v2510 = vpop.f32.mrf.mxu0
      %v2511 = vadd.f32 %v2350, %v2510
      %2512 = vmatmul.f32.gmra.mxu0 %v254
      %v2513 = vpop.f32.mrf.mxu0
      %v2514 = vadd.f32 %v2353, %v2513
      %2515 = vmatmul.f32.gmra.mxu0 %v256
      %v2516 = vpop.f32.mrf.mxu0
      %v2517 = vadd.f32 %v2356, %v2516
      %2518 = vmatmul.f32.gmra.mxu0 %v258
      %v2519 = vpop.f32.mrf.mxu0
      %v2520 = vadd.f32 %v2359, %v2519
      %2521 = vmatmul.f32.gmra.mxu0 %v260
      %v2522 = vpop.f32.mrf.mxu0
      %v2523 = vadd.f32 %v2362, %v2522
      %2524 = vmatmul.f32.gmra.mxu0 %v262
      %v2525 = vpop.f32.mrf.mxu0
      %v2526 = vadd.f32 %v2365, %v2525
      %2527 = vmatmul.f32.gmra.mxu0 %v264
      %v2528 = vpop.f32.mrf.mxu0
      %v2529 = vadd.f32 %v2368, %v2528
      %2530 = vmatmul.f32.gmra.mxu0 %v266
      %v2531 = vpop.f32.mrf.mxu0
      %v2532 = vadd.f32 %v2371, %v2531
      %2533 = vmatmul.f32.gmra.mxu0 %v268
      %v2534 = vpop.f32.mrf.mxu0
      %v2535 = vadd.f32 %v2374, %v2534
      %2536 = vmatmul.f32.gmra.mxu0 %v270
      %v2537 = vpop.f32.mrf.mxu0
      %v2538 = vadd.f32 %v2377, %v2537
      %2539 = vmatmul.f32.gmra.mxu0 %v272
      %v2540 = vpop.f32.mrf.mxu0
      %v2541 = vadd.f32 %v2380, %v2540
      %2542 = vmatmul.f32.gmra.mxu0 %v274
      %v2543 = vpop.f32.mrf.mxu0
      %v2544 = vadd.f32 %v2383, %v2543
      %2545 = vmatmul.f32.gmra.mxu0 %v276
      %v2546 = vpop.f32.mrf.mxu0
      %v2547 = vadd.f32 %v2386, %v2546
      %2548 = vmatmul.f32.gmra.mxu0 %v278
      %v2549 = vpop.f32.mrf.mxu0
      %v2550 = vadd.f32 %v2389, %v2549
      %2551 = vmatmul.f32.gmra.mxu0 %v280
      %v2552 = vpop.f32.mrf.mxu0
      %v2553 = vadd.f32 %v2392, %v2552
      %2554 = vmatmul.f32.gmra.mxu0 %v282
      %v2555 = vpop.f32.mrf.mxu0
      %v2556 = vadd.f32 %v2395, %v2555
      %2557 = vmatmul.f32.gmra.mxu0 %v284
      %v2558 = vpop.f32.mrf.mxu0
      %v2559 = vadd.f32 %v2398, %v2558
      %2560 = vmatmul.f32.gmra.mxu0 %v286
      %v2561 = vpop.f32.mrf.mxu0
      %v2562 = vadd.f32 %v2401, %v2561
      %2563 = vmatmul.f32.gmra.mxu0 %v288
      %v2564 = vpop.f32.mrf.mxu0
      %v2565 = vadd.f32 %v2404, %v2564
      %2566 = vmatmul.f32.gmra.mxu0 %v290
      %v2567 = vpop.f32.mrf.mxu0
      %v2568 = vadd.f32 %v2407, %v2567
      %2569 = vmatmul.f32.gmra.mxu0 %v292
      %v2570 = vpop.f32.mrf.mxu0
      %v2571 = vadd.f32 %v2410, %v2570
      %2572 = vmatmul.f32.gmra.mxu0 %v294
      %v2573 = vpop.f32.mrf.mxu0
      %v2574 = vadd.f32 %v2413, %v2573
      %2575 = vmatmul.f32.gmra.mxu0 %v296
      %v2576 = vpop.f32.mrf.mxu0
      %v2577 = vadd.f32 %v2416, %v2576
      %2578 = vmatmul.f32.gmra.mxu0 %v298
      %v2579 = vpop.f32.mrf.mxu0
      %v2580 = vadd.f32 %v2419, %v2579
      %2581 = vmatmul.f32.gmra.mxu0 %v300
      %v2582 = vpop.f32.mrf.mxu0
      %v2583 = vadd.f32 %v2422, %v2582
      %2584 = vmatmul.f32.gmra.mxu0 %v302
      %v2585 = vpop.f32.mrf.mxu0
      %v2586 = vadd.f32 %v2425, %v2585
      %2587 = vmatmul.f32.gmra.mxu0 %v304
      %v2588 = vpop.f32.mrf.mxu0
      %v2589 = vadd.f32 %v2428, %v2588
      %2590 = vmatmul.f32.gmra.mxu0 %v306
      %v2591 = vpop.f32.mrf.mxu0
      %v2592 = vadd.f32 %v2431, %v2591
      %2593 = vmatmul.f32.gmra.mxu0 %v308
      %v2594 = vpop.f32.mrf.mxu0
      %v2595 = vadd.f32 %v2434, %v2594
      %2596 = vmatmul.f32.gmra.mxu0 %v310
      %v2597 = vpop.f32.mrf.mxu0
      %v2598 = vadd.f32 %v2437, %v2597
      %2599 = vmatmul.f32.gmra.mxu0 %v312
      %v2600 = vpop.f32.mrf.mxu0
      %v2601 = vadd.f32 %v2440, %v2600
      %2602 = vmatmul.f32.gmra.mxu0 %v314
      %v2603 = vpop.f32.mrf.mxu0
      %v2604 = vadd.f32 %v2443, %v2603
      %2605 = vmatmul.f32.gmra.mxu0 %v316
      %v2606 = vpop.f32.mrf.mxu0
      %v2607 = vadd.f32 %v2446, %v2606
      %2608 = vmatmul.f32.gmra.mxu0 %v318
      %v2609 = vpop.f32.mrf.mxu0
      %v2610 = vadd.f32 %v2449, %v2609
      %2611 = vmatmul.f32.gmra.mxu0 %v320
      %v2612 = vpop.f32.mrf.mxu0
      %v2613 = vadd.f32 %v2452, %v2612
      %2614 = vmatmul.f32.gmra.mxu0 %v322
      %v2615 = vpop.f32.mrf.mxu0
      %v2616 = vadd.f32 %v2455, %v2615
      %2617 = vmatmul.f32.gmra.mxu0 %v324
      %v2618 = vpop.f32.mrf.mxu0
      %v2619 = vadd.f32 %v2458, %v2618
      %2620 = vmatmul.f32.gmra.mxu0 %v326
      %v2621 = vpop.f32.mrf.mxu0
      %v2622 = vadd.f32 %v2461, %v2621
      %2623 = vmatmul.f32.gmra.mxu0 %v328
      %v2624 = vpop.f32.mrf.mxu0
      %v2625 = vadd.f32 %v2464, %v2624
      %2626 = vmatmul.f32.gmra.mxu0 %v330
      %v2627 = vpop.f32.mrf.mxu0
      %v2628 = vadd.f32 %v2467, %v2627
      %2629 = vmatmul.f32.gmra.mxu0 %v332
      %v2630 = vpop.f32.mrf.mxu0
      %v2631 = vadd.f32 %v2470, %v2630
      %2632 = vmatmul.f32.gmra.mxu0 %v334
      %v2633 = vpop.f32.mrf.mxu0
      %v2634 = vadd.f32 %v2473, %v2633
      %2635 = vmatmul.f32.gmra.mxu0 %v336
      %v2636 = vpop.f32.mrf.mxu0
      %v2637 = vadd.f32 %v2476, %v2636
      %2638 = vmatmul.f32.gmra.mxu0 %v338
      %v2639 = vpop.f32.mrf.mxu0
      %v2640 = vadd.f32 %v2479, %v2639
      %2641 = vmatmul.f32.gmra.mxu0 %v340
      %v2642 = vpop.f32.mrf.mxu0
      %v2643 = vadd.f32 %v2482, %v2642
      %2644 = vmatmul.f32.gmra.mxu0 %v342
      %v2645 = vpop.f32.mrf.mxu0
      %v2646 = vadd.f32 %v2485, %v2645
      %2647 = vmatmul.f32.gmra.mxu0 %v344
      %v2648 = vpop.f32.mrf.mxu0
      %v2649 = vadd.f32 %v2488, %v2648
      %2650 = vdwg.mxu0
      %v2651 = vmul.f32 %v2508, %v2313
      %v2652 = vmul.f32 %v2511, %v2314
      %v2653 = vmul.f32 %v2514, %v2315
      %v2654 = vmul.f32 %v2517, %v2316
      %v2655 = vmul.f32 %v2520, %v2317
      %v2656 = vmul.f32 %v2523, %v2318
      %v2657 = vmul.f32 %v2526, %v2319
      %v2658 = vmul.f32 %v2529, %v2320
      %v2659 = vmul.f32 %v2532, %v2321
      %v2660 = vmul.f32 %v2535, %v2322
      %v2661 = vmul.f32 %v2538, %v2323
      %v2662 = vmul.f32 %v2541, %v2324
      %v2663 = vmul.f32 %v2544, %v2325
      %v2664 = vmul.f32 %v2547, %v2326
      %v2665 = vmul.f32 %v2550, %v2327
      %v2666 = vmul.f32 %v2553, %v2328
      %v2667 = vadd.f32 %v2651, %v2652
      %v2668 = vadd.f32 %v2667, %v2653
      %v2669 = vadd.f32 %v2668, %v2654
      %v2670 = vadd.f32 %v2669, %v2655
      %v2671 = vadd.f32 %v2670, %v2656
      %v2672 = vadd.f32 %v2671, %v2657
      %v2673 = vadd.f32 %v2672, %v2658
      %v2674 = vadd.f32 %v2673, %v2659
      %v2675 = vadd.f32 %v2674, %v2660
      %v2676 = vadd.f32 %v2675, %v2661
      %v2677 = vadd.f32 %v2676, %v2662
      %v2678 = vadd.f32 %v2677, %v2663
      %v2679 = vadd.f32 %v2678, %v2664
      %v2680 = vadd.f32 %v2679, %v2665
      %v2681 = vadd.f32 %v2680, %v2666
      %v2682 = vrot.slane %v2681, 4
      %v2683 = vadd.f32 %v2681, %v2682
      %v2684 = vrot.slane %v2683, 2
      %v2685 = vadd.f32 %v2683, %v2684
      %v2686 = vrot.slane %v2685, 1
      %v2687 = vadd.f32 %v2685, %v2686
      %v2688 = vsub.f32 %v2687, %v490
      %v2689 = vmul.f32 %v2688, %v2688
      %v2690 = vadd.f32 %v2689, 0.0
      %v2691 = vmul.f32 %v2556, %v2313
      %v2692 = vmul.f32 %v2559, %v2314
      %v2693 = vmul.f32 %v2562, %v2315
      %v2694 = vmul.f32 %v2565, %v2316
      %v2695 = vmul.f32 %v2568, %v2317
      %v2696 = vmul.f32 %v2571, %v2318
      %v2697 = vmul.f32 %v2574, %v2319
      %v2698 = vmul.f32 %v2577, %v2320
      %v2699 = vmul.f32 %v2580, %v2321
      %v2700 = vmul.f32 %v2583, %v2322
      %v2701 = vmul.f32 %v2586, %v2323
      %v2702 = vmul.f32 %v2589, %v2324
      %v2703 = vmul.f32 %v2592, %v2325
      %v2704 = vmul.f32 %v2595, %v2326
      %v2705 = vmul.f32 %v2598, %v2327
      %v2706 = vmul.f32 %v2601, %v2328
      %v2707 = vadd.f32 %v2691, %v2692
      %v2708 = vadd.f32 %v2707, %v2693
      %v2709 = vadd.f32 %v2708, %v2694
      %v2710 = vadd.f32 %v2709, %v2695
      %v2711 = vadd.f32 %v2710, %v2696
      %v2712 = vadd.f32 %v2711, %v2697
      %v2713 = vadd.f32 %v2712, %v2698
      %v2714 = vadd.f32 %v2713, %v2699
      %v2715 = vadd.f32 %v2714, %v2700
      %v2716 = vadd.f32 %v2715, %v2701
      %v2717 = vadd.f32 %v2716, %v2702
      %v2718 = vadd.f32 %v2717, %v2703
      %v2719 = vadd.f32 %v2718, %v2704
      %v2720 = vadd.f32 %v2719, %v2705
      %v2721 = vadd.f32 %v2720, %v2706
      %v2722 = vrot.slane %v2721, 4
      %v2723 = vadd.f32 %v2721, %v2722
      %v2724 = vrot.slane %v2723, 2
      %v2725 = vadd.f32 %v2723, %v2724
      %v2726 = vrot.slane %v2725, 1
      %v2727 = vadd.f32 %v2725, %v2726
      %v2728 = vsub.f32 %v2727, %v503
      %v2729 = vmul.f32 %v2728, %v2728
      %v2730 = vadd.f32 %v2690, %v2729
      %v2731 = vmul.f32 %v2604, %v2313
      %v2732 = vmul.f32 %v2607, %v2314
      %v2733 = vmul.f32 %v2610, %v2315
      %v2734 = vmul.f32 %v2613, %v2316
      %v2735 = vmul.f32 %v2616, %v2317
      %v2736 = vmul.f32 %v2619, %v2318
      %v2737 = vmul.f32 %v2622, %v2319
      %v2738 = vmul.f32 %v2625, %v2320
      %v2739 = vmul.f32 %v2628, %v2321
      %v2740 = vmul.f32 %v2631, %v2322
      %v2741 = vmul.f32 %v2634, %v2323
      %v2742 = vmul.f32 %v2637, %v2324
      %v2743 = vmul.f32 %v2640, %v2325
      %v2744 = vmul.f32 %v2643, %v2326
      %v2745 = vmul.f32 %v2646, %v2327
      %v2746 = vmul.f32 %v2649, %v2328
      %v2747 = vadd.f32 %v2731, %v2732
      %v2748 = vadd.f32 %v2747, %v2733
      %v2749 = vadd.f32 %v2748, %v2734
      %v2750 = vadd.f32 %v2749, %v2735
      %v2751 = vadd.f32 %v2750, %v2736
      %v2752 = vadd.f32 %v2751, %v2737
      %v2753 = vadd.f32 %v2752, %v2738
      %v2754 = vadd.f32 %v2753, %v2739
      %v2755 = vadd.f32 %v2754, %v2740
      %v2756 = vadd.f32 %v2755, %v2741
      %v2757 = vadd.f32 %v2756, %v2742
      %v2758 = vadd.f32 %v2757, %v2743
      %v2759 = vadd.f32 %v2758, %v2744
      %v2760 = vadd.f32 %v2759, %v2745
      %v2761 = vadd.f32 %v2760, %v2746
      %v2762 = vrot.slane %v2761, 4
      %v2763 = vadd.f32 %v2761, %v2762
      %v2764 = vrot.slane %v2763, 2
      %v2765 = vadd.f32 %v2763, %v2764
      %v2766 = vrot.slane %v2765, 1
      %v2767 = vadd.f32 %v2765, %v2766
      %v2768 = vsub.f32 %v2767, %v514
      %v2769 = vmul.f32 %v2768, %v2768
      %v2770 = vadd.f32 %v2730, %v2769
      %v2771 = vrsqrt.pop %v2770
      %v2772 = vmul.f32 %v2771, %v2770
      %v2773 = vmul.f32 %v2772, %v2771
      %v2774 = vmul.f32 0.5, %v2773
      %v2775 = vsub.f32 1.5, %v2774
      %v2776 = vmul.f32 %v2771, %v2775
      %v2777 = vmul.f32 %v2770, %v2776
      %vm2778 = vcmp.eq.f32.partialorder %v2770, inf
      %v2779 = vsel %vm2778, %v2770, %v2777
      %vm2780 = vcmp.eq.f32.partialorder %v2770, 0.0
      %v2781 = vand.u32 %v2770, 2147483648
      %v2782 = vsel %vm2780, %v2781, %v2779
      %v2783 = vsel %vm248, %v2782, 0.0
      %v2784 = vadd.f32 %v2206, %v2783
      %v2785 = vperm.slane %v2229, 1
      %vm2786 = vcmp.eq.s32.totalorder %v346, %v2785
      %vm2787 = vcmp.eq.s32.totalorder %v347, %v2785
      %vm2788 = vcmp.eq.s32.totalorder %v348, %v2785
      %vm2789 = vcmp.eq.s32.totalorder %v349, %v2785
      %vm2790 = vcmp.eq.s32.totalorder %v350, %v2785
      %vm2791 = vcmp.eq.s32.totalorder %v351, %v2785
      %vm2792 = vcmp.eq.s32.totalorder %v352, %v2785
      %vm2793 = vcmp.eq.s32.totalorder %v353, %v2785
      %vm2794 = vcmp.eq.s32.totalorder %v354, %v2785
      %vm2795 = vcmp.eq.s32.totalorder %v355, %v2785
      %vm2796 = vcmp.eq.s32.totalorder %v356, %v2785
      %vm2797 = vcmp.eq.s32.totalorder %v357, %v2785
      %vm2798 = vcmp.eq.s32.totalorder %v358, %v2785
      %vm2799 = vcmp.eq.s32.totalorder %v359, %v2785
      %vm2800 = vcmp.eq.s32.totalorder %v360, %v2785
      %vm2801 = vcmp.eq.s32.totalorder %v361, %v2785
      %vm2802 = vcmp.eq.s32.totalorder %v362, %v2785
      %vm2803 = vcmp.eq.s32.totalorder %v363, %v2785
      %vm2804 = vcmp.eq.s32.totalorder %v364, %v2785
      %vm2805 = vcmp.eq.s32.totalorder %v365, %v2785
      %vm2806 = vcmp.eq.s32.totalorder %v366, %v2785
      %vm2807 = vcmp.eq.s32.totalorder %v367, %v2785
      %vm2808 = vcmp.eq.s32.totalorder %v368, %v2785
      %vm2809 = vcmp.eq.s32.totalorder %v369, %v2785
      %vm2810 = vcmp.eq.s32.totalorder %v370, %v2785
      %vm2811 = vcmp.eq.s32.totalorder %v371, %v2785
      %vm2812 = vcmp.eq.s32.totalorder %v372, %v2785
      %vm2813 = vcmp.eq.s32.totalorder %v373, %v2785
      %vm2814 = vcmp.eq.s32.totalorder %v374, %v2785
      %vm2815 = vcmp.eq.s32.totalorder %v375, %v2785
      %vm2816 = vcmp.eq.s32.totalorder %v376, %v2785
      %vm2817 = vcmp.eq.s32.totalorder %v377, %v2785
      %v2818 = vsel %vm2786, 1.0, 0.0
      %v2819 = vsel %vm2787, 1.0, 0.0
      %v2820 = vsel %vm2788, 1.0, 0.0
      %v2821 = vsel %vm2789, 1.0, 0.0
      %v2822 = vsel %vm2790, 1.0, 0.0
      %v2823 = vsel %vm2791, 1.0, 0.0
      %v2824 = vsel %vm2792, 1.0, 0.0
      %v2825 = vsel %vm2793, 1.0, 0.0
      %v2826 = vsel %vm2794, 1.0, 0.0
      %v2827 = vsel %vm2795, 1.0, 0.0
      %v2828 = vsel %vm2796, 1.0, 0.0
      %v2829 = vsel %vm2797, 1.0, 0.0
      %v2830 = vsel %vm2798, 1.0, 0.0
      %v2831 = vsel %vm2799, 1.0, 0.0
      %v2832 = vsel %vm2800, 1.0, 0.0
      %v2833 = vsel %vm2801, 1.0, 0.0
      %v2834 = vsel %vm2802, 1.0, 0.0
      %v2835 = vsel %vm2803, 1.0, 0.0
      %v2836 = vsel %vm2804, 1.0, 0.0
      %v2837 = vsel %vm2805, 1.0, 0.0
      %v2838 = vsel %vm2806, 1.0, 0.0
      %v2839 = vsel %vm2807, 1.0, 0.0
      %v2840 = vsel %vm2808, 1.0, 0.0
      %v2841 = vsel %vm2809, 1.0, 0.0
      %v2842 = vsel %vm2810, 1.0, 0.0
      %v2843 = vsel %vm2811, 1.0, 0.0
      %v2844 = vsel %vm2812, 1.0, 0.0
      %v2845 = vsel %vm2813, 1.0, 0.0
      %v2846 = vsel %vm2814, 1.0, 0.0
      %v2847 = vsel %vm2815, 1.0, 0.0
      %v2848 = vsel %vm2816, 1.0, 0.0
      %v2849 = vsel %vm2817, 1.0, 0.0
      %v2850 = vperm.slane %v2230, 1
      %vm2851 = vcmp.eq.s32.totalorder %v346, %v2850
      %vm2852 = vcmp.eq.s32.totalorder %v347, %v2850
      %vm2853 = vcmp.eq.s32.totalorder %v348, %v2850
      %vm2854 = vcmp.eq.s32.totalorder %v349, %v2850
      %vm2855 = vcmp.eq.s32.totalorder %v350, %v2850
      %vm2856 = vcmp.eq.s32.totalorder %v351, %v2850
      %vm2857 = vcmp.eq.s32.totalorder %v352, %v2850
      %vm2858 = vcmp.eq.s32.totalorder %v353, %v2850
      %vm2859 = vcmp.eq.s32.totalorder %v354, %v2850
      %vm2860 = vcmp.eq.s32.totalorder %v355, %v2850
      %vm2861 = vcmp.eq.s32.totalorder %v356, %v2850
      %vm2862 = vcmp.eq.s32.totalorder %v357, %v2850
      %vm2863 = vcmp.eq.s32.totalorder %v358, %v2850
      %vm2864 = vcmp.eq.s32.totalorder %v359, %v2850
      %vm2865 = vcmp.eq.s32.totalorder %v360, %v2850
      %vm2866 = vcmp.eq.s32.totalorder %v361, %v2850
      %v2867 = vsel %vm2851, 1.0, 0.0
      %v2868 = vsel %vm2852, 1.0, 0.0
      %v2869 = vsel %vm2853, 1.0, 0.0
      %v2870 = vsel %vm2854, 1.0, 0.0
      %v2871 = vsel %vm2855, 1.0, 0.0
      %v2872 = vsel %vm2856, 1.0, 0.0
      %v2873 = vsel %vm2857, 1.0, 0.0
      %v2874 = vsel %vm2858, 1.0, 0.0
      %v2875 = vsel %vm2859, 1.0, 0.0
      %v2876 = vsel %vm2860, 1.0, 0.0
      %v2877 = vsel %vm2861, 1.0, 0.0
      %v2878 = vsel %vm2862, 1.0, 0.0
      %v2879 = vsel %vm2863, 1.0, 0.0
      %v2880 = vsel %vm2864, 1.0, 0.0
      %v2881 = vsel %vm2865, 1.0, 0.0
      %v2882 = vsel %vm2866, 1.0, 0.0
      %2883 = vmatpush.msra.mxu0 %v2833
      %2884 = vmatpush.msra.mxu0 %v2832
      %2885 = vmatpush.msra.mxu0 %v2831
      %2886 = vmatpush.msra.mxu0 %v2830
      %2887 = vmatpush.msra.mxu0 %v2829
      %2888 = vmatpush.msra.mxu0 %v2828
      %2889 = vmatpush.msra.mxu0 %v2827
      %2890 = vmatpush.msra.mxu0 %v2826
      %2891 = vmatpush.msra.mxu0 %v2825
      %2892 = vmatpush.msra.mxu0 %v2824
      %2893 = vmatpush.msra.mxu0 %v2823
      %2894 = vmatpush.msra.mxu0 %v2822
      %2895 = vmatpush.msra.mxu0 %v2821
      %2896 = vmatpush.msra.mxu0 %v2820
      %2897 = vmatpush.msra.mxu0 %v2819
      %2898 = vmatpush.msra.mxu0 %v2818
      %2899 = vmatmul.f32.gmra.mxu0 %v249
      %v2900 = vpop.f32.mrf.mxu0
      %v2901 = vadd.f32 0.0, %v2900
      %2902 = vmatmul.f32.gmra.mxu0 %v251
      %v2903 = vpop.f32.mrf.mxu0
      %v2904 = vadd.f32 0.0, %v2903
      %2905 = vmatmul.f32.gmra.mxu0 %v253
      %v2906 = vpop.f32.mrf.mxu0
      %v2907 = vadd.f32 0.0, %v2906
      %2908 = vmatmul.f32.gmra.mxu0 %v255
      %v2909 = vpop.f32.mrf.mxu0
      %v2910 = vadd.f32 0.0, %v2909
      %2911 = vmatmul.f32.gmra.mxu0 %v257
      %v2912 = vpop.f32.mrf.mxu0
      %v2913 = vadd.f32 0.0, %v2912
      %2914 = vmatmul.f32.gmra.mxu0 %v259
      %v2915 = vpop.f32.mrf.mxu0
      %v2916 = vadd.f32 0.0, %v2915
      %2917 = vmatmul.f32.gmra.mxu0 %v261
      %v2918 = vpop.f32.mrf.mxu0
      %v2919 = vadd.f32 0.0, %v2918
      %2920 = vmatmul.f32.gmra.mxu0 %v263
      %v2921 = vpop.f32.mrf.mxu0
      %v2922 = vadd.f32 0.0, %v2921
      %2923 = vmatmul.f32.gmra.mxu0 %v265
      %v2924 = vpop.f32.mrf.mxu0
      %v2925 = vadd.f32 0.0, %v2924
      %2926 = vmatmul.f32.gmra.mxu0 %v267
      %v2927 = vpop.f32.mrf.mxu0
      %v2928 = vadd.f32 0.0, %v2927
      %2929 = vmatmul.f32.gmra.mxu0 %v269
      %v2930 = vpop.f32.mrf.mxu0
      %v2931 = vadd.f32 0.0, %v2930
      %2932 = vmatmul.f32.gmra.mxu0 %v271
      %v2933 = vpop.f32.mrf.mxu0
      %v2934 = vadd.f32 0.0, %v2933
      %2935 = vmatmul.f32.gmra.mxu0 %v273
      %v2936 = vpop.f32.mrf.mxu0
      %v2937 = vadd.f32 0.0, %v2936
      %2938 = vmatmul.f32.gmra.mxu0 %v275
      %v2939 = vpop.f32.mrf.mxu0
      %v2940 = vadd.f32 0.0, %v2939
      %2941 = vmatmul.f32.gmra.mxu0 %v277
      %v2942 = vpop.f32.mrf.mxu0
      %v2943 = vadd.f32 0.0, %v2942
      %2944 = vmatmul.f32.gmra.mxu0 %v279
      %v2945 = vpop.f32.mrf.mxu0
      %v2946 = vadd.f32 0.0, %v2945
      %2947 = vmatmul.f32.gmra.mxu0 %v281
      %v2948 = vpop.f32.mrf.mxu0
      %v2949 = vadd.f32 0.0, %v2948
      %2950 = vmatmul.f32.gmra.mxu0 %v283
      %v2951 = vpop.f32.mrf.mxu0
      %v2952 = vadd.f32 0.0, %v2951
      %2953 = vmatmul.f32.gmra.mxu0 %v285
      %v2954 = vpop.f32.mrf.mxu0
      %v2955 = vadd.f32 0.0, %v2954
      %2956 = vmatmul.f32.gmra.mxu0 %v287
      %v2957 = vpop.f32.mrf.mxu0
      %v2958 = vadd.f32 0.0, %v2957
      %2959 = vmatmul.f32.gmra.mxu0 %v289
      %v2960 = vpop.f32.mrf.mxu0
      %v2961 = vadd.f32 0.0, %v2960
      %2962 = vmatmul.f32.gmra.mxu0 %v291
      %v2963 = vpop.f32.mrf.mxu0
      %v2964 = vadd.f32 0.0, %v2963
      %2965 = vmatmul.f32.gmra.mxu0 %v293
      %v2966 = vpop.f32.mrf.mxu0
      %v2967 = vadd.f32 0.0, %v2966
      %2968 = vmatmul.f32.gmra.mxu0 %v295
      %v2969 = vpop.f32.mrf.mxu0
      %v2970 = vadd.f32 0.0, %v2969
      %2971 = vmatmul.f32.gmra.mxu0 %v297
      %v2972 = vpop.f32.mrf.mxu0
      %v2973 = vadd.f32 0.0, %v2972
      %2974 = vmatmul.f32.gmra.mxu0 %v299
      %v2975 = vpop.f32.mrf.mxu0
      %v2976 = vadd.f32 0.0, %v2975
      %2977 = vmatmul.f32.gmra.mxu0 %v301
      %v2978 = vpop.f32.mrf.mxu0
      %v2979 = vadd.f32 0.0, %v2978
      %2980 = vmatmul.f32.gmra.mxu0 %v303
      %v2981 = vpop.f32.mrf.mxu0
      %v2982 = vadd.f32 0.0, %v2981
      %2983 = vmatmul.f32.gmra.mxu0 %v305
      %v2984 = vpop.f32.mrf.mxu0
      %v2985 = vadd.f32 0.0, %v2984
      %2986 = vmatmul.f32.gmra.mxu0 %v307
      %v2987 = vpop.f32.mrf.mxu0
      %v2988 = vadd.f32 0.0, %v2987
      %2989 = vmatmul.f32.gmra.mxu0 %v309
      %v2990 = vpop.f32.mrf.mxu0
      %v2991 = vadd.f32 0.0, %v2990
      %2992 = vmatmul.f32.gmra.mxu0 %v311
      %v2993 = vpop.f32.mrf.mxu0
      %v2994 = vadd.f32 0.0, %v2993
      %2995 = vmatmul.f32.gmra.mxu0 %v313
      %v2996 = vpop.f32.mrf.mxu0
      %v2997 = vadd.f32 0.0, %v2996
      %2998 = vmatmul.f32.gmra.mxu0 %v315
      %v2999 = vpop.f32.mrf.mxu0
      %v3000 = vadd.f32 0.0, %v2999
      %3001 = vmatmul.f32.gmra.mxu0 %v317
      %v3002 = vpop.f32.mrf.mxu0
      %v3003 = vadd.f32 0.0, %v3002
      %3004 = vmatmul.f32.gmra.mxu0 %v319
      %v3005 = vpop.f32.mrf.mxu0
      %v3006 = vadd.f32 0.0, %v3005
      %3007 = vmatmul.f32.gmra.mxu0 %v321
      %v3008 = vpop.f32.mrf.mxu0
      %v3009 = vadd.f32 0.0, %v3008
      %3010 = vmatmul.f32.gmra.mxu0 %v323
      %v3011 = vpop.f32.mrf.mxu0
      %v3012 = vadd.f32 0.0, %v3011
      %3013 = vmatmul.f32.gmra.mxu0 %v325
      %v3014 = vpop.f32.mrf.mxu0
      %v3015 = vadd.f32 0.0, %v3014
      %3016 = vmatmul.f32.gmra.mxu0 %v327
      %v3017 = vpop.f32.mrf.mxu0
      %v3018 = vadd.f32 0.0, %v3017
      %3019 = vmatmul.f32.gmra.mxu0 %v329
      %v3020 = vpop.f32.mrf.mxu0
      %v3021 = vadd.f32 0.0, %v3020
      %3022 = vmatmul.f32.gmra.mxu0 %v331
      %v3023 = vpop.f32.mrf.mxu0
      %v3024 = vadd.f32 0.0, %v3023
      %3025 = vmatmul.f32.gmra.mxu0 %v333
      %v3026 = vpop.f32.mrf.mxu0
      %v3027 = vadd.f32 0.0, %v3026
      %3028 = vmatmul.f32.gmra.mxu0 %v335
      %v3029 = vpop.f32.mrf.mxu0
      %v3030 = vadd.f32 0.0, %v3029
      %3031 = vmatmul.f32.gmra.mxu0 %v337
      %v3032 = vpop.f32.mrf.mxu0
      %v3033 = vadd.f32 0.0, %v3032
      %3034 = vmatmul.f32.gmra.mxu0 %v339
      %v3035 = vpop.f32.mrf.mxu0
      %v3036 = vadd.f32 0.0, %v3035
      %3037 = vmatmul.f32.gmra.mxu0 %v341
      %v3038 = vpop.f32.mrf.mxu0
      %v3039 = vadd.f32 0.0, %v3038
      %3040 = vmatmul.f32.gmra.mxu0 %v343
      %v3041 = vpop.f32.mrf.mxu0
      %v3042 = vadd.f32 0.0, %v3041
      %3043 = vdwg.mxu0
      %3044 = vmatpush.msra.mxu0 %v2849
      %3045 = vmatpush.msra.mxu0 %v2848
      %3046 = vmatpush.msra.mxu0 %v2847
      %3047 = vmatpush.msra.mxu0 %v2846
      %3048 = vmatpush.msra.mxu0 %v2845
      %3049 = vmatpush.msra.mxu0 %v2844
      %3050 = vmatpush.msra.mxu0 %v2843
      %3051 = vmatpush.msra.mxu0 %v2842
      %3052 = vmatpush.msra.mxu0 %v2841
      %3053 = vmatpush.msra.mxu0 %v2840
      %3054 = vmatpush.msra.mxu0 %v2839
      %3055 = vmatpush.msra.mxu0 %v2838
      %3056 = vmatpush.msra.mxu0 %v2837
      %3057 = vmatpush.msra.mxu0 %v2836
      %3058 = vmatpush.msra.mxu0 %v2835
      %3059 = vmatpush.msra.mxu0 %v2834
      %3060 = vmatmul.f32.gmra.mxu0 %v250
      %v3061 = vpop.f32.mrf.mxu0
      %v3062 = vadd.f32 %v2901, %v3061
      %3063 = vmatmul.f32.gmra.mxu0 %v252
      %v3064 = vpop.f32.mrf.mxu0
      %v3065 = vadd.f32 %v2904, %v3064
      %3066 = vmatmul.f32.gmra.mxu0 %v254
      %v3067 = vpop.f32.mrf.mxu0
      %v3068 = vadd.f32 %v2907, %v3067
      %3069 = vmatmul.f32.gmra.mxu0 %v256
      %v3070 = vpop.f32.mrf.mxu0
      %v3071 = vadd.f32 %v2910, %v3070
      %3072 = vmatmul.f32.gmra.mxu0 %v258
      %v3073 = vpop.f32.mrf.mxu0
      %v3074 = vadd.f32 %v2913, %v3073
      %3075 = vmatmul.f32.gmra.mxu0 %v260
      %v3076 = vpop.f32.mrf.mxu0
      %v3077 = vadd.f32 %v2916, %v3076
      %3078 = vmatmul.f32.gmra.mxu0 %v262
      %v3079 = vpop.f32.mrf.mxu0
      %v3080 = vadd.f32 %v2919, %v3079
      %3081 = vmatmul.f32.gmra.mxu0 %v264
      %v3082 = vpop.f32.mrf.mxu0
      %v3083 = vadd.f32 %v2922, %v3082
      %3084 = vmatmul.f32.gmra.mxu0 %v266
      %v3085 = vpop.f32.mrf.mxu0
      %v3086 = vadd.f32 %v2925, %v3085
      %3087 = vmatmul.f32.gmra.mxu0 %v268
      %v3088 = vpop.f32.mrf.mxu0
      %v3089 = vadd.f32 %v2928, %v3088
      %3090 = vmatmul.f32.gmra.mxu0 %v270
      %v3091 = vpop.f32.mrf.mxu0
      %v3092 = vadd.f32 %v2931, %v3091
      %3093 = vmatmul.f32.gmra.mxu0 %v272
      %v3094 = vpop.f32.mrf.mxu0
      %v3095 = vadd.f32 %v2934, %v3094
      %3096 = vmatmul.f32.gmra.mxu0 %v274
      %v3097 = vpop.f32.mrf.mxu0
      %v3098 = vadd.f32 %v2937, %v3097
      %3099 = vmatmul.f32.gmra.mxu0 %v276
      %v3100 = vpop.f32.mrf.mxu0
      %v3101 = vadd.f32 %v2940, %v3100
      %3102 = vmatmul.f32.gmra.mxu0 %v278
      %v3103 = vpop.f32.mrf.mxu0
      %v3104 = vadd.f32 %v2943, %v3103
      %3105 = vmatmul.f32.gmra.mxu0 %v280
      %v3106 = vpop.f32.mrf.mxu0
      %v3107 = vadd.f32 %v2946, %v3106
      %3108 = vmatmul.f32.gmra.mxu0 %v282
      %v3109 = vpop.f32.mrf.mxu0
      %v3110 = vadd.f32 %v2949, %v3109
      %3111 = vmatmul.f32.gmra.mxu0 %v284
      %v3112 = vpop.f32.mrf.mxu0
      %v3113 = vadd.f32 %v2952, %v3112
      %3114 = vmatmul.f32.gmra.mxu0 %v286
      %v3115 = vpop.f32.mrf.mxu0
      %v3116 = vadd.f32 %v2955, %v3115
      %3117 = vmatmul.f32.gmra.mxu0 %v288
      %v3118 = vpop.f32.mrf.mxu0
      %v3119 = vadd.f32 %v2958, %v3118
      %3120 = vmatmul.f32.gmra.mxu0 %v290
      %v3121 = vpop.f32.mrf.mxu0
      %v3122 = vadd.f32 %v2961, %v3121
      %3123 = vmatmul.f32.gmra.mxu0 %v292
      %v3124 = vpop.f32.mrf.mxu0
      %v3125 = vadd.f32 %v2964, %v3124
      %3126 = vmatmul.f32.gmra.mxu0 %v294
      %v3127 = vpop.f32.mrf.mxu0
      %v3128 = vadd.f32 %v2967, %v3127
      %3129 = vmatmul.f32.gmra.mxu0 %v296
      %v3130 = vpop.f32.mrf.mxu0
      %v3131 = vadd.f32 %v2970, %v3130
      %3132 = vmatmul.f32.gmra.mxu0 %v298
      %v3133 = vpop.f32.mrf.mxu0
      %v3134 = vadd.f32 %v2973, %v3133
      %3135 = vmatmul.f32.gmra.mxu0 %v300
      %v3136 = vpop.f32.mrf.mxu0
      %v3137 = vadd.f32 %v2976, %v3136
      %3138 = vmatmul.f32.gmra.mxu0 %v302
      %v3139 = vpop.f32.mrf.mxu0
      %v3140 = vadd.f32 %v2979, %v3139
      %3141 = vmatmul.f32.gmra.mxu0 %v304
      %v3142 = vpop.f32.mrf.mxu0
      %v3143 = vadd.f32 %v2982, %v3142
      %3144 = vmatmul.f32.gmra.mxu0 %v306
      %v3145 = vpop.f32.mrf.mxu0
      %v3146 = vadd.f32 %v2985, %v3145
      %3147 = vmatmul.f32.gmra.mxu0 %v308
      %v3148 = vpop.f32.mrf.mxu0
      %v3149 = vadd.f32 %v2988, %v3148
      %3150 = vmatmul.f32.gmra.mxu0 %v310
      %v3151 = vpop.f32.mrf.mxu0
      %v3152 = vadd.f32 %v2991, %v3151
      %3153 = vmatmul.f32.gmra.mxu0 %v312
      %v3154 = vpop.f32.mrf.mxu0
      %v3155 = vadd.f32 %v2994, %v3154
      %3156 = vmatmul.f32.gmra.mxu0 %v314
      %v3157 = vpop.f32.mrf.mxu0
      %v3158 = vadd.f32 %v2997, %v3157
      %3159 = vmatmul.f32.gmra.mxu0 %v316
      %v3160 = vpop.f32.mrf.mxu0
      %v3161 = vadd.f32 %v3000, %v3160
      %3162 = vmatmul.f32.gmra.mxu0 %v318
      %v3163 = vpop.f32.mrf.mxu0
      %v3164 = vadd.f32 %v3003, %v3163
      %3165 = vmatmul.f32.gmra.mxu0 %v320
      %v3166 = vpop.f32.mrf.mxu0
      %v3167 = vadd.f32 %v3006, %v3166
      %3168 = vmatmul.f32.gmra.mxu0 %v322
      %v3169 = vpop.f32.mrf.mxu0
      %v3170 = vadd.f32 %v3009, %v3169
      %3171 = vmatmul.f32.gmra.mxu0 %v324
      %v3172 = vpop.f32.mrf.mxu0
      %v3173 = vadd.f32 %v3012, %v3172
      %3174 = vmatmul.f32.gmra.mxu0 %v326
      %v3175 = vpop.f32.mrf.mxu0
      %v3176 = vadd.f32 %v3015, %v3175
      %3177 = vmatmul.f32.gmra.mxu0 %v328
      %v3178 = vpop.f32.mrf.mxu0
      %v3179 = vadd.f32 %v3018, %v3178
      %3180 = vmatmul.f32.gmra.mxu0 %v330
      %v3181 = vpop.f32.mrf.mxu0
      %v3182 = vadd.f32 %v3021, %v3181
      %3183 = vmatmul.f32.gmra.mxu0 %v332
      %v3184 = vpop.f32.mrf.mxu0
      %v3185 = vadd.f32 %v3024, %v3184
      %3186 = vmatmul.f32.gmra.mxu0 %v334
      %v3187 = vpop.f32.mrf.mxu0
      %v3188 = vadd.f32 %v3027, %v3187
      %3189 = vmatmul.f32.gmra.mxu0 %v336
      %v3190 = vpop.f32.mrf.mxu0
      %v3191 = vadd.f32 %v3030, %v3190
      %3192 = vmatmul.f32.gmra.mxu0 %v338
      %v3193 = vpop.f32.mrf.mxu0
      %v3194 = vadd.f32 %v3033, %v3193
      %3195 = vmatmul.f32.gmra.mxu0 %v340
      %v3196 = vpop.f32.mrf.mxu0
      %v3197 = vadd.f32 %v3036, %v3196
      %3198 = vmatmul.f32.gmra.mxu0 %v342
      %v3199 = vpop.f32.mrf.mxu0
      %v3200 = vadd.f32 %v3039, %v3199
      %3201 = vmatmul.f32.gmra.mxu0 %v344
      %v3202 = vpop.f32.mrf.mxu0
      %v3203 = vadd.f32 %v3042, %v3202
      %3204 = vdwg.mxu0
      %v3205 = vmul.f32 %v3062, %v2867
      %v3206 = vmul.f32 %v3065, %v2868
      %v3207 = vmul.f32 %v3068, %v2869
      %v3208 = vmul.f32 %v3071, %v2870
      %v3209 = vmul.f32 %v3074, %v2871
      %v3210 = vmul.f32 %v3077, %v2872
      %v3211 = vmul.f32 %v3080, %v2873
      %v3212 = vmul.f32 %v3083, %v2874
      %v3213 = vmul.f32 %v3086, %v2875
      %v3214 = vmul.f32 %v3089, %v2876
      %v3215 = vmul.f32 %v3092, %v2877
      %v3216 = vmul.f32 %v3095, %v2878
      %v3217 = vmul.f32 %v3098, %v2879
      %v3218 = vmul.f32 %v3101, %v2880
      %v3219 = vmul.f32 %v3104, %v2881
      %v3220 = vmul.f32 %v3107, %v2882
      %v3221 = vadd.f32 %v3205, %v3206
      %v3222 = vadd.f32 %v3221, %v3207
      %v3223 = vadd.f32 %v3222, %v3208
      %v3224 = vadd.f32 %v3223, %v3209
      %v3225 = vadd.f32 %v3224, %v3210
      %v3226 = vadd.f32 %v3225, %v3211
      %v3227 = vadd.f32 %v3226, %v3212
      %v3228 = vadd.f32 %v3227, %v3213
      %v3229 = vadd.f32 %v3228, %v3214
      %v3230 = vadd.f32 %v3229, %v3215
      %v3231 = vadd.f32 %v3230, %v3216
      %v3232 = vadd.f32 %v3231, %v3217
      %v3233 = vadd.f32 %v3232, %v3218
      %v3234 = vadd.f32 %v3233, %v3219
      %v3235 = vadd.f32 %v3234, %v3220
      %v3236 = vrot.slane %v3235, 4
      %v3237 = vadd.f32 %v3235, %v3236
      %v3238 = vrot.slane %v3237, 2
      %v3239 = vadd.f32 %v3237, %v3238
      %v3240 = vrot.slane %v3239, 1
      %v3241 = vadd.f32 %v3239, %v3240
      %v3242 = vsub.f32 %v3241, %v490
      %v3243 = vmul.f32 %v3242, %v3242
      %v3244 = vadd.f32 %v3243, 0.0
      %v3245 = vmul.f32 %v3110, %v2867
      %v3246 = vmul.f32 %v3113, %v2868
      %v3247 = vmul.f32 %v3116, %v2869
      %v3248 = vmul.f32 %v3119, %v2870
      %v3249 = vmul.f32 %v3122, %v2871
      %v3250 = vmul.f32 %v3125, %v2872
      %v3251 = vmul.f32 %v3128, %v2873
      %v3252 = vmul.f32 %v3131, %v2874
      %v3253 = vmul.f32 %v3134, %v2875
      %v3254 = vmul.f32 %v3137, %v2876
      %v3255 = vmul.f32 %v3140, %v2877
      %v3256 = vmul.f32 %v3143, %v2878
      %v3257 = vmul.f32 %v3146, %v2879
      %v3258 = vmul.f32 %v3149, %v2880
      %v3259 = vmul.f32 %v3152, %v2881
      %v3260 = vmul.f32 %v3155, %v2882
      %v3261 = vadd.f32 %v3245, %v3246
      %v3262 = vadd.f32 %v3261, %v3247
      %v3263 = vadd.f32 %v3262, %v3248
      %v3264 = vadd.f32 %v3263, %v3249
      %v3265 = vadd.f32 %v3264, %v3250
      %v3266 = vadd.f32 %v3265, %v3251
      %v3267 = vadd.f32 %v3266, %v3252
      %v3268 = vadd.f32 %v3267, %v3253
      %v3269 = vadd.f32 %v3268, %v3254
      %v3270 = vadd.f32 %v3269, %v3255
      %v3271 = vadd.f32 %v3270, %v3256
      %v3272 = vadd.f32 %v3271, %v3257
      %v3273 = vadd.f32 %v3272, %v3258
      %v3274 = vadd.f32 %v3273, %v3259
      %v3275 = vadd.f32 %v3274, %v3260
      %v3276 = vrot.slane %v3275, 4
      %v3277 = vadd.f32 %v3275, %v3276
      %v3278 = vrot.slane %v3277, 2
      %v3279 = vadd.f32 %v3277, %v3278
      %v3280 = vrot.slane %v3279, 1
      %v3281 = vadd.f32 %v3279, %v3280
      %v3282 = vsub.f32 %v3281, %v503
      %v3283 = vmul.f32 %v3282, %v3282
      %v3284 = vadd.f32 %v3244, %v3283
      %v3285 = vmul.f32 %v3158, %v2867
      %v3286 = vmul.f32 %v3161, %v2868
      %v3287 = vmul.f32 %v3164, %v2869
      %v3288 = vmul.f32 %v3167, %v2870
      %v3289 = vmul.f32 %v3170, %v2871
      %v3290 = vmul.f32 %v3173, %v2872
      %v3291 = vmul.f32 %v3176, %v2873
      %v3292 = vmul.f32 %v3179, %v2874
      %v3293 = vmul.f32 %v3182, %v2875
      %v3294 = vmul.f32 %v3185, %v2876
      %v3295 = vmul.f32 %v3188, %v2877
      %v3296 = vmul.f32 %v3191, %v2878
      %v3297 = vmul.f32 %v3194, %v2879
      %v3298 = vmul.f32 %v3197, %v2880
      %v3299 = vmul.f32 %v3200, %v2881
      %v3300 = vmul.f32 %v3203, %v2882
      %v3301 = vadd.f32 %v3285, %v3286
      %v3302 = vadd.f32 %v3301, %v3287
      %v3303 = vadd.f32 %v3302, %v3288
      %v3304 = vadd.f32 %v3303, %v3289
      %v3305 = vadd.f32 %v3304, %v3290
      %v3306 = vadd.f32 %v3305, %v3291
      %v3307 = vadd.f32 %v3306, %v3292
      %v3308 = vadd.f32 %v3307, %v3293
      %v3309 = vadd.f32 %v3308, %v3294
      %v3310 = vadd.f32 %v3309, %v3295
      %v3311 = vadd.f32 %v3310, %v3296
      %v3312 = vadd.f32 %v3311, %v3297
      %v3313 = vadd.f32 %v3312, %v3298
      %v3314 = vadd.f32 %v3313, %v3299
      %v3315 = vadd.f32 %v3314, %v3300
      %v3316 = vrot.slane %v3315, 4
      %v3317 = vadd.f32 %v3315, %v3316
      %v3318 = vrot.slane %v3317, 2
      %v3319 = vadd.f32 %v3317, %v3318
      %v3320 = vrot.slane %v3319, 1
      %v3321 = vadd.f32 %v3319, %v3320
      %v3322 = vsub.f32 %v3321, %v514
      %v3323 = vmul.f32 %v3322, %v3322
      %v3324 = vadd.f32 %v3284, %v3323
      %v3325 = vrsqrt.pop %v3324
      %v3326 = vmul.f32 %v3325, %v3324
      %v3327 = vmul.f32 %v3326, %v3325
      %v3328 = vmul.f32 0.5, %v3327
      %v3329 = vsub.f32 1.5, %v3328
      %v3330 = vmul.f32 %v3325, %v3329
      %v3331 = vmul.f32 %v3324, %v3330
      %vm3332 = vcmp.eq.f32.partialorder %v3324, inf
      %v3333 = vsel %vm3332, %v3324, %v3331
      %vm3334 = vcmp.eq.f32.partialorder %v3324, 0.0
      %v3335 = vand.u32 %v3324, 2147483648
      %v3336 = vsel %vm3334, %v3335, %v3333
      %v3337 = vsel %vm248, %v3336, 0.0
      %v3339 = vrot.slane %v3337, 1
      %v3341 = vadd.f32 %v2784, %v3339
      %v3342 = vperm.slane %v2229, 2
      %vm3343 = vcmp.eq.s32.totalorder %v346, %v3342
      %vm3344 = vcmp.eq.s32.totalorder %v347, %v3342
      %vm3345 = vcmp.eq.s32.totalorder %v348, %v3342
      %vm3346 = vcmp.eq.s32.totalorder %v349, %v3342
      %vm3347 = vcmp.eq.s32.totalorder %v350, %v3342
      %vm3348 = vcmp.eq.s32.totalorder %v351, %v3342
      %vm3349 = vcmp.eq.s32.totalorder %v352, %v3342
      %vm3350 = vcmp.eq.s32.totalorder %v353, %v3342
      %vm3351 = vcmp.eq.s32.totalorder %v354, %v3342
      %vm3352 = vcmp.eq.s32.totalorder %v355, %v3342
      %vm3353 = vcmp.eq.s32.totalorder %v356, %v3342
      %vm3354 = vcmp.eq.s32.totalorder %v357, %v3342
      %vm3355 = vcmp.eq.s32.totalorder %v358, %v3342
      %vm3356 = vcmp.eq.s32.totalorder %v359, %v3342
      %vm3357 = vcmp.eq.s32.totalorder %v360, %v3342
      %vm3358 = vcmp.eq.s32.totalorder %v361, %v3342
      %vm3359 = vcmp.eq.s32.totalorder %v362, %v3342
      %vm3360 = vcmp.eq.s32.totalorder %v363, %v3342
      %vm3361 = vcmp.eq.s32.totalorder %v364, %v3342
      %vm3362 = vcmp.eq.s32.totalorder %v365, %v3342
      %vm3363 = vcmp.eq.s32.totalorder %v366, %v3342
      %vm3364 = vcmp.eq.s32.totalorder %v367, %v3342
      %vm3365 = vcmp.eq.s32.totalorder %v368, %v3342
      %vm3366 = vcmp.eq.s32.totalorder %v369, %v3342
      %vm3367 = vcmp.eq.s32.totalorder %v370, %v3342
      %vm3368 = vcmp.eq.s32.totalorder %v371, %v3342
      %vm3369 = vcmp.eq.s32.totalorder %v372, %v3342
      %vm3370 = vcmp.eq.s32.totalorder %v373, %v3342
      %vm3371 = vcmp.eq.s32.totalorder %v374, %v3342
      %vm3372 = vcmp.eq.s32.totalorder %v375, %v3342
      %vm3373 = vcmp.eq.s32.totalorder %v376, %v3342
      %vm3374 = vcmp.eq.s32.totalorder %v377, %v3342
      %v3375 = vsel %vm3343, 1.0, 0.0
      %v3376 = vsel %vm3344, 1.0, 0.0
      %v3377 = vsel %vm3345, 1.0, 0.0
      %v3378 = vsel %vm3346, 1.0, 0.0
      %v3379 = vsel %vm3347, 1.0, 0.0
      %v3380 = vsel %vm3348, 1.0, 0.0
      %v3381 = vsel %vm3349, 1.0, 0.0
      %v3382 = vsel %vm3350, 1.0, 0.0
      %v3383 = vsel %vm3351, 1.0, 0.0
      %v3384 = vsel %vm3352, 1.0, 0.0
      %v3385 = vsel %vm3353, 1.0, 0.0
      %v3386 = vsel %vm3354, 1.0, 0.0
      %v3387 = vsel %vm3355, 1.0, 0.0
      %v3388 = vsel %vm3356, 1.0, 0.0
      %v3389 = vsel %vm3357, 1.0, 0.0
      %v3390 = vsel %vm3358, 1.0, 0.0
      %v3391 = vsel %vm3359, 1.0, 0.0
      %v3392 = vsel %vm3360, 1.0, 0.0
      %v3393 = vsel %vm3361, 1.0, 0.0
      %v3394 = vsel %vm3362, 1.0, 0.0
      %v3395 = vsel %vm3363, 1.0, 0.0
      %v3396 = vsel %vm3364, 1.0, 0.0
      %v3397 = vsel %vm3365, 1.0, 0.0
      %v3398 = vsel %vm3366, 1.0, 0.0
      %v3399 = vsel %vm3367, 1.0, 0.0
      %v3400 = vsel %vm3368, 1.0, 0.0
      %v3401 = vsel %vm3369, 1.0, 0.0
      %v3402 = vsel %vm3370, 1.0, 0.0
      %v3403 = vsel %vm3371, 1.0, 0.0
      %v3404 = vsel %vm3372, 1.0, 0.0
      %v3405 = vsel %vm3373, 1.0, 0.0
      %v3406 = vsel %vm3374, 1.0, 0.0
      %v3407 = vperm.slane %v2230, 2
      %vm3408 = vcmp.eq.s32.totalorder %v346, %v3407
      %vm3409 = vcmp.eq.s32.totalorder %v347, %v3407
      %vm3410 = vcmp.eq.s32.totalorder %v348, %v3407
      %vm3411 = vcmp.eq.s32.totalorder %v349, %v3407
      %vm3412 = vcmp.eq.s32.totalorder %v350, %v3407
      %vm3413 = vcmp.eq.s32.totalorder %v351, %v3407
      %vm3414 = vcmp.eq.s32.totalorder %v352, %v3407
      %vm3415 = vcmp.eq.s32.totalorder %v353, %v3407
      %vm3416 = vcmp.eq.s32.totalorder %v354, %v3407
      %vm3417 = vcmp.eq.s32.totalorder %v355, %v3407
      %vm3418 = vcmp.eq.s32.totalorder %v356, %v3407
      %vm3419 = vcmp.eq.s32.totalorder %v357, %v3407
      %vm3420 = vcmp.eq.s32.totalorder %v358, %v3407
      %vm3421 = vcmp.eq.s32.totalorder %v359, %v3407
      %vm3422 = vcmp.eq.s32.totalorder %v360, %v3407
      %vm3423 = vcmp.eq.s32.totalorder %v361, %v3407
      %v3424 = vsel %vm3408, 1.0, 0.0
      %v3425 = vsel %vm3409, 1.0, 0.0
      %v3426 = vsel %vm3410, 1.0, 0.0
      %v3427 = vsel %vm3411, 1.0, 0.0
      %v3428 = vsel %vm3412, 1.0, 0.0
      %v3429 = vsel %vm3413, 1.0, 0.0
      %v3430 = vsel %vm3414, 1.0, 0.0
      %v3431 = vsel %vm3415, 1.0, 0.0
      %v3432 = vsel %vm3416, 1.0, 0.0
      %v3433 = vsel %vm3417, 1.0, 0.0
      %v3434 = vsel %vm3418, 1.0, 0.0
      %v3435 = vsel %vm3419, 1.0, 0.0
      %v3436 = vsel %vm3420, 1.0, 0.0
      %v3437 = vsel %vm3421, 1.0, 0.0
      %v3438 = vsel %vm3422, 1.0, 0.0
      %v3439 = vsel %vm3423, 1.0, 0.0
      %3440 = vmatpush.msra.mxu0 %v3390
      %3441 = vmatpush.msra.mxu0 %v3389
      %3442 = vmatpush.msra.mxu0 %v3388
      %3443 = vmatpush.msra.mxu0 %v3387
      %3444 = vmatpush.msra.mxu0 %v3386
      %3445 = vmatpush.msra.mxu0 %v3385
      %3446 = vmatpush.msra.mxu0 %v3384
      %3447 = vmatpush.msra.mxu0 %v3383
      %3448 = vmatpush.msra.mxu0 %v3382
      %3449 = vmatpush.msra.mxu0 %v3381
      %3450 = vmatpush.msra.mxu0 %v3380
      %3451 = vmatpush.msra.mxu0 %v3379
      %3452 = vmatpush.msra.mxu0 %v3378
      %3453 = vmatpush.msra.mxu0 %v3377
      %3454 = vmatpush.msra.mxu0 %v3376
      %3455 = vmatpush.msra.mxu0 %v3375
      %3456 = vmatmul.f32.gmra.mxu0 %v249
      %v3457 = vpop.f32.mrf.mxu0
      %v3458 = vadd.f32 0.0, %v3457
      %3459 = vmatmul.f32.gmra.mxu0 %v251
      %v3460 = vpop.f32.mrf.mxu0
      %v3461 = vadd.f32 0.0, %v3460
      %3462 = vmatmul.f32.gmra.mxu0 %v253
      %v3463 = vpop.f32.mrf.mxu0
      %v3464 = vadd.f32 0.0, %v3463
      %3465 = vmatmul.f32.gmra.mxu0 %v255
      %v3466 = vpop.f32.mrf.mxu0
      %v3467 = vadd.f32 0.0, %v3466
      %3468 = vmatmul.f32.gmra.mxu0 %v257
      %v3469 = vpop.f32.mrf.mxu0
      %v3470 = vadd.f32 0.0, %v3469
      %3471 = vmatmul.f32.gmra.mxu0 %v259
      %v3472 = vpop.f32.mrf.mxu0
      %v3473 = vadd.f32 0.0, %v3472
      %3474 = vmatmul.f32.gmra.mxu0 %v261
      %v3475 = vpop.f32.mrf.mxu0
      %v3476 = vadd.f32 0.0, %v3475
      %3477 = vmatmul.f32.gmra.mxu0 %v263
      %v3478 = vpop.f32.mrf.mxu0
      %v3479 = vadd.f32 0.0, %v3478
      %3480 = vmatmul.f32.gmra.mxu0 %v265
      %v3481 = vpop.f32.mrf.mxu0
      %v3482 = vadd.f32 0.0, %v3481
      %3483 = vmatmul.f32.gmra.mxu0 %v267
      %v3484 = vpop.f32.mrf.mxu0
      %v3485 = vadd.f32 0.0, %v3484
      %3486 = vmatmul.f32.gmra.mxu0 %v269
      %v3487 = vpop.f32.mrf.mxu0
      %v3488 = vadd.f32 0.0, %v3487
      %3489 = vmatmul.f32.gmra.mxu0 %v271
      %v3490 = vpop.f32.mrf.mxu0
      %v3491 = vadd.f32 0.0, %v3490
      %3492 = vmatmul.f32.gmra.mxu0 %v273
      %v3493 = vpop.f32.mrf.mxu0
      %v3494 = vadd.f32 0.0, %v3493
      %3495 = vmatmul.f32.gmra.mxu0 %v275
      %v3496 = vpop.f32.mrf.mxu0
      %v3497 = vadd.f32 0.0, %v3496
      %3498 = vmatmul.f32.gmra.mxu0 %v277
      %v3499 = vpop.f32.mrf.mxu0
      %v3500 = vadd.f32 0.0, %v3499
      %3501 = vmatmul.f32.gmra.mxu0 %v279
      %v3502 = vpop.f32.mrf.mxu0
      %v3503 = vadd.f32 0.0, %v3502
      %3504 = vmatmul.f32.gmra.mxu0 %v281
      %v3505 = vpop.f32.mrf.mxu0
      %v3506 = vadd.f32 0.0, %v3505
      %3507 = vmatmul.f32.gmra.mxu0 %v283
      %v3508 = vpop.f32.mrf.mxu0
      %v3509 = vadd.f32 0.0, %v3508
      %3510 = vmatmul.f32.gmra.mxu0 %v285
      %v3511 = vpop.f32.mrf.mxu0
      %v3512 = vadd.f32 0.0, %v3511
      %3513 = vmatmul.f32.gmra.mxu0 %v287
      %v3514 = vpop.f32.mrf.mxu0
      %v3515 = vadd.f32 0.0, %v3514
      %3516 = vmatmul.f32.gmra.mxu0 %v289
      %v3517 = vpop.f32.mrf.mxu0
      %v3518 = vadd.f32 0.0, %v3517
      %3519 = vmatmul.f32.gmra.mxu0 %v291
      %v3520 = vpop.f32.mrf.mxu0
      %v3521 = vadd.f32 0.0, %v3520
      %3522 = vmatmul.f32.gmra.mxu0 %v293
      %v3523 = vpop.f32.mrf.mxu0
      %v3524 = vadd.f32 0.0, %v3523
      %3525 = vmatmul.f32.gmra.mxu0 %v295
      %v3526 = vpop.f32.mrf.mxu0
      %v3527 = vadd.f32 0.0, %v3526
      %3528 = vmatmul.f32.gmra.mxu0 %v297
      %v3529 = vpop.f32.mrf.mxu0
      %v3530 = vadd.f32 0.0, %v3529
      %3531 = vmatmul.f32.gmra.mxu0 %v299
      %v3532 = vpop.f32.mrf.mxu0
      %v3533 = vadd.f32 0.0, %v3532
      %3534 = vmatmul.f32.gmra.mxu0 %v301
      %v3535 = vpop.f32.mrf.mxu0
      %v3536 = vadd.f32 0.0, %v3535
      %3537 = vmatmul.f32.gmra.mxu0 %v303
      %v3538 = vpop.f32.mrf.mxu0
      %v3539 = vadd.f32 0.0, %v3538
      %3540 = vmatmul.f32.gmra.mxu0 %v305
      %v3541 = vpop.f32.mrf.mxu0
      %v3542 = vadd.f32 0.0, %v3541
      %3543 = vmatmul.f32.gmra.mxu0 %v307
      %v3544 = vpop.f32.mrf.mxu0
      %v3545 = vadd.f32 0.0, %v3544
      %3546 = vmatmul.f32.gmra.mxu0 %v309
      %v3547 = vpop.f32.mrf.mxu0
      %v3548 = vadd.f32 0.0, %v3547
      %3549 = vmatmul.f32.gmra.mxu0 %v311
      %v3550 = vpop.f32.mrf.mxu0
      %v3551 = vadd.f32 0.0, %v3550
      %3552 = vmatmul.f32.gmra.mxu0 %v313
      %v3553 = vpop.f32.mrf.mxu0
      %v3554 = vadd.f32 0.0, %v3553
      %3555 = vmatmul.f32.gmra.mxu0 %v315
      %v3556 = vpop.f32.mrf.mxu0
      %v3557 = vadd.f32 0.0, %v3556
      %3558 = vmatmul.f32.gmra.mxu0 %v317
      %v3559 = vpop.f32.mrf.mxu0
      %v3560 = vadd.f32 0.0, %v3559
      %3561 = vmatmul.f32.gmra.mxu0 %v319
      %v3562 = vpop.f32.mrf.mxu0
      %v3563 = vadd.f32 0.0, %v3562
      %3564 = vmatmul.f32.gmra.mxu0 %v321
      %v3565 = vpop.f32.mrf.mxu0
      %v3566 = vadd.f32 0.0, %v3565
      %3567 = vmatmul.f32.gmra.mxu0 %v323
      %v3568 = vpop.f32.mrf.mxu0
      %v3569 = vadd.f32 0.0, %v3568
      %3570 = vmatmul.f32.gmra.mxu0 %v325
      %v3571 = vpop.f32.mrf.mxu0
      %v3572 = vadd.f32 0.0, %v3571
      %3573 = vmatmul.f32.gmra.mxu0 %v327
      %v3574 = vpop.f32.mrf.mxu0
      %v3575 = vadd.f32 0.0, %v3574
      %3576 = vmatmul.f32.gmra.mxu0 %v329
      %v3577 = vpop.f32.mrf.mxu0
      %v3578 = vadd.f32 0.0, %v3577
      %3579 = vmatmul.f32.gmra.mxu0 %v331
      %v3580 = vpop.f32.mrf.mxu0
      %v3581 = vadd.f32 0.0, %v3580
      %3582 = vmatmul.f32.gmra.mxu0 %v333
      %v3583 = vpop.f32.mrf.mxu0
      %v3584 = vadd.f32 0.0, %v3583
      %3585 = vmatmul.f32.gmra.mxu0 %v335
      %v3586 = vpop.f32.mrf.mxu0
      %v3587 = vadd.f32 0.0, %v3586
      %3588 = vmatmul.f32.gmra.mxu0 %v337
      %v3589 = vpop.f32.mrf.mxu0
      %v3590 = vadd.f32 0.0, %v3589
      %3591 = vmatmul.f32.gmra.mxu0 %v339
      %v3592 = vpop.f32.mrf.mxu0
      %v3593 = vadd.f32 0.0, %v3592
      %3594 = vmatmul.f32.gmra.mxu0 %v341
      %v3595 = vpop.f32.mrf.mxu0
      %v3596 = vadd.f32 0.0, %v3595
      %3597 = vmatmul.f32.gmra.mxu0 %v343
      %v3598 = vpop.f32.mrf.mxu0
      %v3599 = vadd.f32 0.0, %v3598
      %3600 = vdwg.mxu0
      %3601 = vmatpush.msra.mxu0 %v3406
      %3602 = vmatpush.msra.mxu0 %v3405
      %3603 = vmatpush.msra.mxu0 %v3404
      %3604 = vmatpush.msra.mxu0 %v3403
      %3605 = vmatpush.msra.mxu0 %v3402
      %3606 = vmatpush.msra.mxu0 %v3401
      %3607 = vmatpush.msra.mxu0 %v3400
      %3608 = vmatpush.msra.mxu0 %v3399
      %3609 = vmatpush.msra.mxu0 %v3398
      %3610 = vmatpush.msra.mxu0 %v3397
      %3611 = vmatpush.msra.mxu0 %v3396
      %3612 = vmatpush.msra.mxu0 %v3395
      %3613 = vmatpush.msra.mxu0 %v3394
      %3614 = vmatpush.msra.mxu0 %v3393
      %3615 = vmatpush.msra.mxu0 %v3392
      %3616 = vmatpush.msra.mxu0 %v3391
      %3617 = vmatmul.f32.gmra.mxu0 %v250
      %v3618 = vpop.f32.mrf.mxu0
      %v3619 = vadd.f32 %v3458, %v3618
      %3620 = vmatmul.f32.gmra.mxu0 %v252
      %v3621 = vpop.f32.mrf.mxu0
      %v3622 = vadd.f32 %v3461, %v3621
      %3623 = vmatmul.f32.gmra.mxu0 %v254
      %v3624 = vpop.f32.mrf.mxu0
      %v3625 = vadd.f32 %v3464, %v3624
      %3626 = vmatmul.f32.gmra.mxu0 %v256
      %v3627 = vpop.f32.mrf.mxu0
      %v3628 = vadd.f32 %v3467, %v3627
      %3629 = vmatmul.f32.gmra.mxu0 %v258
      %v3630 = vpop.f32.mrf.mxu0
      %v3631 = vadd.f32 %v3470, %v3630
      %3632 = vmatmul.f32.gmra.mxu0 %v260
      %v3633 = vpop.f32.mrf.mxu0
      %v3634 = vadd.f32 %v3473, %v3633
      %3635 = vmatmul.f32.gmra.mxu0 %v262
      %v3636 = vpop.f32.mrf.mxu0
      %v3637 = vadd.f32 %v3476, %v3636
      %3638 = vmatmul.f32.gmra.mxu0 %v264
      %v3639 = vpop.f32.mrf.mxu0
      %v3640 = vadd.f32 %v3479, %v3639
      %3641 = vmatmul.f32.gmra.mxu0 %v266
      %v3642 = vpop.f32.mrf.mxu0
      %v3643 = vadd.f32 %v3482, %v3642
      %3644 = vmatmul.f32.gmra.mxu0 %v268
      %v3645 = vpop.f32.mrf.mxu0
      %v3646 = vadd.f32 %v3485, %v3645
      %3647 = vmatmul.f32.gmra.mxu0 %v270
      %v3648 = vpop.f32.mrf.mxu0
      %v3649 = vadd.f32 %v3488, %v3648
      %3650 = vmatmul.f32.gmra.mxu0 %v272
      %v3651 = vpop.f32.mrf.mxu0
      %v3652 = vadd.f32 %v3491, %v3651
      %3653 = vmatmul.f32.gmra.mxu0 %v274
      %v3654 = vpop.f32.mrf.mxu0
      %v3655 = vadd.f32 %v3494, %v3654
      %3656 = vmatmul.f32.gmra.mxu0 %v276
      %v3657 = vpop.f32.mrf.mxu0
      %v3658 = vadd.f32 %v3497, %v3657
      %3659 = vmatmul.f32.gmra.mxu0 %v278
      %v3660 = vpop.f32.mrf.mxu0
      %v3661 = vadd.f32 %v3500, %v3660
      %3662 = vmatmul.f32.gmra.mxu0 %v280
      %v3663 = vpop.f32.mrf.mxu0
      %v3664 = vadd.f32 %v3503, %v3663
      %3665 = vmatmul.f32.gmra.mxu0 %v282
      %v3666 = vpop.f32.mrf.mxu0
      %v3667 = vadd.f32 %v3506, %v3666
      %3668 = vmatmul.f32.gmra.mxu0 %v284
      %v3669 = vpop.f32.mrf.mxu0
      %v3670 = vadd.f32 %v3509, %v3669
      %3671 = vmatmul.f32.gmra.mxu0 %v286
      %v3672 = vpop.f32.mrf.mxu0
      %v3673 = vadd.f32 %v3512, %v3672
      %3674 = vmatmul.f32.gmra.mxu0 %v288
      %v3675 = vpop.f32.mrf.mxu0
      %v3676 = vadd.f32 %v3515, %v3675
      %3677 = vmatmul.f32.gmra.mxu0 %v290
      %v3678 = vpop.f32.mrf.mxu0
      %v3679 = vadd.f32 %v3518, %v3678
      %3680 = vmatmul.f32.gmra.mxu0 %v292
      %v3681 = vpop.f32.mrf.mxu0
      %v3682 = vadd.f32 %v3521, %v3681
      %3683 = vmatmul.f32.gmra.mxu0 %v294
      %v3684 = vpop.f32.mrf.mxu0
      %v3685 = vadd.f32 %v3524, %v3684
      %3686 = vmatmul.f32.gmra.mxu0 %v296
      %v3687 = vpop.f32.mrf.mxu0
      %v3688 = vadd.f32 %v3527, %v3687
      %3689 = vmatmul.f32.gmra.mxu0 %v298
      %v3690 = vpop.f32.mrf.mxu0
      %v3691 = vadd.f32 %v3530, %v3690
      %3692 = vmatmul.f32.gmra.mxu0 %v300
      %v3693 = vpop.f32.mrf.mxu0
      %v3694 = vadd.f32 %v3533, %v3693
      %3695 = vmatmul.f32.gmra.mxu0 %v302
      %v3696 = vpop.f32.mrf.mxu0
      %v3697 = vadd.f32 %v3536, %v3696
      %3698 = vmatmul.f32.gmra.mxu0 %v304
      %v3699 = vpop.f32.mrf.mxu0
      %v3700 = vadd.f32 %v3539, %v3699
      %3701 = vmatmul.f32.gmra.mxu0 %v306
      %v3702 = vpop.f32.mrf.mxu0
      %v3703 = vadd.f32 %v3542, %v3702
      %3704 = vmatmul.f32.gmra.mxu0 %v308
      %v3705 = vpop.f32.mrf.mxu0
      %v3706 = vadd.f32 %v3545, %v3705
      %3707 = vmatmul.f32.gmra.mxu0 %v310
      %v3708 = vpop.f32.mrf.mxu0
      %v3709 = vadd.f32 %v3548, %v3708
      %3710 = vmatmul.f32.gmra.mxu0 %v312
      %v3711 = vpop.f32.mrf.mxu0
      %v3712 = vadd.f32 %v3551, %v3711
      %3713 = vmatmul.f32.gmra.mxu0 %v314
      %v3714 = vpop.f32.mrf.mxu0
      %v3715 = vadd.f32 %v3554, %v3714
      %3716 = vmatmul.f32.gmra.mxu0 %v316
      %v3717 = vpop.f32.mrf.mxu0
      %v3718 = vadd.f32 %v3557, %v3717
      %3719 = vmatmul.f32.gmra.mxu0 %v318
      %v3720 = vpop.f32.mrf.mxu0
      %v3721 = vadd.f32 %v3560, %v3720
      %3722 = vmatmul.f32.gmra.mxu0 %v320
      %v3723 = vpop.f32.mrf.mxu0
      %v3724 = vadd.f32 %v3563, %v3723
      %3725 = vmatmul.f32.gmra.mxu0 %v322
      %v3726 = vpop.f32.mrf.mxu0
      %v3727 = vadd.f32 %v3566, %v3726
      %3728 = vmatmul.f32.gmra.mxu0 %v324
      %v3729 = vpop.f32.mrf.mxu0
      %v3730 = vadd.f32 %v3569, %v3729
      %3731 = vmatmul.f32.gmra.mxu0 %v326
      %v3732 = vpop.f32.mrf.mxu0
      %v3733 = vadd.f32 %v3572, %v3732
      %3734 = vmatmul.f32.gmra.mxu0 %v328
      %v3735 = vpop.f32.mrf.mxu0
      %v3736 = vadd.f32 %v3575, %v3735
      %3737 = vmatmul.f32.gmra.mxu0 %v330
      %v3738 = vpop.f32.mrf.mxu0
      %v3739 = vadd.f32 %v3578, %v3738
      %3740 = vmatmul.f32.gmra.mxu0 %v332
      %v3741 = vpop.f32.mrf.mxu0
      %v3742 = vadd.f32 %v3581, %v3741
      %3743 = vmatmul.f32.gmra.mxu0 %v334
      %v3744 = vpop.f32.mrf.mxu0
      %v3745 = vadd.f32 %v3584, %v3744
      %3746 = vmatmul.f32.gmra.mxu0 %v336
      %v3747 = vpop.f32.mrf.mxu0
      %v3748 = vadd.f32 %v3587, %v3747
      %3749 = vmatmul.f32.gmra.mxu0 %v338
      %v3750 = vpop.f32.mrf.mxu0
      %v3751 = vadd.f32 %v3590, %v3750
      %3752 = vmatmul.f32.gmra.mxu0 %v340
      %v3753 = vpop.f32.mrf.mxu0
      %v3754 = vadd.f32 %v3593, %v3753
      %3755 = vmatmul.f32.gmra.mxu0 %v342
      %v3756 = vpop.f32.mrf.mxu0
      %v3757 = vadd.f32 %v3596, %v3756
      %3758 = vmatmul.f32.gmra.mxu0 %v344
      %v3759 = vpop.f32.mrf.mxu0
      %v3760 = vadd.f32 %v3599, %v3759
      %3761 = vdwg.mxu0
      %v3762 = vmul.f32 %v3619, %v3424
      %v3763 = vmul.f32 %v3622, %v3425
      %v3764 = vmul.f32 %v3625, %v3426
      %v3765 = vmul.f32 %v3628, %v3427
      %v3766 = vmul.f32 %v3631, %v3428
      %v3767 = vmul.f32 %v3634, %v3429
      %v3768 = vmul.f32 %v3637, %v3430
      %v3769 = vmul.f32 %v3640, %v3431
      %v3770 = vmul.f32 %v3643, %v3432
      %v3771 = vmul.f32 %v3646, %v3433
      %v3772 = vmul.f32 %v3649, %v3434
      %v3773 = vmul.f32 %v3652, %v3435
      %v3774 = vmul.f32 %v3655, %v3436
      %v3775 = vmul.f32 %v3658, %v3437
      %v3776 = vmul.f32 %v3661, %v3438
      %v3777 = vmul.f32 %v3664, %v3439
      %v3778 = vadd.f32 %v3762, %v3763
      %v3779 = vadd.f32 %v3778, %v3764
      %v3780 = vadd.f32 %v3779, %v3765
      %v3781 = vadd.f32 %v3780, %v3766
      %v3782 = vadd.f32 %v3781, %v3767
      %v3783 = vadd.f32 %v3782, %v3768
      %v3784 = vadd.f32 %v3783, %v3769
      %v3785 = vadd.f32 %v3784, %v3770
      %v3786 = vadd.f32 %v3785, %v3771
      %v3787 = vadd.f32 %v3786, %v3772
      %v3788 = vadd.f32 %v3787, %v3773
      %v3789 = vadd.f32 %v3788, %v3774
      %v3790 = vadd.f32 %v3789, %v3775
      %v3791 = vadd.f32 %v3790, %v3776
      %v3792 = vadd.f32 %v3791, %v3777
      %v3793 = vrot.slane %v3792, 4
      %v3794 = vadd.f32 %v3792, %v3793
      %v3795 = vrot.slane %v3794, 2
      %v3796 = vadd.f32 %v3794, %v3795
      %v3797 = vrot.slane %v3796, 1
      %v3798 = vadd.f32 %v3796, %v3797
      %v3799 = vsub.f32 %v3798, %v490
      %v3800 = vmul.f32 %v3799, %v3799
      %v3801 = vadd.f32 %v3800, 0.0
      %v3802 = vmul.f32 %v3667, %v3424
      %v3803 = vmul.f32 %v3670, %v3425
      %v3804 = vmul.f32 %v3673, %v3426
      %v3805 = vmul.f32 %v3676, %v3427
      %v3806 = vmul.f32 %v3679, %v3428
      %v3807 = vmul.f32 %v3682, %v3429
      %v3808 = vmul.f32 %v3685, %v3430
      %v3809 = vmul.f32 %v3688, %v3431
      %v3810 = vmul.f32 %v3691, %v3432
      %v3811 = vmul.f32 %v3694, %v3433
      %v3812 = vmul.f32 %v3697, %v3434
      %v3813 = vmul.f32 %v3700, %v3435
      %v3814 = vmul.f32 %v3703, %v3436
      %v3815 = vmul.f32 %v3706, %v3437
      %v3816 = vmul.f32 %v3709, %v3438
      %v3817 = vmul.f32 %v3712, %v3439
      %v3818 = vadd.f32 %v3802, %v3803
      %v3819 = vadd.f32 %v3818, %v3804
      %v3820 = vadd.f32 %v3819, %v3805
      %v3821 = vadd.f32 %v3820, %v3806
      %v3822 = vadd.f32 %v3821, %v3807
      %v3823 = vadd.f32 %v3822, %v3808
      %v3824 = vadd.f32 %v3823, %v3809
      %v3825 = vadd.f32 %v3824, %v3810
      %v3826 = vadd.f32 %v3825, %v3811
      %v3827 = vadd.f32 %v3826, %v3812
      %v3828 = vadd.f32 %v3827, %v3813
      %v3829 = vadd.f32 %v3828, %v3814
      %v3830 = vadd.f32 %v3829, %v3815
      %v3831 = vadd.f32 %v3830, %v3816
      %v3832 = vadd.f32 %v3831, %v3817
      %v3833 = vrot.slane %v3832, 4
      %v3834 = vadd.f32 %v3832, %v3833
      %v3835 = vrot.slane %v3834, 2
      %v3836 = vadd.f32 %v3834, %v3835
      %v3837 = vrot.slane %v3836, 1
      %v3838 = vadd.f32 %v3836, %v3837
      %v3839 = vsub.f32 %v3838, %v503
      %v3840 = vmul.f32 %v3839, %v3839
      %v3841 = vadd.f32 %v3801, %v3840
      %v3842 = vmul.f32 %v3715, %v3424
      %v3843 = vmul.f32 %v3718, %v3425
      %v3844 = vmul.f32 %v3721, %v3426
      %v3845 = vmul.f32 %v3724, %v3427
      %v3846 = vmul.f32 %v3727, %v3428
      %v3847 = vmul.f32 %v3730, %v3429
      %v3848 = vmul.f32 %v3733, %v3430
      %v3849 = vmul.f32 %v3736, %v3431
      %v3850 = vmul.f32 %v3739, %v3432
      %v3851 = vmul.f32 %v3742, %v3433
      %v3852 = vmul.f32 %v3745, %v3434
      %v3853 = vmul.f32 %v3748, %v3435
      %v3854 = vmul.f32 %v3751, %v3436
      %v3855 = vmul.f32 %v3754, %v3437
      %v3856 = vmul.f32 %v3757, %v3438
      %v3857 = vmul.f32 %v3760, %v3439
      %v3858 = vadd.f32 %v3842, %v3843
      %v3859 = vadd.f32 %v3858, %v3844
      %v3860 = vadd.f32 %v3859, %v3845
      %v3861 = vadd.f32 %v3860, %v3846
      %v3862 = vadd.f32 %v3861, %v3847
      %v3863 = vadd.f32 %v3862, %v3848
      %v3864 = vadd.f32 %v3863, %v3849
      %v3865 = vadd.f32 %v3864, %v3850
      %v3866 = vadd.f32 %v3865, %v3851
      %v3867 = vadd.f32 %v3866, %v3852
      %v3868 = vadd.f32 %v3867, %v3853
      %v3869 = vadd.f32 %v3868, %v3854
      %v3870 = vadd.f32 %v3869, %v3855
      %v3871 = vadd.f32 %v3870, %v3856
      %v3872 = vadd.f32 %v3871, %v3857
      %v3873 = vrot.slane %v3872, 4
      %v3874 = vadd.f32 %v3872, %v3873
      %v3875 = vrot.slane %v3874, 2
      %v3876 = vadd.f32 %v3874, %v3875
      %v3877 = vrot.slane %v3876, 1
      %v3878 = vadd.f32 %v3876, %v3877
      %v3879 = vsub.f32 %v3878, %v514
      %v3880 = vmul.f32 %v3879, %v3879
      %v3881 = vadd.f32 %v3841, %v3880
      %v3882 = vrsqrt.pop %v3881
      %v3883 = vmul.f32 %v3882, %v3881
      %v3884 = vmul.f32 %v3883, %v3882
      %v3885 = vmul.f32 0.5, %v3884
      %v3886 = vsub.f32 1.5, %v3885
      %v3887 = vmul.f32 %v3882, %v3886
      %v3888 = vmul.f32 %v3881, %v3887
      %vm3889 = vcmp.eq.f32.partialorder %v3881, inf
      %v3890 = vsel %vm3889, %v3881, %v3888
      %vm3891 = vcmp.eq.f32.partialorder %v3881, 0.0
      %v3892 = vand.u32 %v3881, 2147483648
      %v3893 = vsel %vm3891, %v3892, %v3890
      %v3894 = vsel %vm248, %v3893, 0.0
      %v3896 = vrot.slane %v3894, 2
      %v3898 = vadd.f32 %v3341, %v3896
      %vm3899 = vcmask 1040384
      %v3900 = vsel %vm3899, %v3898, 0.0
      %3901 = vadd.xlane.f32.xlu0 %v3900
      %v3902 = vpop.xlane.xlu0 %3901
      %3903 = vst [vmem:[%s244] sm:$0x1] %v3902
      %p3904 = scmp.lt.s32.totalorder %s15, 1
      %s3905 = scalar_select %p3904, %s15, 1
      %s3906 = scalar_lea.vmem %s4, %s3905
      // Predicated region
      $region37: #{prsnet_symm_dist_loss.1} parent=35 // pred_check
        %p3907 = pneg %p137
      $region38: #{prsnet_symm_dist_loss.1} parent=35 // pred_check_branch
        %3909 = sbr.rel (%p3907) target = $region40
      $region39: #{prsnet_symm_dist_loss.1} parent=35 // pred_region
        _
      $region40: #{prsnet_symm_dist_loss.1} parent=35 // pred_fallthru
        _
    $region36: #{prsnet_symm_dist_loss.1} parent=5 // pred_fallthru
      _
    %p3910 = scmp.le.s32.totalorder 2, %s10
    // Predicated region
    $region41: #{prsnet_symm_dist_loss.1} parent=5 // pred_check
      %p3911 = pneg %p3910
    $region42: #{prsnet_symm_dist_loss.1} parent=5 // pred_check_branch
      %3913 = sbr.rel (%p3911) target = $region44
    $region43: #{prsnet_symm_dist_loss.1} parent=5 // pred_region
      %s3914 = ssub.s32 %s10, 2
      // Predicated region
      $region45: #{prsnet_symm_dist_loss.1} parent=43 // pred_check
        %p3915 = pneg %p143
      $region46: #{prsnet_symm_dist_loss.1} parent=43 // pred_check_branch
        %3917 = sbr.rel (%p3915) target = $region48
      $region47: #{prsnet_symm_dist_loss.1} parent=43 // pred_region
        %p3918 = scmp.lt.s32.totalorder %s16, 1
        %s3919 = scalar_select %p3918, %s16, 1
        %s3920 = scalar_lea.vmem %s4, %s3919
      $region48: #{prsnet_symm_dist_loss.1} parent=43 // pred_fallthru
        _
    $region44: #{prsnet_symm_dist_loss.1} parent=5 // pred_fallthru
      _
  $region6: #{prsnet_symm_dist_loss.1} parent=0 // loop_footer
    %s14 = sadd.s32 1, %s10
  $region7: #{prsnet_symm_dist_loss.1} parent=0 // loop_footer_branch
    %9 = sbr.rel target = $region3
  $region8: #{prsnet_symm_dist_loss.1} parent=0 // loop_exit
    _

</llo_original>
